<compile_context>
chip_gen: v5e
topology: v5e:2x2
jax: 0.10.0
libtpu: 0.0.40
codegen_flags: <defaults>
</compile_context>

<pallas_src>
import functools

import jax
import jax.numpy as jnp
from jax.experimental import pallas as pl
from jax.experimental.pallas import tpu as pltpu

EPS = 1e-5  # PyTorch BatchNorm2d default eps

_VMEM = pl.BlockSpec(memory_space=pltpu.MemorySpace.VMEM)
_COMPILER_PARAMS = pltpu.CompilerParams(vmem_limit_bytes=32 * 1024 * 1024)


# ----------------------------- Pallas kernels ------------------------------

def conv_bn_relu_kernel(p_ref, w_ref, g_ref, b_ref, o_ref):
    """out[C, M] = relu(BN( W[C, K] @ P[K, M] )), lane-dense over M."""
    y = jnp.dot(w_ref[...], p_ref[...], preferred_element_type=jnp.float32)   # [C, M]
    # Conv bias omitted on purpose: training-mode BN subtracts the batch mean,
    # which cancels any per-channel bias exactly.
    mean = jnp.mean(y, axis=1, keepdims=True)                                 # [C, 1]
    yc = y - mean                                                             # center once, reuse
    var = jnp.mean(yc * yc, axis=1, keepdims=True)                            # biased variance
    scale = g_ref[...] * jax.lax.rsqrt(var + EPS)                             # fold gamma into scale
    o_ref[...] = jnp.maximum(yc * scale + b_ref[...], 0.0)


def conv_bn_relu_head_kernel(p_ref, w_ref, g_ref, b_ref, hw_ref, hb_ref, o_ref,
                             *, batch):
    """Last conv layer + BN + ReLU + fused Linear(576, A) head.

    p:  [K, M]   M = batch*3*3, columns ordered (b, h, w)
    w:  [64, K]; g/b: [64, 1]
    hw: [A, 64, 9]  (PyTorch head weight reshaped once; 9 = h*3 + w)
    hb: [A, 1]
    o:  [A, batch]  (transposed to [batch, A] by the wrapper)
    """
    y = jnp.dot(w_ref[...], p_ref[...], preferred_element_type=jnp.float32)   # [64, B*9]
    mean = jnp.mean(y, axis=1, keepdims=True)
    yc = y - mean
    var = jnp.mean(yc * yc, axis=1, keepdims=True)
    scale = g_ref[...] * jax.lax.rsqrt(var + EPS)
    y = jnp.maximum(yc * scale + b_ref[...], 0.0)                             # [64, B*9]

    hw = hw_ref[...]                                                          # [A, 64, 9]
    for b in range(batch):                                                    # static unroll (B tiny)
        blk = y[:, b * 9:(b + 1) * 9]                                         # [64, 9] == x4[b] in (C,H,W)
        t = jnp.sum(blk[None, :, :] * hw, axis=2)                             # [A, 64]
        q = jnp.sum(t, axis=1, keepdims=True) + hb_ref[...]                   # [A, 1]
        o_ref[:, b:b + 1] = q


# ------------------------------ call wrappers -------------------------------

def conv_bn_relu(patches, w_mat, gamma, beta):
    K, M = patches.shape
    C = w_mat.shape[0]
    cost = pl.CostEstimate(
        flops=2 * C * K * M + 6 * C * M,
        transcendentals=C,
        bytes_accessed=4 * (K * M + C * K + 2 * C + C * M),
    )
    return pl.pallas_call(
        conv_bn_relu_kernel,
        out_shape=jax.ShapeDtypeStruct((C, M), jnp.float32),
        in_specs=[_VMEM] * 4,
        out_specs=_VMEM,
        compiler_params=_COMPILER_PARAMS,
        cost_estimate=cost,
    )(patches, w_mat, gamma, beta)


def conv_bn_relu_head(patches, w_mat, gamma, beta, hw3, hb, batch):
    K, M = patches.shape
    C = w_mat.shape[0]
    A = hw3.shape[0]
    cost = pl.CostEstimate(
        flops=2 * C * K * M + 6 * C * M + 2 * A * C * 9 * batch,
        transcendentals=C,
        bytes_accessed=4 * (K * M + C * K + 2 * C + A * C * 9 + A + A * batch),
    )
    kernel = functools.partial(conv_bn_relu_head_kernel, batch=batch)
    out = pl.pallas_call(
        kernel,
        out_shape=jax.ShapeDtypeStruct((A, batch), jnp.float32),
        in_specs=[_VMEM] * 6,
        out_specs=_VMEM,
        compiler_params=_COMPILER_PARAMS,
        cost_estimate=cost,
    )(patches, w_mat, gamma, beta, hw3, hb)
    return out.T   # tiny [A, B] -> [B, A]


# ------------------------------- JAX glue -----------------------------------

def im2col_cm(act, k=5, s=2):
    """act: [C, B, H, W] -> patches [C*k*k, B*Ho*Wo].

    Row order (c_in, kh, kw) matches PyTorch's w.reshape(C_out, -1); column
    order is (b, ho, wo).  Stack + reshape only — no transposes.
    """
    C, B, H, W = act.shape
    Ho = (H - k) // s + 1
    Wo = (W - k) // s + 1
    cols = []
    for i in range(k):
        for j in range(k):
            cols.append(act[:, :, i:i + s * (Ho - 1) + 1:s, j:j + s * (Wo - 1) + 1:s])
    p = jnp.stack(cols, axis=1)                          # [C, k*k, B, Ho, Wo]
    return p.reshape(C * k * k, B * Ho * Wo), Ho, Wo


def init_params(key, n_actions):
    """Parameters in the PyTorch module's native layout."""
    conv_specs = [(16, 3), (32, 16), (32, 32), (64, 32)]
    conv_params = []
    for cout, cin in conv_specs:
        key, k1, k2 = jax.random.split(key, 3)
        fan_in = cin * 5 * 5
        w = jax.random.normal(k1, (cout, cin, 5, 5), jnp.float32) / jnp.sqrt(fan_in)
        b = jax.random.normal(k2, (cout,), jnp.float32) * 0.01
        gamma = jnp.ones((cout,), jnp.float32)   # BatchNorm2d default weight
        beta = jnp.zeros((cout,), jnp.float32)   # BatchNorm2d default bias
        conv_params.append((w, b, gamma, beta))
    key, k1, k2 = jax.random.split(key, 3)
    hw = jax.random.normal(k1, (n_actions, 576), jnp.float32) / jnp.sqrt(576.0)
    hb = jax.random.normal(k2, (n_actions,), jnp.float32) * 0.01
    return conv_params, (hw, hb)


def prepare_kernel_params(conv_params, head_params):
    """One-time re-layout of the parameters for the Pallas kernels."""
    kconv = []
    for w, _b, gamma, beta in conv_params:
        cout = w.shape[0]
        # Conv bias dropped: cancels exactly under training-mode BatchNorm.
        kconv.append((w.reshape(cout, -1),            # [C_out, C_in*25]
                      gamma.reshape(cout, 1),
                      beta.reshape(cout, 1)))
    hw, hb = head_params
    A = hw.shape[0]
    # PyTorch x.view(B,-1) flattens (C, H, W); [A, 64, 9] reproduces that order.
    khead = (hw.reshape(A, 64, 9), hb.reshape(A, 1))
    return kconv, khead


def dqn_forward(x_nchw, kconv, khead):
    B = x_nchw.shape[0]
    act = jnp.transpose(x_nchw, (1, 0, 2, 3))            # [C, B, H, W] — only transpose in the model
    for layer, (w_mat, gamma, beta) in enumerate(kconv):
        patches, Ho, Wo = im2col_cm(act, k=5, s=2)       # [K, M]
        cout = w_mat.shape[0]
        if layer < len(kconv) - 1:
            y = conv_bn_relu(patches, w_mat, gamma, beta)    # [C_out, M] lane-dense
            act = y.reshape(cout, B, Ho, Wo)                 # metadata-only reshape
        else:
            hw3, hb = khead
            return conv_bn_relu_head(patches, w_mat, gamma, beta, hw3, hb, B)


def reference_forward(x, conv_params, head_params):
    """Pure-JAX reference of the PyTorch module in training mode."""
    for w, b, gamma, beta in conv_params:
        y = jax.lax.conv_general_dilated(
            x, w, window_strides=(2, 2), padding='VALID',
            dimension_numbers=('NCHW', 'OIHW', 'NCHW'),
            precision=jax.lax.Precision.HIGHEST)
        y = y + b[None, :, None, None]
        mean = jnp.mean(y, axis=(0, 2, 3), keepdims=True)
        var = jnp.mean((y - mean) ** 2, axis=(0, 2, 3), keepdims=True)
        y = (y - mean) * jax.lax.rsqrt(var + EPS) * gamma[None, :, None, None] \
            + beta[None, :, None, None]
        x = jnp.maximum(y, 0.0)
    hw, hb = head_params
    flat = x.reshape(x.shape[0], -1)
    return jnp.dot(flat, hw.T, precision=jax.lax.Precision.HIGHEST) + hb


# --------------------------------- main --------------------------------------

if __name__ == "__main__":
    key = jax.random.PRNGKey(0)
    kx, kp = jax.random.split(key)

    n_actions = 4
    B, C, H, W = 2, 3, 93, 93   # 93 -> 45 -> 21 -> 9 -> 3 ; 64*3*3 = 576 (module's Linear in_features)

    x = jax.random.normal(kx, (B, C, H, W), jnp.float32)
    conv_params, head_params = init_params(kp, n_actions)
    kconv, khead = prepare_kernel_params(conv_params, head_params)

    fwd = jax.jit(dqn_forward)
    q_values = fwd(x, kconv, khead)
    jax.block_until_ready(q_values)

    assert q_values.shape == (B, n_actions)
    assert bool(jnp.all(jnp.isfinite(q_values)))

    # Validate against a pure-JAX/XLA reference of the PyTorch forward.
    q_ref = jax.jit(reference_forward)(x, conv_params, head_params)
    max_err = float(jnp.max(jnp.abs(q_values - q_ref)))
    assert jnp.allclose(q_values, q_ref, rtol=5e-2, atol=5e-2), f"max abs err {max_err}"

    print("KERNEL_OK")
</pallas_src>

<mosaic_0001>
module attributes {stable_mosaic.version = 11 : i64} {
  func.func @conv_bn_relu_kernel(%arg0: memref<75x4050xf32, #tpu.memory_space<vmem>>, %arg1: memref<16x75xf32, #tpu.memory_space<vmem>>, %arg2: memref<16x1xf32, #tpu.memory_space<vmem>>, %arg3: memref<16x1xf32, #tpu.memory_space<vmem>>, %arg4: memref<16x4050xf32, #tpu.memory_space<vmem>>) attributes {dimension_semantics = [], scalar_prefetch = 0 : i64, scratch_operands = 0 : i64, tpu.core_type = #tpu.core_type<tc>} {
    %c0 = arith.constant 0 : index
    %c0_0 = arith.constant 0 : index
    %0 = vector.load %arg1[%c0, %c0_0] : memref<16x75xf32, #tpu.memory_space<vmem>>, vector<16x75xf32>
    %c0_1 = arith.constant 0 : index
    %c0_2 = arith.constant 0 : index
    %1 = vector.load %arg0[%c0_1, %c0_2] : memref<75x4050xf32, #tpu.memory_space<vmem>>, vector<75x4050xf32>
    %cst = arith.constant dense<0.000000e+00> : vector<16x4050xf32>
    %2 = tpu.matmul %0, %1, %cst {dimension_numbers = #tpu.dot_dimension_numbers<[1], [0], [0], [1], [0, 0, 1, 1], [], []>} : vector<16x75xf32>, vector<75x4050xf32>, vector<16x4050xf32> -> vector<16x4050xf32>
    %cst_3 = arith.constant dense<0.000000e+00> : vector<16xf32>
    %3 = vector.multi_reduction <add>, %2, %cst_3 [1] : vector<16x4050xf32> to vector<16xf32>
    %4 = vector.shape_cast %3 : vector<16xf32> to vector<16x1xf32>
    %cst_4 = arith.constant 4.050000e+03 : f32
    %5 = vector.broadcast %cst_4 : f32 to vector<16x1xf32>
    %6 = arith.divf %4, %5 : vector<16x1xf32>
    %7 = vector.broadcast %6 : vector<16x1xf32> to vector<16x4050xf32>
    %8 = arith.subf %2, %7 : vector<16x4050xf32>
    %9 = arith.mulf %8, %8 : vector<16x4050xf32>
    %cst_5 = arith.constant dense<0.000000e+00> : vector<16xf32>
    %10 = vector.multi_reduction <add>, %9, %cst_5 [1] : vector<16x4050xf32> to vector<16xf32>
    %11 = vector.shape_cast %10 : vector<16xf32> to vector<16x1xf32>
    %cst_6 = arith.constant 4.050000e+03 : f32
    %12 = vector.broadcast %cst_6 : f32 to vector<16x1xf32>
    %13 = arith.divf %11, %12 : vector<16x1xf32>
    %c0_7 = arith.constant 0 : index
    %c0_8 = arith.constant 0 : index
    %14 = vector.load %arg2[%c0_7, %c0_8] : memref<16x1xf32, #tpu.memory_space<vmem>>, vector<16x1xf32>
    %cst_9 = arith.constant 9.99999974E-6 : f32
    %15 = vector.broadcast %cst_9 : f32 to vector<16x1xf32>
    %16 = arith.addf %13, %15 : vector<16x1xf32>
    %17 = math.rsqrt %16 : vector<16x1xf32>
    %18 = arith.mulf %14, %17 : vector<16x1xf32>
    %19 = vector.broadcast %18 : vector<16x1xf32> to vector<16x4050xf32>
    %20 = arith.mulf %8, %19 : vector<16x4050xf32>
    %c0_10 = arith.constant 0 : index
    %c0_11 = arith.constant 0 : index
    %21 = vector.load %arg3[%c0_10, %c0_11] : memref<16x1xf32, #tpu.memory_space<vmem>>, vector<16x1xf32>
    %22 = vector.broadcast %21 : vector<16x1xf32> to vector<16x4050xf32>
    %23 = arith.addf %20, %22 : vector<16x4050xf32>
    %cst_12 = arith.constant 0.000000e+00 : f32
    %24 = vector.broadcast %cst_12 : f32 to vector<16x4050xf32>
    %25 = arith.maximumf %23, %24 : vector<16x4050xf32>
    %c0_13 = arith.constant 0 : index
    %c0_14 = arith.constant 0 : index
    %26 = vector.load %arg4[%c0_13, %c0_14] : memref<16x4050xf32, #tpu.memory_space<vmem>>, vector<16x4050xf32>
    tpu.vector_store %arg4[%c0_13, %c0_14], %25 {strides = array<i32>} : memref<16x4050xf32, #tpu.memory_space<vmem>>, vector<16x4050xf32>,
    return
  }
}

module attributes {stable_mosaic.version = 11 : i64} {
  func.func @conv_bn_relu_kernel(%arg0: memref<400x882xf32, #tpu.memory_space<vmem>>, %arg1: memref<32x400xf32, #tpu.memory_space<vmem>>, %arg2: memref<32x1xf32, #tpu.memory_space<vmem>>, %arg3: memref<32x1xf32, #tpu.memory_space<vmem>>, %arg4: memref<32x882xf32, #tpu.memory_space<vmem>>) attributes {dimension_semantics = [], scalar_prefetch = 0 : i64, scratch_operands = 0 : i64, tpu.core_type = #tpu.core_type<tc>} {
    %c0 = arith.constant 0 : index
    %c0_0 = arith.constant 0 : index
    %0 = vector.load %arg1[%c0, %c0_0] : memref<32x400xf32, #tpu.memory_space<vmem>>, vector<32x400xf32>
    %c0_1 = arith.constant 0 : index
    %c0_2 = arith.constant 0 : index
    %1 = vector.load %arg0[%c0_1, %c0_2] : memref<400x882xf32, #tpu.memory_space<vmem>>, vector<400x882xf32>
    %cst = arith.constant dense<0.000000e+00> : vector<32x882xf32>
    %2 = tpu.matmul %0, %1, %cst {dimension_numbers = #tpu.dot_dimension_numbers<[1], [0], [0], [1], [0, 0, 1, 1], [], []>} : vector<32x400xf32>, vector<400x882xf32>, vector<32x882xf32> -> vector<32x882xf32>
    %cst_3 = arith.constant dense<0.000000e+00> : vector<32xf32>
    %3 = vector.multi_reduction <add>, %2, %cst_3 [1] : vector<32x882xf32> to vector<32xf32>
    %4 = vector.shape_cast %3 : vector<32xf32> to vector<32x1xf32>
    %cst_4 = arith.constant 8.820000e+02 : f32
    %5 = vector.broadcast %cst_4 : f32 to vector<32x1xf32>
    %6 = arith.divf %4, %5 : vector<32x1xf32>
    %7 = vector.broadcast %6 : vector<32x1xf32> to vector<32x882xf32>
    %8 = arith.subf %2, %7 : vector<32x882xf32>
    %9 = arith.mulf %8, %8 : vector<32x882xf32>
    %cst_5 = arith.constant dense<0.000000e+00> : vector<32xf32>
    %10 = vector.multi_reduction <add>, %9, %cst_5 [1] : vector<32x882xf32> to vector<32xf32>
    %11 = vector.shape_cast %10 : vector<32xf32> to vector<32x1xf32>
    %cst_6 = arith.constant 8.820000e+02 : f32
    %12 = vector.broadcast %cst_6 : f32 to vector<32x1xf32>
    %13 = arith.divf %11, %12 : vector<32x1xf32>
    %c0_7 = arith.constant 0 : index
    %c0_8 = arith.constant 0 : index
    %14 = vector.load %arg2[%c0_7, %c0_8] : memref<32x1xf32, #tpu.memory_space<vmem>>, vector<32x1xf32>
    %cst_9 = arith.constant 9.99999974E-6 : f32
    %15 = vector.broadcast %cst_9 : f32 to vector<32x1xf32>
    %16 = arith.addf %13, %15 : vector<32x1xf32>
    %17 = math.rsqrt %16 : vector<32x1xf32>
    %18 = arith.mulf %14, %17 : vector<32x1xf32>
    %19 = vector.broadcast %18 : vector<32x1xf32> to vector<32x882xf32>
    %20 = arith.mulf %8, %19 : vector<32x882xf32>
    %c0_10 = arith.constant 0 : index
    %c0_11 = arith.constant 0 : index
    %21 = vector.load %arg3[%c0_10, %c0_11] : memref<32x1xf32, #tpu.memory_space<vmem>>, vector<32x1xf32>
    %22 = vector.broadcast %21 : vector<32x1xf32> to vector<32x882xf32>
    %23 = arith.addf %20, %22 : vector<32x882xf32>
    %cst_12 = arith.constant 0.000000e+00 : f32
    %24 = vector.broadcast %cst_12 : f32 to vector<32x882xf32>
    %25 = arith.maximumf %23, %24 : vector<32x882xf32>
    %c0_13 = arith.constant 0 : index
    %c0_14 = arith.constant 0 : index
    %26 = vector.load %arg4[%c0_13, %c0_14] : memref<32x882xf32, #tpu.memory_space<vmem>>, vector<32x882xf32>
    tpu.vector_store %arg4[%c0_13, %c0_14], %25 {strides = array<i32>} : memref<32x882xf32, #tpu.memory_space<vmem>>, vector<32x882xf32>,
    return
  }
}

module attributes {stable_mosaic.version = 11 : i64} {
  func.func @conv_bn_relu_kernel(%arg0: memref<800x162xf32, #tpu.memory_space<vmem>>, %arg1: memref<32x800xf32, #tpu.memory_space<vmem>>, %arg2: memref<32x1xf32, #tpu.memory_space<vmem>>, %arg3: memref<32x1xf32, #tpu.memory_space<vmem>>, %arg4: memref<32x162xf32, #tpu.memory_space<vmem>>) attributes {dimension_semantics = [], scalar_prefetch = 0 : i64, scratch_operands = 0 : i64, tpu.core_type = #tpu.core_type<tc>} {
    %c0 = arith.constant 0 : index
    %c0_0 = arith.constant 0 : index
    %0 = vector.load %arg1[%c0, %c0_0] : memref<32x800xf32, #tpu.memory_space<vmem>>, vector<32x800xf32>
    %c0_1 = arith.constant 0 : index
    %c0_2 = arith.constant 0 : index
    %1 = vector.load %arg0[%c0_1, %c0_2] : memref<800x162xf32, #tpu.memory_space<vmem>>, vector<800x162xf32>
    %cst = arith.constant dense<0.000000e+00> : vector<32x162xf32>
    %2 = tpu.matmul %0, %1, %cst {dimension_numbers = #tpu.dot_dimension_numbers<[1], [0], [0], [1], [0, 0, 1, 1], [], []>} : vector<32x800xf32>, vector<800x162xf32>, vector<32x162xf32> -> vector<32x162xf32>
    %cst_3 = arith.constant dense<0.000000e+00> : vector<32xf32>
    %3 = vector.multi_reduction <add>, %2, %cst_3 [1] : vector<32x162xf32> to vector<32xf32>
    %4 = vector.shape_cast %3 : vector<32xf32> to vector<32x1xf32>
    %cst_4 = arith.constant 1.620000e+02 : f32
    %5 = vector.broadcast %cst_4 : f32 to vector<32x1xf32>
    %6 = arith.divf %4, %5 : vector<32x1xf32>
    %7 = vector.broadcast %6 : vector<32x1xf32> to vector<32x162xf32>
    %8 = arith.subf %2, %7 : vector<32x162xf32>
    %9 = arith.mulf %8, %8 : vector<32x162xf32>
    %cst_5 = arith.constant dense<0.000000e+00> : vector<32xf32>
    %10 = vector.multi_reduction <add>, %9, %cst_5 [1] : vector<32x162xf32> to vector<32xf32>
    %11 = vector.shape_cast %10 : vector<32xf32> to vector<32x1xf32>
    %cst_6 = arith.constant 1.620000e+02 : f32
    %12 = vector.broadcast %cst_6 : f32 to vector<32x1xf32>
    %13 = arith.divf %11, %12 : vector<32x1xf32>
    %c0_7 = arith.constant 0 : index
    %c0_8 = arith.constant 0 : index
    %14 = vector.load %arg2[%c0_7, %c0_8] : memref<32x1xf32, #tpu.memory_space<vmem>>, vector<32x1xf32>
    %cst_9 = arith.constant 9.99999974E-6 : f32
    %15 = vector.broadcast %cst_9 : f32 to vector<32x1xf32>
    %16 = arith.addf %13, %15 : vector<32x1xf32>
    %17 = math.rsqrt %16 : vector<32x1xf32>
    %18 = arith.mulf %14, %17 : vector<32x1xf32>
    %19 = vector.broadcast %18 : vector<32x1xf32> to vector<32x162xf32>
    %20 = arith.mulf %8, %19 : vector<32x162xf32>
    %c0_10 = arith.constant 0 : index
    %c0_11 = arith.constant 0 : index
    %21 = vector.load %arg3[%c0_10, %c0_11] : memref<32x1xf32, #tpu.memory_space<vmem>>, vector<32x1xf32>
    %22 = vector.broadcast %21 : vector<32x1xf32> to vector<32x162xf32>
    %23 = arith.addf %20, %22 : vector<32x162xf32>
    %cst_12 = arith.constant 0.000000e+00 : f32
    %24 = vector.broadcast %cst_12 : f32 to vector<32x162xf32>
    %25 = arith.maximumf %23, %24 : vector<32x162xf32>
    %c0_13 = arith.constant 0 : index
    %c0_14 = arith.constant 0 : index
    %26 = vector.load %arg4[%c0_13, %c0_14] : memref<32x162xf32, #tpu.memory_space<vmem>>, vector<32x162xf32>
    tpu.vector_store %arg4[%c0_13, %c0_14], %25 {strides = array<i32>} : memref<32x162xf32, #tpu.memory_space<vmem>>, vector<32x162xf32>,
    return
  }
}

module attributes {stable_mosaic.version = 11 : i64} {
  func.func @conv_bn_relu_head_kernel(%arg0: memref<800x18xf32, #tpu.memory_space<vmem>>, %arg1: memref<64x800xf32, #tpu.memory_space<vmem>>, %arg2: memref<64x1xf32, #tpu.memory_space<vmem>>, %arg3: memref<64x1xf32, #tpu.memory_space<vmem>>, %arg4: memref<4x64x9xf32, #tpu.memory_space<vmem>>, %arg5: memref<4x1xf32, #tpu.memory_space<vmem>>, %arg6: memref<4x2xf32, #tpu.memory_space<vmem>>) attributes {dimension_semantics = [], scalar_prefetch = 0 : i64, scratch_operands = 0 : i64, tpu.core_type = #tpu.core_type<tc>} {
    %c0 = arith.constant 0 : index
    %c0_0 = arith.constant 0 : index
    %0 = vector.load %arg1[%c0, %c0_0] : memref<64x800xf32, #tpu.memory_space<vmem>>, vector<64x800xf32>
    %c0_1 = arith.constant 0 : index
    %c0_2 = arith.constant 0 : index
    %1 = vector.load %arg0[%c0_1, %c0_2] : memref<800x18xf32, #tpu.memory_space<vmem>>, vector<800x18xf32>
    %cst = arith.constant dense<0.000000e+00> : vector<64x18xf32>
    %2 = tpu.matmul %0, %1, %cst {dimension_numbers = #tpu.dot_dimension_numbers<[1], [0], [0], [1], [0, 0, 1, 1], [], []>} : vector<64x800xf32>, vector<800x18xf32>, vector<64x18xf32> -> vector<64x18xf32>
    %cst_3 = arith.constant dense<0.000000e+00> : vector<64xf32>
    %3 = vector.multi_reduction <add>, %2, %cst_3 [1] : vector<64x18xf32> to vector<64xf32>
    %4 = vector.shape_cast %3 : vector<64xf32> to vector<64x1xf32>
    %cst_4 = arith.constant 1.800000e+01 : f32
    %5 = vector.broadcast %cst_4 : f32 to vector<64x1xf32>
    %6 = arith.divf %4, %5 : vector<64x1xf32>
    %7 = vector.broadcast %6 : vector<64x1xf32> to vector<64x18xf32>
    %8 = arith.subf %2, %7 : vector<64x18xf32>
    %9 = arith.mulf %8, %8 : vector<64x18xf32>
    %cst_5 = arith.constant dense<0.000000e+00> : vector<64xf32>
    %10 = vector.multi_reduction <add>, %9, %cst_5 [1] : vector<64x18xf32> to vector<64xf32>
    %11 = vector.shape_cast %10 : vector<64xf32> to vector<64x1xf32>
    %cst_6 = arith.constant 1.800000e+01 : f32
    %12 = vector.broadcast %cst_6 : f32 to vector<64x1xf32>
    %13 = arith.divf %11, %12 : vector<64x1xf32>
    %c0_7 = arith.constant 0 : index
    %c0_8 = arith.constant 0 : index
    %14 = vector.load %arg2[%c0_7, %c0_8] : memref<64x1xf32, #tpu.memory_space<vmem>>, vector<64x1xf32>
    %cst_9 = arith.constant 9.99999974E-6 : f32
    %15 = vector.broadcast %cst_9 : f32 to vector<64x1xf32>
    %16 = arith.addf %13, %15 : vector<64x1xf32>
    %17 = math.rsqrt %16 : vector<64x1xf32>
    %18 = arith.mulf %14, %17 : vector<64x1xf32>
    %19 = vector.broadcast %18 : vector<64x1xf32> to vector<64x18xf32>
    %20 = arith.mulf %8, %19 : vector<64x18xf32>
    %c0_10 = arith.constant 0 : index
    %c0_11 = arith.constant 0 : index
    %21 = vector.load %arg3[%c0_10, %c0_11] : memref<64x1xf32, #tpu.memory_space<vmem>>, vector<64x1xf32>
    %22 = vector.broadcast %21 : vector<64x1xf32> to vector<64x18xf32>
    %23 = arith.addf %20, %22 : vector<64x18xf32>
    %cst_12 = arith.constant 0.000000e+00 : f32
    %24 = vector.broadcast %cst_12 : f32 to vector<64x18xf32>
    %25 = arith.maximumf %23, %24 : vector<64x18xf32>
    %c0_13 = arith.constant 0 : index
    %c0_14 = arith.constant 0 : index
    %c0_15 = arith.constant 0 : index
    %26 = vector.load %arg4[%c0_13, %c0_14, %c0_15] : memref<4x64x9xf32, #tpu.memory_space<vmem>>, vector<4x64x9xf32>
    %27 = vector.extract_strided_slice %25 {offsets = [0, 0], sizes = [64, 9], strides = [1, 1]} : vector<64x18xf32> to vector<64x9xf32>
    %28 = vector.shape_cast %27 : vector<64x9xf32> to vector<1x64x9xf32>
    %29 = vector.broadcast %28 : vector<1x64x9xf32> to vector<4x64x9xf32>
    %30 = arith.mulf %29, %26 : vector<4x64x9xf32>
    %cst_16 = arith.constant dense<0.000000e+00> : vector<4x64xf32>
    %31 = vector.multi_reduction <add>, %30, %cst_16 [2] : vector<4x64x9xf32> to vector<4x64xf32>
    %cst_17 = arith.constant dense<0.000000e+00> : vector<4xf32>
    %32 = vector.multi_reduction <add>, %31, %cst_17 [1] : vector<4x64xf32> to vector<4xf32>
    %33 = vector.shape_cast %32 : vector<4xf32> to vector<4x1xf32>
    %c0_18 = arith.constant 0 : index
    %c0_19 = arith.constant 0 : index
    %34 = vector.load %arg5[%c0_18, %c0_19] : memref<4x1xf32, #tpu.memory_space<vmem>>, vector<4x1xf32>
    %35 = arith.addf %33, %34 : vector<4x1xf32>
    %c0_20 = arith.constant 0 : index
    %c0_21 = arith.constant 0 : index
    %36 = vector.load %arg6[%c0_20, %c0_21] : memref<4x2xf32, #tpu.memory_space<vmem>>, vector<4x1xf32>
    tpu.vector_store %arg6[%c0_20, %c0_21], %35 {strides = array<i32>} : memref<4x2xf32, #tpu.memory_space<vmem>>, vector<4x1xf32>,
    %37 = vector.extract_strided_slice %25 {offsets = [0, 9], sizes = [64, 9], strides = [1, 1]} : vector<64x18xf32> to vector<64x9xf32>
    %38 = vector.shape_cast %37 : vector<64x9xf32> to vector<1x64x9xf32>
    %39 = vector.broadcast %38 : vector<1x64x9xf32> to vector<4x64x9xf32>
    %40 = arith.mulf %39, %26 : vector<4x64x9xf32>
    %cst_22 = arith.constant dense<0.000000e+00> : vector<4x64xf32>
    %41 = vector.multi_reduction <add>, %40, %cst_22 [2] : vector<4x64x9xf32> to vector<4x64xf32>
    %cst_23 = arith.constant dense<0.000000e+00> : vector<4xf32>
    %42 = vector.multi_reduction <add>, %41, %cst_23 [1] : vector<4x64xf32> to vector<4xf32>
    %43 = vector.shape_cast %42 : vector<4xf32> to vector<4x1xf32>
    %c0_24 = arith.constant 0 : index
    %c0_25 = arith.constant 0 : index
    %44 = vector.load %arg5[%c0_24, %c0_25] : memref<4x1xf32, #tpu.memory_space<vmem>>, vector<4x1xf32>
    %45 = arith.addf %43, %44 : vector<4x1xf32>
    %c0_26 = arith.constant 0 : index
    %c1 = arith.constant 1 : index
    %46 = vector.load %arg6[%c0_26, %c1] : memref<4x2xf32, #tpu.memory_space<vmem>>, vector<4x1xf32>
    tpu.vector_store %arg6[%c0_26, %c1], %45 {strides = array<i32>} : memref<4x2xf32, #tpu.memory_space<vmem>>, vector<4x1xf32>,
    return
  }
}

</mosaic_0001>

<llo_original>
// kernel: dqn_forward.4
$region0: #{dqn_forward.4}
  #allocation0 [shape = 'u32[]', space=smem, size = 0x4, offset = 0x4, fixed_abs, tag = 'smem constant byte address 0x4 - core index']
  #allocation1 [shape = 'u32[72,128]{1,0:T(1,128)}', space=vmem, size = 0x9000, scoped, tag = 'internal scratch']
  %s0 = inlined_call_operand.vmem [shape: f32[75,4050], index: 0, kind: input, shape index: {}]
  %s1 = inlined_call_operand.vmem [shape: f32[16,75], index: 1, kind: input, shape index: {}]
  %s2 = inlined_call_operand.vmem [shape: f32[16,1], index: 2, kind: input, shape index: {}]
  %s3 = inlined_call_operand.vmem [shape: f32[16,1], index: 3, kind: input, shape index: {}]
  %s4 = inlined_call_operand.vmem [shape: f32[16,4050], index: 4, kind: output, shape index: {}]
  %s5 = sld [smem:[#allocation0]]
  $region26: #{dqn_forward.4} parent=0
    _
  %s7 = ssub.s32 1, %s5
  %s8 = scalar_select 0, %s7, %s5
  // Predicated region
  $region2: #{dqn_forward.4} parent=0 // pred_check
    _
  $region3: #{dqn_forward.4} parent=0 // pred_check_branch
    %10 = sbr.rel (0) target = $region5
  $region4: #{dqn_forward.4} parent=0 // pred_region
    _
  $region5: #{dqn_forward.4} parent=0 // pred_fallthru
    _
  // Predicated region
  $region6: #{dqn_forward.4} parent=0 // pred_check
    _
  $region7: #{dqn_forward.4} parent=0 // pred_check_branch
    %12 = sbr.rel (0) target = $region9
  $region8: #{dqn_forward.4} parent=0 // pred_region
    _
  $region9: #{dqn_forward.4} parent=0 // pred_fallthru
    _
  // Predicated region
  $region10: #{dqn_forward.4} parent=0 // pred_check
    _
  $region11: #{dqn_forward.4} parent=0 // pred_check_branch
    %14 = sbr.rel (0) target = $region13
  $region12: #{dqn_forward.4} parent=0 // pred_region
    _
  $region13: #{dqn_forward.4} parent=0 // pred_fallthru
    _
  // Predicated region
  $region14: #{dqn_forward.4} parent=0 // pred_check
    _
  $region15: #{dqn_forward.4} parent=0 // pred_check_branch
    %16 = sbr.rel (0) target = $region17
  $region16: #{dqn_forward.4} parent=0 // pred_region
    _
  $region17: #{dqn_forward.4} parent=0 // pred_fallthru
    _
  %v17 = vld [vmem:[%s1] sm:$0xff]
  %v18 = vld [vmem:[%s1 + $0x8] sm:$0xff]
  %v19 = vld [vmem:[%s0] sm:$0xff]
  %v20 = vld [vmem:[%s0 + $0x8] sm:$0xff]
  %v21 = vld [vmem:[%s0 + $0x10] sm:$0xff]
  %v22 = vld [vmem:[%s0 + $0x18] sm:$0xff]
  %v23 = vld [vmem:[%s0 + $0x20] sm:$0xff]
  %v24 = vld [vmem:[%s0 + $0x28] sm:$0xff]
  %v25 = vld [vmem:[%s0 + $0x30] sm:$0xff]
  %v26 = vld [vmem:[%s0 + $0x38] sm:$0xff]
  %v27 = vld [vmem:[%s0 + $0x40] sm:$0xff]
  %v28 = vld [vmem:[%s0 + $0x48] sm:$0xff]
  %v29 = vld [vmem:[%s0 + $0x50] sm:$0xff]
  %v30 = vld [vmem:[%s0 + $0x58] sm:$0xff]
  %v31 = vld [vmem:[%s0 + $0x60] sm:$0xff]
  %v32 = vld [vmem:[%s0 + $0x68] sm:$0xff]
  %v33 = vld [vmem:[%s0 + $0x70] sm:$0xff]
  %v34 = vld [vmem:[%s0 + $0x78] sm:$0xff]
  %v35 = vld [vmem:[%s0 + $0x80] sm:$0xff]
  %v36 = vld [vmem:[%s0 + $0x88] sm:$0xff]
  %v37 = vld [vmem:[%s0 + $0x90] sm:$0xff]
  %v38 = vld [vmem:[%s0 + $0x98] sm:$0xff]
  %v39 = vld [vmem:[%s0 + $0xa0] sm:$0xff]
  %v40 = vld [vmem:[%s0 + $0xa8] sm:$0xff]
  %v41 = vld [vmem:[%s0 + $0xb0] sm:$0xff]
  %v42 = vld [vmem:[%s0 + $0xb8] sm:$0xff]
  %v43 = vld [vmem:[%s0 + $0xc0] sm:$0xff]
  %v44 = vld [vmem:[%s0 + $0xc8] sm:$0xff]
  %v45 = vld [vmem:[%s0 + $0xd0] sm:$0xff]
  %v46 = vld [vmem:[%s0 + $0xd8] sm:$0xff]
  %v47 = vld [vmem:[%s0 + $0xe0] sm:$0xff]
  %v48 = vld [vmem:[%s0 + $0xe8] sm:$0xff]
  %v49 = vld [vmem:[%s0 + $0xf0] sm:$0xff]
  %v50 = vld [vmem:[%s0 + $0xf8] sm:$0xff]
  %v51 = vld [vmem:[%s0 + $0x100] sm:$0xff]
  %v52 = vld [vmem:[%s0 + $0x108] sm:$0xff]
  %v53 = vld [vmem:[%s0 + $0x110] sm:$0xff]
  %v54 = vld [vmem:[%s0 + $0x118] sm:$0xff]
  %v55 = vld [vmem:[%s0 + $0x120] sm:$0xff]
  %v56 = vld [vmem:[%s0 + $0x128] sm:$0xff]
  %v57 = vld [vmem:[%s0 + $0x130] sm:$0xff]
  %v58 = vld [vmem:[%s0 + $0x138] sm:$0xff]
  %v59 = vld [vmem:[%s0 + $0x140] sm:$0xff]
  %v60 = vld [vmem:[%s0 + $0x148] sm:$0xff]
  %v61 = vld [vmem:[%s0 + $0x150] sm:$0xff]
  %v62 = vld [vmem:[%s0 + $0x158] sm:$0xff]
  %v63 = vld [vmem:[%s0 + $0x160] sm:$0xff]
  %v64 = vld [vmem:[%s0 + $0x168] sm:$0xff]
  %v65 = vld [vmem:[%s0 + $0x170] sm:$0xff]
  %v66 = vld [vmem:[%s0 + $0x178] sm:$0xff]
  %v67 = vld [vmem:[%s0 + $0x180] sm:$0xff]
  %v68 = vld [vmem:[%s0 + $0x188] sm:$0xff]
  %v69 = vld [vmem:[%s0 + $0x190] sm:$0xff]
  %v70 = vld [vmem:[%s0 + $0x198] sm:$0xff]
  %v71 = vld [vmem:[%s0 + $0x1a0] sm:$0xff]
  %v72 = vld [vmem:[%s0 + $0x1a8] sm:$0xff]
  %v73 = vld [vmem:[%s0 + $0x1b0] sm:$0xff]
  %v74 = vld [vmem:[%s0 + $0x1b8] sm:$0xff]
  %v75 = vld [vmem:[%s0 + $0x1c0] sm:$0xff]
  %v76 = vld [vmem:[%s0 + $0x1c8] sm:$0xff]
  %v77 = vld [vmem:[%s0 + $0x1d0] sm:$0xff]
  %v78 = vld [vmem:[%s0 + $0x1d8] sm:$0xff]
  %v79 = vld [vmem:[%s0 + $0x1e0] sm:$0xff]
  %v80 = vld [vmem:[%s0 + $0x1e8] sm:$0xff]
  %v81 = vld [vmem:[%s0 + $0x1f0] sm:$0xff]
  %v82 = vld [vmem:[%s0 + $0x1f8] sm:$0xff]
  %v83 = vld [vmem:[%s0 + $0x200] sm:$0xff]
  %v84 = vld [vmem:[%s0 + $0x208] sm:$0xff]
  %v85 = vld [vmem:[%s0 + $0x210] sm:$0xff]
  %v86 = vld [vmem:[%s0 + $0x218] sm:$0xff]
  %v87 = vld [vmem:[%s0 + $0x220] sm:$0xff]
  %v88 = vld [vmem:[%s0 + $0x228] sm:$0xff]
  %v89 = vld [vmem:[%s0 + $0x230] sm:$0xff]
  %v90 = vld [vmem:[%s0 + $0x238] sm:$0xff]
  %v91 = vld [vmem:[%s0 + $0x240] sm:$0xff]
  %v92 = vld [vmem:[%s0 + $0x248] sm:$0xff]
  %v93 = vld [vmem:[%s0 + $0x250] sm:$0xff]
  %v94 = vld [vmem:[%s0 + $0x258] sm:$0xff]
  %v95 = vld [vmem:[%s0 + $0x260] sm:$0xff]
  %v96 = vld [vmem:[%s0 + $0x268] sm:$0xff]
  %v97 = vld [vmem:[%s0 + $0x270] sm:$0xff]
  %v98 = vld [vmem:[%s0 + $0x278] sm:$0xff]
  %v99 = vld [vmem:[%s0 + $0x280] sm:$0xff]
  %v100 = vld [vmem:[%s0 + $0x288] sm:$0xff]
  %v101 = vld [vmem:[%s0 + $0x290] sm:$0xff]
  %v102 = vld [vmem:[%s0 + $0x298] sm:$0xff]
  %v103 = vld [vmem:[%s0 + $0x2a0] sm:$0xff]
  %v104 = vld [vmem:[%s0 + $0x2a8] sm:$0xff]
  %v105 = vld [vmem:[%s0 + $0x2b0] sm:$0xff]
  %v106 = vld [vmem:[%s0 + $0x2b8] sm:$0xff]
  %v107 = vld [vmem:[%s0 + $0x2c0] sm:$0xff]
  %v108 = vld [vmem:[%s0 + $0x2c8] sm:$0xff]
  %v109 = vld [vmem:[%s0 + $0x2d0] sm:$0xff]
  %v110 = vld [vmem:[%s0 + $0x2d8] sm:$0xff]
  %v111 = vld [vmem:[%s0 + $0x2e0] sm:$0xff]
  %v112 = vld [vmem:[%s0 + $0x2e8] sm:$0xff]
  %v113 = vld [vmem:[%s0 + $0x2f0] sm:$0xff]
  %v114 = vld [vmem:[%s0 + $0x2f8] sm:$0xff]
  %v115 = vld [vmem:[%s0 + $0x300] sm:$0xff]
  %v116 = vld [vmem:[%s0 + $0x308] sm:$0xff]
  %v117 = vld [vmem:[%s0 + $0x310] sm:$0xff]
  %v118 = vld [vmem:[%s0 + $0x318] sm:$0xff]
  %v119 = vld [vmem:[%s0 + $0x320] sm:$0xff]
  %v120 = vld [vmem:[%s0 + $0x328] sm:$0xff]
  %v121 = vld [vmem:[%s0 + $0x330] sm:$0xff]
  %v122 = vld [vmem:[%s0 + $0x338] sm:$0xff]
  %v123 = vld [vmem:[%s0 + $0x340] sm:$0xff]
  %v124 = vld [vmem:[%s0 + $0x348] sm:$0xff]
  %v125 = vld [vmem:[%s0 + $0x350] sm:$0xff]
  %v126 = vld [vmem:[%s0 + $0x358] sm:$0xff]
  %v127 = vld [vmem:[%s0 + $0x360] sm:$0xff]
  %v128 = vld [vmem:[%s0 + $0x368] sm:$0xff]
  %v129 = vld [vmem:[%s0 + $0x370] sm:$0xff]
  %v130 = vld [vmem:[%s0 + $0x378] sm:$0xff]
  %v131 = vld [vmem:[%s0 + $0x380] sm:$0xff]
  %v132 = vld [vmem:[%s0 + $0x388] sm:$0xff]
  %v133 = vld [vmem:[%s0 + $0x390] sm:$0xff]
  %v134 = vld [vmem:[%s0 + $0x398] sm:$0xff]
  %v135 = vld [vmem:[%s0 + $0x3a0] sm:$0xff]
  %v136 = vld [vmem:[%s0 + $0x3a8] sm:$0xff]
  %v137 = vld [vmem:[%s0 + $0x3b0] sm:$0xff]
  %v138 = vld [vmem:[%s0 + $0x3b8] sm:$0xff]
  %v139 = vld [vmem:[%s0 + $0x3c0] sm:$0xff]
  %v140 = vld [vmem:[%s0 + $0x3c8] sm:$0xff]
  %v141 = vld [vmem:[%s0 + $0x3d0] sm:$0xff]
  %v142 = vld [vmem:[%s0 + $0x3d8] sm:$0xff]
  %v143 = vld [vmem:[%s0 + $0x3e0] sm:$0xff]
  %v144 = vld [vmem:[%s0 + $0x3e8] sm:$0xff]
  %v145 = vld [vmem:[%s0 + $0x3f0] sm:$0xff]
  %v146 = vld [vmem:[%s0 + $0x3f8] sm:$0xff]
  %v147 = vld [vmem:[%s0 + $0x400] sm:$0xff]
  %v148 = vld [vmem:[%s0 + $0x408] sm:$0xff]
  %v149 = vld [vmem:[%s0 + $0x410] sm:$0xff]
  %v150 = vld [vmem:[%s0 + $0x418] sm:$0xff]
  %v151 = vld [vmem:[%s0 + $0x420] sm:$0xff]
  %v152 = vld [vmem:[%s0 + $0x428] sm:$0xff]
  %v153 = vld [vmem:[%s0 + $0x430] sm:$0xff]
  %v154 = vld [vmem:[%s0 + $0x438] sm:$0xff]
  %v155 = vld [vmem:[%s0 + $0x440] sm:$0xff]
  %v156 = vld [vmem:[%s0 + $0x448] sm:$0xff]
  %v157 = vld [vmem:[%s0 + $0x450] sm:$0xff]
  %v158 = vld [vmem:[%s0 + $0x458] sm:$0xff]
  %v159 = vld [vmem:[%s0 + $0x460] sm:$0xff]
  %v160 = vld [vmem:[%s0 + $0x468] sm:$0xff]
  %v161 = vld [vmem:[%s0 + $0x470] sm:$0xff]
  %v162 = vld [vmem:[%s0 + $0x478] sm:$0xff]
  %v163 = vld [vmem:[%s0 + $0x480] sm:$0xff]
  %v164 = vld [vmem:[%s0 + $0x488] sm:$0xff]
  %v165 = vld [vmem:[%s0 + $0x490] sm:$0xff]
  %v166 = vld [vmem:[%s0 + $0x498] sm:$0xff]
  %v167 = vld [vmem:[%s0 + $0x4a0] sm:$0xff]
  %v168 = vld [vmem:[%s0 + $0x4a8] sm:$0xff]
  %v169 = vld [vmem:[%s0 + $0x4b0] sm:$0xff]
  %v170 = vld [vmem:[%s0 + $0x4b8] sm:$0xff]
  %v171 = vld [vmem:[%s0 + $0x4c0] sm:$0xff]
  %v172 = vld [vmem:[%s0 + $0x4c8] sm:$0xff]
  %v173 = vld [vmem:[%s0 + $0x4d0] sm:$0xff]
  %v174 = vld [vmem:[%s0 + $0x4d8] sm:$0xff]
  %v175 = vld [vmem:[%s0 + $0x4e0] sm:$0xff]
  %v176 = vld [vmem:[%s0 + $0x4e8] sm:$0xff]
  %v177 = vld [vmem:[%s0 + $0x4f0] sm:$0xff]
  %v178 = vld [vmem:[%s0 + $0x4f8] sm:$0xff]
  %v179 = vld [vmem:[%s0 + $0x500] sm:$0xff]
  %v180 = vld [vmem:[%s0 + $0x508] sm:$0xff]
  %v181 = vld [vmem:[%s0 + $0x510] sm:$0xff]
  %v182 = vld [vmem:[%s0 + $0x518] sm:$0xff]
  %v183 = vld [vmem:[%s0 + $0x520] sm:$0xff]
  %v184 = vld [vmem:[%s0 + $0x528] sm:$0xff]
  %v185 = vld [vmem:[%s0 + $0x530] sm:$0xff]
  %v186 = vld [vmem:[%s0 + $0x538] sm:$0xff]
  %v187 = vld [vmem:[%s0 + $0x540] sm:$0xff]
  %v188 = vld [vmem:[%s0 + $0x548] sm:$0xff]
  %v189 = vld [vmem:[%s0 + $0x550] sm:$0xff]
  %v190 = vld [vmem:[%s0 + $0x558] sm:$0xff]
  %v191 = vld [vmem:[%s0 + $0x560] sm:$0xff]
  %v192 = vld [vmem:[%s0 + $0x568] sm:$0xff]
  %v193 = vld [vmem:[%s0 + $0x570] sm:$0xff]
  %v194 = vld [vmem:[%s0 + $0x578] sm:$0xff]
  %v195 = vld [vmem:[%s0 + $0x580] sm:$0xff]
  %v196 = vld [vmem:[%s0 + $0x588] sm:$0xff]
  %v197 = vld [vmem:[%s0 + $0x590] sm:$0xff]
  %v198 = vld [vmem:[%s0 + $0x598] sm:$0xff]
  %v199 = vld [vmem:[%s0 + $0x5a0] sm:$0xff]
  %v200 = vld [vmem:[%s0 + $0x5a8] sm:$0xff]
  %v201 = vld [vmem:[%s0 + $0x5b0] sm:$0xff]
  %v202 = vld [vmem:[%s0 + $0x5b8] sm:$0xff]
  %v203 = vld [vmem:[%s0 + $0x5c0] sm:$0xff]
  %v204 = vld [vmem:[%s0 + $0x5c8] sm:$0xff]
  %v205 = vld [vmem:[%s0 + $0x5d0] sm:$0xff]
  %v206 = vld [vmem:[%s0 + $0x5d8] sm:$0xff]
  %v207 = vld [vmem:[%s0 + $0x5e0] sm:$0xff]
  %v208 = vld [vmem:[%s0 + $0x5e8] sm:$0xff]
  %v209 = vld [vmem:[%s0 + $0x5f0] sm:$0xff]
  %v210 = vld [vmem:[%s0 + $0x5f8] sm:$0xff]
  %v211 = vld [vmem:[%s0 + $0x600] sm:$0xff]
  %v212 = vld [vmem:[%s0 + $0x608] sm:$0xff]
  %v213 = vld [vmem:[%s0 + $0x610] sm:$0xff]
  %v214 = vld [vmem:[%s0 + $0x618] sm:$0xff]
  %v215 = vld [vmem:[%s0 + $0x620] sm:$0xff]
  %v216 = vld [vmem:[%s0 + $0x628] sm:$0xff]
  %v217 = vld [vmem:[%s0 + $0x630] sm:$0xff]
  %v218 = vld [vmem:[%s0 + $0x638] sm:$0xff]
  %v219 = vld [vmem:[%s0 + $0x640] sm:$0xff]
  %v220 = vld [vmem:[%s0 + $0x648] sm:$0xff]
  %v221 = vld [vmem:[%s0 + $0x650] sm:$0xff]
  %v222 = vld [vmem:[%s0 + $0x658] sm:$0xff]
  %v223 = vld [vmem:[%s0 + $0x660] sm:$0xff]
  %v224 = vld [vmem:[%s0 + $0x668] sm:$0xff]
  %v225 = vld [vmem:[%s0 + $0x670] sm:$0xff]
  %v226 = vld [vmem:[%s0 + $0x678] sm:$0xff]
  %v227 = vld [vmem:[%s0 + $0x680] sm:$0xff]
  %v228 = vld [vmem:[%s0 + $0x688] sm:$0xff]
  %v229 = vld [vmem:[%s0 + $0x690] sm:$0xff]
  %v230 = vld [vmem:[%s0 + $0x698] sm:$0xff]
  %v231 = vld [vmem:[%s0 + $0x6a0] sm:$0xff]
  %v232 = vld [vmem:[%s0 + $0x6a8] sm:$0xff]
  %v233 = vld [vmem:[%s0 + $0x6b0] sm:$0xff]
  %v234 = vld [vmem:[%s0 + $0x6b8] sm:$0xff]
  %v235 = vld [vmem:[%s0 + $0x6c0] sm:$0xff]
  %v236 = vld [vmem:[%s0 + $0x6c8] sm:$0xff]
  %v237 = vld [vmem:[%s0 + $0x6d0] sm:$0xff]
  %v238 = vld [vmem:[%s0 + $0x6d8] sm:$0xff]
  %v239 = vld [vmem:[%s0 + $0x6e0] sm:$0xff]
  %v240 = vld [vmem:[%s0 + $0x6e8] sm:$0xff]
  %v241 = vld [vmem:[%s0 + $0x6f0] sm:$0xff]
  %v242 = vld [vmem:[%s0 + $0x6f8] sm:$0xff]
  %v243 = vld [vmem:[%s0 + $0x700] sm:$0xff]
  %v244 = vld [vmem:[%s0 + $0x708] sm:$0xff]
  %v245 = vld [vmem:[%s0 + $0x710] sm:$0xff]
  %v246 = vld [vmem:[%s0 + $0x718] sm:$0xff]
  %v247 = vld [vmem:[%s0 + $0x720] sm:$0xff]
  %v248 = vld [vmem:[%s0 + $0x728] sm:$0xff]
  %v249 = vld [vmem:[%s0 + $0x730] sm:$0xff]
  %v250 = vld [vmem:[%s0 + $0x738] sm:$0xff]
  %v251 = vld [vmem:[%s0 + $0x740] sm:$0xff]
  %v252 = vld [vmem:[%s0 + $0x748] sm:$0xff]
  %v253 = vld [vmem:[%s0 + $0x750] sm:$0xff]
  %v254 = vld [vmem:[%s0 + $0x758] sm:$0xff]
  %v255 = vld [vmem:[%s0 + $0x760] sm:$0xff]
  %v256 = vld [vmem:[%s0 + $0x768] sm:$0xff]
  %v257 = vld [vmem:[%s0 + $0x770] sm:$0xff]
  %v258 = vld [vmem:[%s0 + $0x778] sm:$0xff]
  %v259 = vld [vmem:[%s0 + $0x780] sm:$0xff]
  %v260 = vld [vmem:[%s0 + $0x788] sm:$0xff]
  %v261 = vld [vmem:[%s0 + $0x790] sm:$0xff]
  %v262 = vld [vmem:[%s0 + $0x798] sm:$0xff]
  %v263 = vld [vmem:[%s0 + $0x7a0] sm:$0xff]
  %v264 = vld [vmem:[%s0 + $0x7a8] sm:$0xff]
  %v265 = vld [vmem:[%s0 + $0x7b0] sm:$0xff]
  %v266 = vld [vmem:[%s0 + $0x7b8] sm:$0xff]
  %v267 = vld [vmem:[%s0 + $0x7c0] sm:$0xff]
  %v268 = vld [vmem:[%s0 + $0x7c8] sm:$0xff]
  %v269 = vld [vmem:[%s0 + $0x7d0] sm:$0xff]
  %v270 = vld [vmem:[%s0 + $0x7d8] sm:$0xff]
  %v271 = vld [vmem:[%s0 + $0x7e0] sm:$0xff]
  %v272 = vld [vmem:[%s0 + $0x7e8] sm:$0xff]
  %v273 = vld [vmem:[%s0 + $0x7f0] sm:$0xff]
  %v274 = vld [vmem:[%s0 + $0x7f8] sm:$0xff]
  %v275 = vld [vmem:[%s0 + $0x800] sm:$0xff]
  %v276 = vld [vmem:[%s0 + $0x808] sm:$0xff]
  %v277 = vld [vmem:[%s0 + $0x810] sm:$0xff]
  %v278 = vld [vmem:[%s0 + $0x818] sm:$0xff]
  %v279 = vld [vmem:[%s0 + $0x820] sm:$0xff]
  %v280 = vld [vmem:[%s0 + $0x828] sm:$0xff]
  %v281 = vld [vmem:[%s0 + $0x830] sm:$0xff]
  %v282 = vld [vmem:[%s0 + $0x838] sm:$0xff]
  %v283 = vld [vmem:[%s0 + $0x840] sm:$0xff]
  %v284 = vld [vmem:[%s0 + $0x848] sm:$0xff]
  %v285 = vld [vmem:[%s0 + $0x850] sm:$0xff]
  %v286 = vld [vmem:[%s0 + $0x858] sm:$0xff]
  %v287 = vld [vmem:[%s0 + $0x860] sm:$0xff]
  %v288 = vld [vmem:[%s0 + $0x868] sm:$0xff]
  %v289 = vld [vmem:[%s0 + $0x870] sm:$0xff]
  %v290 = vld [vmem:[%s0 + $0x878] sm:$0xff]
  %v291 = vld [vmem:[%s0 + $0x880] sm:$0xff]
  %v292 = vld [vmem:[%s0 + $0x888] sm:$0xff]
  %v293 = vld [vmem:[%s0 + $0x890] sm:$0xff]
  %v294 = vld [vmem:[%s0 + $0x898] sm:$0xff]
  %v295 = vld [vmem:[%s0 + $0x8a0] sm:$0xff]
  %v296 = vld [vmem:[%s0 + $0x8a8] sm:$0xff]
  %v297 = vld [vmem:[%s0 + $0x8b0] sm:$0xff]
  %v298 = vld [vmem:[%s0 + $0x8b8] sm:$0xff]
  %v299 = vld [vmem:[%s0 + $0x8c0] sm:$0xff]
  %v300 = vld [vmem:[%s0 + $0x8c8] sm:$0xff]
  %v301 = vld [vmem:[%s0 + $0x8d0] sm:$0xff]
  %v302 = vld [vmem:[%s0 + $0x8d8] sm:$0xff]
  %v303 = vld [vmem:[%s0 + $0x8e0] sm:$0xff]
  %v304 = vld [vmem:[%s0 + $0x8e8] sm:$0xff]
  %v305 = vld [vmem:[%s0 + $0x8f0] sm:$0xff]
  %v306 = vld [vmem:[%s0 + $0x8f8] sm:$0xff]
  %v307 = vld [vmem:[%s0 + $0x900] sm:$0x7]
  %v308 = vld [vmem:[%s0 + $0x908] sm:$0x7]
  %v309 = vld [vmem:[%s0 + $0x910] sm:$0x7]
  %v310 = vld [vmem:[%s0 + $0x918] sm:$0x7]
  %v311 = vld [vmem:[%s0 + $0x920] sm:$0x7]
  %v312 = vld [vmem:[%s0 + $0x928] sm:$0x7]
  %v313 = vld [vmem:[%s0 + $0x930] sm:$0x7]
  %v314 = vld [vmem:[%s0 + $0x938] sm:$0x7]
  %v315 = vld [vmem:[%s0 + $0x940] sm:$0x7]
  %v316 = vld [vmem:[%s0 + $0x948] sm:$0x7]
  %v317 = vld [vmem:[%s0 + $0x950] sm:$0x7]
  %v318 = vld [vmem:[%s0 + $0x958] sm:$0x7]
  %v319 = vld [vmem:[%s0 + $0x960] sm:$0x7]
  %v320 = vld [vmem:[%s0 + $0x968] sm:$0x7]
  %v321 = vld [vmem:[%s0 + $0x970] sm:$0x7]
  %v322 = vld [vmem:[%s0 + $0x978] sm:$0x7]
  %v323 = vld [vmem:[%s0 + $0x980] sm:$0x7]
  %v324 = vld [vmem:[%s0 + $0x988] sm:$0x7]
  %v325 = vld [vmem:[%s0 + $0x990] sm:$0x7]
  %v326 = vld [vmem:[%s0 + $0x998] sm:$0x7]
  %v327 = vld [vmem:[%s0 + $0x9a0] sm:$0x7]
  %v328 = vld [vmem:[%s0 + $0x9a8] sm:$0x7]
  %v329 = vld [vmem:[%s0 + $0x9b0] sm:$0x7]
  %v330 = vld [vmem:[%s0 + $0x9b8] sm:$0x7]
  %v331 = vld [vmem:[%s0 + $0x9c0] sm:$0x7]
  %v332 = vld [vmem:[%s0 + $0x9c8] sm:$0x7]
  %v333 = vld [vmem:[%s0 + $0x9d0] sm:$0x7]
  %v334 = vld [vmem:[%s0 + $0x9d8] sm:$0x7]
  %v335 = vld [vmem:[%s0 + $0x9e0] sm:$0x7]
  %v336 = vld [vmem:[%s0 + $0x9e8] sm:$0x7]
  %v337 = vld [vmem:[%s0 + $0x9f0] sm:$0x7]
  %v338 = vld [vmem:[%s0 + $0x9f8] sm:$0x7]
  %vm339 = vcmask 613376
  %v341 = vsel %vm339, %v17, 0
  %v344 = vsel %vm339, %v18, 0
  %vm346 = vcmask 1042432
  %v348 = vsel %vm346, %v307, 0
  %v351 = vsel %vm346, %v308, 0
  %v354 = vsel %vm346, %v309, 0
  %v357 = vsel %vm346, %v310, 0
  %v360 = vsel %vm346, %v311, 0
  %v363 = vsel %vm346, %v312, 0
  %v366 = vsel %vm346, %v313, 0
  %v369 = vsel %vm346, %v314, 0
  %v372 = vsel %vm346, %v315, 0
  %v375 = vsel %vm346, %v316, 0
  %v378 = vsel %vm346, %v317, 0
  %v381 = vsel %vm346, %v318, 0
  %v384 = vsel %vm346, %v319, 0
  %v387 = vsel %vm346, %v320, 0
  %v390 = vsel %vm346, %v321, 0
  %v393 = vsel %vm346, %v322, 0
  %v396 = vsel %vm346, %v323, 0
  %v399 = vsel %vm346, %v324, 0
  %v402 = vsel %vm346, %v325, 0
  %v405 = vsel %vm346, %v326, 0
  %v408 = vsel %vm346, %v327, 0
  %v411 = vsel %vm346, %v328, 0
  %v414 = vsel %vm346, %v329, 0
  %v417 = vsel %vm346, %v330, 0
  %v420 = vsel %vm346, %v331, 0
  %v423 = vsel %vm346, %v332, 0
  %v426 = vsel %vm346, %v333, 0
  %v429 = vsel %vm346, %v334, 0
  %v432 = vsel %vm346, %v335, 0
  %v435 = vsel %vm346, %v336, 0
  %v438 = vsel %vm346, %v337, 0
  %v441 = vsel %vm346, %v338, 0
  %443 = vmatpush.msra.mxu0 0.0
  %444 = vmatpush.msra.mxu0 0.0
  %445 = vmatpush.msra.mxu0 0.0
  %446 = vmatpush.msra.mxu0 0.0
  %447 = vmatpush.msra.mxu0 0.0
  %448 = vmatpush.msra.mxu0 0.0
  %449 = vmatpush.msra.mxu0 %v348
  %450 = vmatpush.msra.mxu0 %v275
  %451 = vmatpush.msra.mxu0 %v243
  %452 = vmatpush.msra.mxu0 %v211
  %453 = vmatpush.msra.mxu0 %v179
  %454 = vmatpush.msra.mxu0 %v147
  %455 = vmatpush.msra.mxu0 %v115
  %456 = vmatpush.msra.mxu0 %v83
  %457 = vmatpush.msra.mxu0 %v51
  %458 = vmatpush.msra.mxu0 %v19
  %459 = vmatmul.f32.gmra.mxu0 %v341
  %v460 = vpop.f32.mrf.mxu0
  %v461 = vadd.f32 0.0, %v460
  %462 = vmatmul.f32.gmra.mxu0 %v344
  %v463 = vpop.f32.mrf.mxu0
  %v464 = vadd.f32 0.0, %v463
  %465 = vdwg.mxu0
  %466 = vmatpush.msra.mxu0 0.0
  %467 = vmatpush.msra.mxu0 0.0
  %468 = vmatpush.msra.mxu0 0.0
  %469 = vmatpush.msra.mxu0 0.0
  %470 = vmatpush.msra.mxu0 0.0
  %471 = vmatpush.msra.mxu0 0.0
  %472 = vmatpush.msra.mxu0 %v351
  %473 = vmatpush.msra.mxu0 %v276
  %474 = vmatpush.msra.mxu0 %v244
  %475 = vmatpush.msra.mxu0 %v212
  %476 = vmatpush.msra.mxu0 %v180
  %477 = vmatpush.msra.mxu0 %v148
  %478 = vmatpush.msra.mxu0 %v116
  %479 = vmatpush.msra.mxu0 %v84
  %480 = vmatpush.msra.mxu0 %v52
  %481 = vmatpush.msra.mxu0 %v20
  %482 = vmatmul.f32.gmra.mxu0 %v341
  %v483 = vpop.f32.mrf.mxu0
  %v484 = vadd.f32 0.0, %v483
  %485 = vmatmul.f32.gmra.mxu0 %v344
  %v486 = vpop.f32.mrf.mxu0
  %v487 = vadd.f32 0.0, %v486
  %488 = vdwg.mxu0
  %489 = vmatpush.msra.mxu0 0.0
  %490 = vmatpush.msra.mxu0 0.0
  %491 = vmatpush.msra.mxu0 0.0
  %492 = vmatpush.msra.mxu0 0.0
  %493 = vmatpush.msra.mxu0 0.0
  %494 = vmatpush.msra.mxu0 0.0
  %495 = vmatpush.msra.mxu0 %v354
  %496 = vmatpush.msra.mxu0 %v277
  %497 = vmatpush.msra.mxu0 %v245
  %498 = vmatpush.msra.mxu0 %v213
  %499 = vmatpush.msra.mxu0 %v181
  %500 = vmatpush.msra.mxu0 %v149
  %501 = vmatpush.msra.mxu0 %v117
  %502 = vmatpush.msra.mxu0 %v85
  %503 = vmatpush.msra.mxu0 %v53
  %504 = vmatpush.msra.mxu0 %v21
  %505 = vmatmul.f32.gmra.mxu0 %v341
  %v506 = vpop.f32.mrf.mxu0
  %v507 = vadd.f32 0.0, %v506
  %508 = vmatmul.f32.gmra.mxu0 %v344
  %v509 = vpop.f32.mrf.mxu0
  %v510 = vadd.f32 0.0, %v509
  %511 = vdwg.mxu0
  %512 = vmatpush.msra.mxu0 0.0
  %513 = vmatpush.msra.mxu0 0.0
  %514 = vmatpush.msra.mxu0 0.0
  %515 = vmatpush.msra.mxu0 0.0
  %516 = vmatpush.msra.mxu0 0.0
  %517 = vmatpush.msra.mxu0 0.0
  %518 = vmatpush.msra.mxu0 %v357
  %519 = vmatpush.msra.mxu0 %v278
  %520 = vmatpush.msra.mxu0 %v246
  %521 = vmatpush.msra.mxu0 %v214
  %522 = vmatpush.msra.mxu0 %v182
  %523 = vmatpush.msra.mxu0 %v150
  %524 = vmatpush.msra.mxu0 %v118
  %525 = vmatpush.msra.mxu0 %v86
  %526 = vmatpush.msra.mxu0 %v54
  %527 = vmatpush.msra.mxu0 %v22
  %528 = vmatmul.f32.gmra.mxu0 %v341
  %v529 = vpop.f32.mrf.mxu0
  %v530 = vadd.f32 0.0, %v529
  %531 = vmatmul.f32.gmra.mxu0 %v344
  %v532 = vpop.f32.mrf.mxu0
  %v533 = vadd.f32 0.0, %v532
  %534 = vdwg.mxu0
  %535 = vmatpush.msra.mxu0 0.0
  %536 = vmatpush.msra.mxu0 0.0
  %537 = vmatpush.msra.mxu0 0.0
  %538 = vmatpush.msra.mxu0 0.0
  %539 = vmatpush.msra.mxu0 0.0
  %540 = vmatpush.msra.mxu0 0.0
  %541 = vmatpush.msra.mxu0 %v360
  %542 = vmatpush.msra.mxu0 %v279
  %543 = vmatpush.msra.mxu0 %v247
  %544 = vmatpush.msra.mxu0 %v215
  %545 = vmatpush.msra.mxu0 %v183
  %546 = vmatpush.msra.mxu0 %v151
  %547 = vmatpush.msra.mxu0 %v119
  %548 = vmatpush.msra.mxu0 %v87
  %549 = vmatpush.msra.mxu0 %v55
  %550 = vmatpush.msra.mxu0 %v23
  %551 = vmatmul.f32.gmra.mxu0 %v341
  %v552 = vpop.f32.mrf.mxu0
  %v553 = vadd.f32 0.0, %v552
  %554 = vmatmul.f32.gmra.mxu0 %v344
  %v555 = vpop.f32.mrf.mxu0
  %v556 = vadd.f32 0.0, %v555
  %557 = vdwg.mxu0
  %558 = vmatpush.msra.mxu0 0.0
  %559 = vmatpush.msra.mxu0 0.0
  %560 = vmatpush.msra.mxu0 0.0
  %561 = vmatpush.msra.mxu0 0.0
  %562 = vmatpush.msra.mxu0 0.0
  %563 = vmatpush.msra.mxu0 0.0
  %564 = vmatpush.msra.mxu0 %v363
  %565 = vmatpush.msra.mxu0 %v280
  %566 = vmatpush.msra.mxu0 %v248
  %567 = vmatpush.msra.mxu0 %v216
  %568 = vmatpush.msra.mxu0 %v184
  %569 = vmatpush.msra.mxu0 %v152
  %570 = vmatpush.msra.mxu0 %v120
  %571 = vmatpush.msra.mxu0 %v88
  %572 = vmatpush.msra.mxu0 %v56
  %573 = vmatpush.msra.mxu0 %v24
  %574 = vmatmul.f32.gmra.mxu0 %v341
  %v575 = vpop.f32.mrf.mxu0
  %v576 = vadd.f32 0.0, %v575
  %577 = vmatmul.f32.gmra.mxu0 %v344
  %v578 = vpop.f32.mrf.mxu0
  %v579 = vadd.f32 0.0, %v578
  %580 = vdwg.mxu0
  %581 = vmatpush.msra.mxu0 0.0
  %582 = vmatpush.msra.mxu0 0.0
  %583 = vmatpush.msra.mxu0 0.0
  %584 = vmatpush.msra.mxu0 0.0
  %585 = vmatpush.msra.mxu0 0.0
  %586 = vmatpush.msra.mxu0 0.0
  %587 = vmatpush.msra.mxu0 %v366
  %588 = vmatpush.msra.mxu0 %v281
  %589 = vmatpush.msra.mxu0 %v249
  %590 = vmatpush.msra.mxu0 %v217
  %591 = vmatpush.msra.mxu0 %v185
  %592 = vmatpush.msra.mxu0 %v153
  %593 = vmatpush.msra.mxu0 %v121
  %594 = vmatpush.msra.mxu0 %v89
  %595 = vmatpush.msra.mxu0 %v57
  %596 = vmatpush.msra.mxu0 %v25
  %597 = vmatmul.f32.gmra.mxu0 %v341
  %v598 = vpop.f32.mrf.mxu0
  %v599 = vadd.f32 0.0, %v598
  %600 = vmatmul.f32.gmra.mxu0 %v344
  %v601 = vpop.f32.mrf.mxu0
  %v602 = vadd.f32 0.0, %v601
  %603 = vdwg.mxu0
  %604 = vmatpush.msra.mxu0 0.0
  %605 = vmatpush.msra.mxu0 0.0
  %606 = vmatpush.msra.mxu0 0.0
  %607 = vmatpush.msra.mxu0 0.0
  %608 = vmatpush.msra.mxu0 0.0
  %609 = vmatpush.msra.mxu0 0.0
  %610 = vmatpush.msra.mxu0 %v369
  %611 = vmatpush.msra.mxu0 %v282
  %612 = vmatpush.msra.mxu0 %v250
  %613 = vmatpush.msra.mxu0 %v218
  %614 = vmatpush.msra.mxu0 %v186
  %615 = vmatpush.msra.mxu0 %v154
  %616 = vmatpush.msra.mxu0 %v122
  %617 = vmatpush.msra.mxu0 %v90
  %618 = vmatpush.msra.mxu0 %v58
  %619 = vmatpush.msra.mxu0 %v26
  %620 = vmatmul.f32.gmra.mxu0 %v341
  %v621 = vpop.f32.mrf.mxu0
  %v622 = vadd.f32 0.0, %v621
  %623 = vmatmul.f32.gmra.mxu0 %v344
  %v624 = vpop.f32.mrf.mxu0
  %v625 = vadd.f32 0.0, %v624
  %626 = vdwg.mxu0
  %627 = vmatpush.msra.mxu0 0.0
  %628 = vmatpush.msra.mxu0 0.0
  %629 = vmatpush.msra.mxu0 0.0
  %630 = vmatpush.msra.mxu0 0.0
  %631 = vmatpush.msra.mxu0 0.0
  %632 = vmatpush.msra.mxu0 0.0
  %633 = vmatpush.msra.mxu0 %v372
  %634 = vmatpush.msra.mxu0 %v283
  %635 = vmatpush.msra.mxu0 %v251
  %636 = vmatpush.msra.mxu0 %v219
  %637 = vmatpush.msra.mxu0 %v187
  %638 = vmatpush.msra.mxu0 %v155
  %639 = vmatpush.msra.mxu0 %v123
  %640 = vmatpush.msra.mxu0 %v91
  %641 = vmatpush.msra.mxu0 %v59
  %642 = vmatpush.msra.mxu0 %v27
  %643 = vmatmul.f32.gmra.mxu0 %v341
  %v644 = vpop.f32.mrf.mxu0
  %v645 = vadd.f32 0.0, %v644
  %646 = vmatmul.f32.gmra.mxu0 %v344
  %v647 = vpop.f32.mrf.mxu0
  %v648 = vadd.f32 0.0, %v647
  %649 = vdwg.mxu0
  %650 = vmatpush.msra.mxu0 0.0
  %651 = vmatpush.msra.mxu0 0.0
  %652 = vmatpush.msra.mxu0 0.0
  %653 = vmatpush.msra.mxu0 0.0
  %654 = vmatpush.msra.mxu0 0.0
  %655 = vmatpush.msra.mxu0 0.0
  %656 = vmatpush.msra.mxu0 %v375
  %657 = vmatpush.msra.mxu0 %v284
  %658 = vmatpush.msra.mxu0 %v252
  %659 = vmatpush.msra.mxu0 %v220
  %660 = vmatpush.msra.mxu0 %v188
  %661 = vmatpush.msra.mxu0 %v156
  %662 = vmatpush.msra.mxu0 %v124
  %663 = vmatpush.msra.mxu0 %v92
  %664 = vmatpush.msra.mxu0 %v60
  %665 = vmatpush.msra.mxu0 %v28
  %666 = vmatmul.f32.gmra.mxu0 %v341
  %v667 = vpop.f32.mrf.mxu0
  %v668 = vadd.f32 0.0, %v667
  %669 = vmatmul.f32.gmra.mxu0 %v344
  %v670 = vpop.f32.mrf.mxu0
  %v671 = vadd.f32 0.0, %v670
  %672 = vdwg.mxu0
  %673 = vmatpush.msra.mxu0 0.0
  %674 = vmatpush.msra.mxu0 0.0
  %675 = vmatpush.msra.mxu0 0.0
  %676 = vmatpush.msra.mxu0 0.0
  %677 = vmatpush.msra.mxu0 0.0
  %678 = vmatpush.msra.mxu0 0.0
  %679 = vmatpush.msra.mxu0 %v378
  %680 = vmatpush.msra.mxu0 %v285
  %681 = vmatpush.msra.mxu0 %v253
  %682 = vmatpush.msra.mxu0 %v221
  %683 = vmatpush.msra.mxu0 %v189
  %684 = vmatpush.msra.mxu0 %v157
  %685 = vmatpush.msra.mxu0 %v125
  %686 = vmatpush.msra.mxu0 %v93
  %687 = vmatpush.msra.mxu0 %v61
  %688 = vmatpush.msra.mxu0 %v29
  %689 = vmatmul.f32.gmra.mxu0 %v341
  %v690 = vpop.f32.mrf.mxu0
  %v691 = vadd.f32 0.0, %v690
  %692 = vmatmul.f32.gmra.mxu0 %v344
  %v693 = vpop.f32.mrf.mxu0
  %v694 = vadd.f32 0.0, %v693
  %695 = vdwg.mxu0
  %696 = vmatpush.msra.mxu0 0.0
  %697 = vmatpush.msra.mxu0 0.0
  %698 = vmatpush.msra.mxu0 0.0
  %699 = vmatpush.msra.mxu0 0.0
  %700 = vmatpush.msra.mxu0 0.0
  %701 = vmatpush.msra.mxu0 0.0
  %702 = vmatpush.msra.mxu0 %v381
  %703 = vmatpush.msra.mxu0 %v286
  %704 = vmatpush.msra.mxu0 %v254
  %705 = vmatpush.msra.mxu0 %v222
  %706 = vmatpush.msra.mxu0 %v190
  %707 = vmatpush.msra.mxu0 %v158
  %708 = vmatpush.msra.mxu0 %v126
  %709 = vmatpush.msra.mxu0 %v94
  %710 = vmatpush.msra.mxu0 %v62
  %711 = vmatpush.msra.mxu0 %v30
  %712 = vmatmul.f32.gmra.mxu0 %v341
  %v713 = vpop.f32.mrf.mxu0
  %v714 = vadd.f32 0.0, %v713
  %715 = vmatmul.f32.gmra.mxu0 %v344
  %v716 = vpop.f32.mrf.mxu0
  %v717 = vadd.f32 0.0, %v716
  %718 = vdwg.mxu0
  %719 = vmatpush.msra.mxu0 0.0
  %720 = vmatpush.msra.mxu0 0.0
  %721 = vmatpush.msra.mxu0 0.0
  %722 = vmatpush.msra.mxu0 0.0
  %723 = vmatpush.msra.mxu0 0.0
  %724 = vmatpush.msra.mxu0 0.0
  %725 = vmatpush.msra.mxu0 %v384
  %726 = vmatpush.msra.mxu0 %v287
  %727 = vmatpush.msra.mxu0 %v255
  %728 = vmatpush.msra.mxu0 %v223
  %729 = vmatpush.msra.mxu0 %v191
  %730 = vmatpush.msra.mxu0 %v159
  %731 = vmatpush.msra.mxu0 %v127
  %732 = vmatpush.msra.mxu0 %v95
  %733 = vmatpush.msra.mxu0 %v63
  %734 = vmatpush.msra.mxu0 %v31
  %735 = vmatmul.f32.gmra.mxu0 %v341
  %v736 = vpop.f32.mrf.mxu0
  %v737 = vadd.f32 0.0, %v736
  %738 = vmatmul.f32.gmra.mxu0 %v344
  %v739 = vpop.f32.mrf.mxu0
  %v740 = vadd.f32 0.0, %v739
  %741 = vdwg.mxu0
  %742 = vmatpush.msra.mxu0 0.0
  %743 = vmatpush.msra.mxu0 0.0
  %744 = vmatpush.msra.mxu0 0.0
  %745 = vmatpush.msra.mxu0 0.0
  %746 = vmatpush.msra.mxu0 0.0
  %747 = vmatpush.msra.mxu0 0.0
  %748 = vmatpush.msra.mxu0 %v387
  %749 = vmatpush.msra.mxu0 %v288
  %750 = vmatpush.msra.mxu0 %v256
  %751 = vmatpush.msra.mxu0 %v224
  %752 = vmatpush.msra.mxu0 %v192
  %753 = vmatpush.msra.mxu0 %v160
  %754 = vmatpush.msra.mxu0 %v128
  %755 = vmatpush.msra.mxu0 %v96
  %756 = vmatpush.msra.mxu0 %v64
  %757 = vmatpush.msra.mxu0 %v32
  %758 = vmatmul.f32.gmra.mxu0 %v341
  %v759 = vpop.f32.mrf.mxu0
  %v760 = vadd.f32 0.0, %v759
  %761 = vmatmul.f32.gmra.mxu0 %v344
  %v762 = vpop.f32.mrf.mxu0
  %v763 = vadd.f32 0.0, %v762
  %764 = vdwg.mxu0
  %765 = vmatpush.msra.mxu0 0.0
  %766 = vmatpush.msra.mxu0 0.0
  %767 = vmatpush.msra.mxu0 0.0
  %768 = vmatpush.msra.mxu0 0.0
  %769 = vmatpush.msra.mxu0 0.0
  %770 = vmatpush.msra.mxu0 0.0
  %771 = vmatpush.msra.mxu0 %v390
  %772 = vmatpush.msra.mxu0 %v289
  %773 = vmatpush.msra.mxu0 %v257
  %774 = vmatpush.msra.mxu0 %v225
  %775 = vmatpush.msra.mxu0 %v193
  %776 = vmatpush.msra.mxu0 %v161
  %777 = vmatpush.msra.mxu0 %v129
  %778 = vmatpush.msra.mxu0 %v97
  %779 = vmatpush.msra.mxu0 %v65
  %780 = vmatpush.msra.mxu0 %v33
  %781 = vmatmul.f32.gmra.mxu0 %v341
  %v782 = vpop.f32.mrf.mxu0
  %v783 = vadd.f32 0.0, %v782
  %784 = vmatmul.f32.gmra.mxu0 %v344
  %v785 = vpop.f32.mrf.mxu0
  %v786 = vadd.f32 0.0, %v785
  %787 = vdwg.mxu0
  %788 = vmatpush.msra.mxu0 0.0
  %789 = vmatpush.msra.mxu0 0.0
  %790 = vmatpush.msra.mxu0 0.0
  %791 = vmatpush.msra.mxu0 0.0
  %792 = vmatpush.msra.mxu0 0.0
  %793 = vmatpush.msra.mxu0 0.0
  %794 = vmatpush.msra.mxu0 %v393
  %795 = vmatpush.msra.mxu0 %v290
  %796 = vmatpush.msra.mxu0 %v258
  %797 = vmatpush.msra.mxu0 %v226
  %798 = vmatpush.msra.mxu0 %v194
  %799 = vmatpush.msra.mxu0 %v162
  %800 = vmatpush.msra.mxu0 %v130
  %801 = vmatpush.msra.mxu0 %v98
  %802 = vmatpush.msra.mxu0 %v66
  %803 = vmatpush.msra.mxu0 %v34
  %804 = vmatmul.f32.gmra.mxu0 %v341
  %v805 = vpop.f32.mrf.mxu0
  %v806 = vadd.f32 0.0, %v805
  %807 = vmatmul.f32.gmra.mxu0 %v344
  %v808 = vpop.f32.mrf.mxu0
  %v809 = vadd.f32 0.0, %v808
  %810 = vdwg.mxu0
  %811 = vmatpush.msra.mxu0 0.0
  %812 = vmatpush.msra.mxu0 0.0
  %813 = vmatpush.msra.mxu0 0.0
  %814 = vmatpush.msra.mxu0 0.0
  %815 = vmatpush.msra.mxu0 0.0
  %816 = vmatpush.msra.mxu0 0.0
  %817 = vmatpush.msra.mxu0 %v396
  %818 = vmatpush.msra.mxu0 %v291
  %819 = vmatpush.msra.mxu0 %v259
  %820 = vmatpush.msra.mxu0 %v227
  %821 = vmatpush.msra.mxu0 %v195
  %822 = vmatpush.msra.mxu0 %v163
  %823 = vmatpush.msra.mxu0 %v131
  %824 = vmatpush.msra.mxu0 %v99
  %825 = vmatpush.msra.mxu0 %v67
  %826 = vmatpush.msra.mxu0 %v35
  %827 = vmatmul.f32.gmra.mxu0 %v341
  %v828 = vpop.f32.mrf.mxu0
  %v829 = vadd.f32 0.0, %v828
  %830 = vmatmul.f32.gmra.mxu0 %v344
  %v831 = vpop.f32.mrf.mxu0
  %v832 = vadd.f32 0.0, %v831
  %833 = vdwg.mxu0
  %834 = vmatpush.msra.mxu0 0.0
  %835 = vmatpush.msra.mxu0 0.0
  %836 = vmatpush.msra.mxu0 0.0
  %837 = vmatpush.msra.mxu0 0.0
  %838 = vmatpush.msra.mxu0 0.0
  %839 = vmatpush.msra.mxu0 0.0
  %840 = vmatpush.msra.mxu0 %v399
  %841 = vmatpush.msra.mxu0 %v292
  %842 = vmatpush.msra.mxu0 %v260
  %843 = vmatpush.msra.mxu0 %v228
  %844 = vmatpush.msra.mxu0 %v196
  %845 = vmatpush.msra.mxu0 %v164
  %846 = vmatpush.msra.mxu0 %v132
  %847 = vmatpush.msra.mxu0 %v100
  %848 = vmatpush.msra.mxu0 %v68
  %849 = vmatpush.msra.mxu0 %v36
  %850 = vmatmul.f32.gmra.mxu0 %v341
  %v851 = vpop.f32.mrf.mxu0
  %v852 = vadd.f32 0.0, %v851
  %853 = vmatmul.f32.gmra.mxu0 %v344
  %v854 = vpop.f32.mrf.mxu0
  %v855 = vadd.f32 0.0, %v854
  %856 = vdwg.mxu0
  %857 = vmatpush.msra.mxu0 0.0
  %858 = vmatpush.msra.mxu0 0.0
  %859 = vmatpush.msra.mxu0 0.0
  %860 = vmatpush.msra.mxu0 0.0
  %861 = vmatpush.msra.mxu0 0.0
  %862 = vmatpush.msra.mxu0 0.0
  %863 = vmatpush.msra.mxu0 %v402
  %864 = vmatpush.msra.mxu0 %v293
  %865 = vmatpush.msra.mxu0 %v261
  %866 = vmatpush.msra.mxu0 %v229
  %867 = vmatpush.msra.mxu0 %v197
  %868 = vmatpush.msra.mxu0 %v165
  %869 = vmatpush.msra.mxu0 %v133
  %870 = vmatpush.msra.mxu0 %v101
  %871 = vmatpush.msra.mxu0 %v69
  %872 = vmatpush.msra.mxu0 %v37
  %873 = vmatmul.f32.gmra.mxu0 %v341
  %v874 = vpop.f32.mrf.mxu0
  %v875 = vadd.f32 0.0, %v874
  %876 = vmatmul.f32.gmra.mxu0 %v344
  %v877 = vpop.f32.mrf.mxu0
  %v878 = vadd.f32 0.0, %v877
  %879 = vdwg.mxu0
  %880 = vmatpush.msra.mxu0 0.0
  %881 = vmatpush.msra.mxu0 0.0
  %882 = vmatpush.msra.mxu0 0.0
  %883 = vmatpush.msra.mxu0 0.0
  %884 = vmatpush.msra.mxu0 0.0
  %885 = vmatpush.msra.mxu0 0.0
  %886 = vmatpush.msra.mxu0 %v405
  %887 = vmatpush.msra.mxu0 %v294
  %888 = vmatpush.msra.mxu0 %v262
  %889 = vmatpush.msra.mxu0 %v230
  %890 = vmatpush.msra.mxu0 %v198
  %891 = vmatpush.msra.mxu0 %v166
  %892 = vmatpush.msra.mxu0 %v134
  %893 = vmatpush.msra.mxu0 %v102
  %894 = vmatpush.msra.mxu0 %v70
  %895 = vmatpush.msra.mxu0 %v38
  %896 = vmatmul.f32.gmra.mxu0 %v341
  %v897 = vpop.f32.mrf.mxu0
  %v898 = vadd.f32 0.0, %v897
  %899 = vmatmul.f32.gmra.mxu0 %v344
  %v900 = vpop.f32.mrf.mxu0
  %v901 = vadd.f32 0.0, %v900
  %902 = vdwg.mxu0
  %903 = vmatpush.msra.mxu0 0.0
  %904 = vmatpush.msra.mxu0 0.0
  %905 = vmatpush.msra.mxu0 0.0
  %906 = vmatpush.msra.mxu0 0.0
  %907 = vmatpush.msra.mxu0 0.0
  %908 = vmatpush.msra.mxu0 0.0
  %909 = vmatpush.msra.mxu0 %v408
  %910 = vmatpush.msra.mxu0 %v295
  %911 = vmatpush.msra.mxu0 %v263
  %912 = vmatpush.msra.mxu0 %v231
  %913 = vmatpush.msra.mxu0 %v199
  %914 = vmatpush.msra.mxu0 %v167
  %915 = vmatpush.msra.mxu0 %v135
  %916 = vmatpush.msra.mxu0 %v103
  %917 = vmatpush.msra.mxu0 %v71
  %918 = vmatpush.msra.mxu0 %v39
  %919 = vmatmul.f32.gmra.mxu0 %v341
  %v920 = vpop.f32.mrf.mxu0
  %v921 = vadd.f32 0.0, %v920
  %922 = vmatmul.f32.gmra.mxu0 %v344
  %v923 = vpop.f32.mrf.mxu0
  %v924 = vadd.f32 0.0, %v923
  %925 = vdwg.mxu0
  %926 = vmatpush.msra.mxu0 0.0
  %927 = vmatpush.msra.mxu0 0.0
  %928 = vmatpush.msra.mxu0 0.0
  %929 = vmatpush.msra.mxu0 0.0
  %930 = vmatpush.msra.mxu0 0.0
  %931 = vmatpush.msra.mxu0 0.0
  %932 = vmatpush.msra.mxu0 %v411
  %933 = vmatpush.msra.mxu0 %v296
  %934 = vmatpush.msra.mxu0 %v264
  %935 = vmatpush.msra.mxu0 %v232
  %936 = vmatpush.msra.mxu0 %v200
  %937 = vmatpush.msra.mxu0 %v168
  %938 = vmatpush.msra.mxu0 %v136
  %939 = vmatpush.msra.mxu0 %v104
  %940 = vmatpush.msra.mxu0 %v72
  %941 = vmatpush.msra.mxu0 %v40
  %942 = vmatmul.f32.gmra.mxu0 %v341
  %v943 = vpop.f32.mrf.mxu0
  %v944 = vadd.f32 0.0, %v943
  %945 = vmatmul.f32.gmra.mxu0 %v344
  %v946 = vpop.f32.mrf.mxu0
  %v947 = vadd.f32 0.0, %v946
  %948 = vdwg.mxu0
  %949 = vmatpush.msra.mxu0 0.0
  %950 = vmatpush.msra.mxu0 0.0
  %951 = vmatpush.msra.mxu0 0.0
  %952 = vmatpush.msra.mxu0 0.0
  %953 = vmatpush.msra.mxu0 0.0
  %954 = vmatpush.msra.mxu0 0.0
  %955 = vmatpush.msra.mxu0 %v414
  %956 = vmatpush.msra.mxu0 %v297
  %957 = vmatpush.msra.mxu0 %v265
  %958 = vmatpush.msra.mxu0 %v233
  %959 = vmatpush.msra.mxu0 %v201
  %960 = vmatpush.msra.mxu0 %v169
  %961 = vmatpush.msra.mxu0 %v137
  %962 = vmatpush.msra.mxu0 %v105
  %963 = vmatpush.msra.mxu0 %v73
  %964 = vmatpush.msra.mxu0 %v41
  %965 = vmatmul.f32.gmra.mxu0 %v341
  %v966 = vpop.f32.mrf.mxu0
  %v967 = vadd.f32 0.0, %v966
  %968 = vmatmul.f32.gmra.mxu0 %v344
  %v969 = vpop.f32.mrf.mxu0
  %v970 = vadd.f32 0.0, %v969
  %971 = vdwg.mxu0
  %972 = vmatpush.msra.mxu0 0.0
  %973 = vmatpush.msra.mxu0 0.0
  %974 = vmatpush.msra.mxu0 0.0
  %975 = vmatpush.msra.mxu0 0.0
  %976 = vmatpush.msra.mxu0 0.0
  %977 = vmatpush.msra.mxu0 0.0
  %978 = vmatpush.msra.mxu0 %v417
  %979 = vmatpush.msra.mxu0 %v298
  %980 = vmatpush.msra.mxu0 %v266
  %981 = vmatpush.msra.mxu0 %v234
  %982 = vmatpush.msra.mxu0 %v202
  %983 = vmatpush.msra.mxu0 %v170
  %984 = vmatpush.msra.mxu0 %v138
  %985 = vmatpush.msra.mxu0 %v106
  %986 = vmatpush.msra.mxu0 %v74
  %987 = vmatpush.msra.mxu0 %v42
  %988 = vmatmul.f32.gmra.mxu0 %v341
  %v989 = vpop.f32.mrf.mxu0
  %v990 = vadd.f32 0.0, %v989
  %991 = vmatmul.f32.gmra.mxu0 %v344
  %v992 = vpop.f32.mrf.mxu0
  %v993 = vadd.f32 0.0, %v992
  %994 = vdwg.mxu0
  %995 = vmatpush.msra.mxu0 0.0
  %996 = vmatpush.msra.mxu0 0.0
  %997 = vmatpush.msra.mxu0 0.0
  %998 = vmatpush.msra.mxu0 0.0
  %999 = vmatpush.msra.mxu0 0.0
  %1000 = vmatpush.msra.mxu0 0.0
  %1001 = vmatpush.msra.mxu0 %v420
  %1002 = vmatpush.msra.mxu0 %v299
  %1003 = vmatpush.msra.mxu0 %v267
  %1004 = vmatpush.msra.mxu0 %v235
  %1005 = vmatpush.msra.mxu0 %v203
  %1006 = vmatpush.msra.mxu0 %v171
  %1007 = vmatpush.msra.mxu0 %v139
  %1008 = vmatpush.msra.mxu0 %v107
  %1009 = vmatpush.msra.mxu0 %v75
  %1010 = vmatpush.msra.mxu0 %v43
  %1011 = vmatmul.f32.gmra.mxu0 %v341
  %v1012 = vpop.f32.mrf.mxu0
  %v1013 = vadd.f32 0.0, %v1012
  %1014 = vmatmul.f32.gmra.mxu0 %v344
  %v1015 = vpop.f32.mrf.mxu0
  %v1016 = vadd.f32 0.0, %v1015
  %1017 = vdwg.mxu0
  %1018 = vmatpush.msra.mxu0 0.0
  %1019 = vmatpush.msra.mxu0 0.0
  %1020 = vmatpush.msra.mxu0 0.0
  %1021 = vmatpush.msra.mxu0 0.0
  %1022 = vmatpush.msra.mxu0 0.0
  %1023 = vmatpush.msra.mxu0 0.0
  %1024 = vmatpush.msra.mxu0 %v423
  %1025 = vmatpush.msra.mxu0 %v300
  %1026 = vmatpush.msra.mxu0 %v268
  %1027 = vmatpush.msra.mxu0 %v236
  %1028 = vmatpush.msra.mxu0 %v204
  %1029 = vmatpush.msra.mxu0 %v172
  %1030 = vmatpush.msra.mxu0 %v140
  %1031 = vmatpush.msra.mxu0 %v108
  %1032 = vmatpush.msra.mxu0 %v76
  %1033 = vmatpush.msra.mxu0 %v44
  %1034 = vmatmul.f32.gmra.mxu0 %v341
  %v1035 = vpop.f32.mrf.mxu0
  %v1036 = vadd.f32 0.0, %v1035
  %1037 = vmatmul.f32.gmra.mxu0 %v344
  %v1038 = vpop.f32.mrf.mxu0
  %v1039 = vadd.f32 0.0, %v1038
  %1040 = vdwg.mxu0
  %1041 = vmatpush.msra.mxu0 0.0
  %1042 = vmatpush.msra.mxu0 0.0
  %1043 = vmatpush.msra.mxu0 0.0
  %1044 = vmatpush.msra.mxu0 0.0
  %1045 = vmatpush.msra.mxu0 0.0
  %1046 = vmatpush.msra.mxu0 0.0
  %1047 = vmatpush.msra.mxu0 %v426
  %1048 = vmatpush.msra.mxu0 %v301
  %1049 = vmatpush.msra.mxu0 %v269
  %1050 = vmatpush.msra.mxu0 %v237
  %1051 = vmatpush.msra.mxu0 %v205
  %1052 = vmatpush.msra.mxu0 %v173
  %1053 = vmatpush.msra.mxu0 %v141
  %1054 = vmatpush.msra.mxu0 %v109
  %1055 = vmatpush.msra.mxu0 %v77
  %1056 = vmatpush.msra.mxu0 %v45
  %1057 = vmatmul.f32.gmra.mxu0 %v341
  %v1058 = vpop.f32.mrf.mxu0
  %v1059 = vadd.f32 0.0, %v1058
  %1060 = vmatmul.f32.gmra.mxu0 %v344
  %v1061 = vpop.f32.mrf.mxu0
  %v1062 = vadd.f32 0.0, %v1061
  %1063 = vdwg.mxu0
  %1064 = vmatpush.msra.mxu0 0.0
  %1065 = vmatpush.msra.mxu0 0.0
  %1066 = vmatpush.msra.mxu0 0.0
  %1067 = vmatpush.msra.mxu0 0.0
  %1068 = vmatpush.msra.mxu0 0.0
  %1069 = vmatpush.msra.mxu0 0.0
  %1070 = vmatpush.msra.mxu0 %v429
  %1071 = vmatpush.msra.mxu0 %v302
  %1072 = vmatpush.msra.mxu0 %v270
  %1073 = vmatpush.msra.mxu0 %v238
  %1074 = vmatpush.msra.mxu0 %v206
  %1075 = vmatpush.msra.mxu0 %v174
  %1076 = vmatpush.msra.mxu0 %v142
  %1077 = vmatpush.msra.mxu0 %v110
  %1078 = vmatpush.msra.mxu0 %v78
  %1079 = vmatpush.msra.mxu0 %v46
  %1080 = vmatmul.f32.gmra.mxu0 %v341
  %v1081 = vpop.f32.mrf.mxu0
  %v1082 = vadd.f32 0.0, %v1081
  %1083 = vmatmul.f32.gmra.mxu0 %v344
  %v1084 = vpop.f32.mrf.mxu0
  %v1085 = vadd.f32 0.0, %v1084
  %1086 = vdwg.mxu0
  %1087 = vmatpush.msra.mxu0 0.0
  %1088 = vmatpush.msra.mxu0 0.0
  %1089 = vmatpush.msra.mxu0 0.0
  %1090 = vmatpush.msra.mxu0 0.0
  %1091 = vmatpush.msra.mxu0 0.0
  %1092 = vmatpush.msra.mxu0 0.0
  %1093 = vmatpush.msra.mxu0 %v432
  %1094 = vmatpush.msra.mxu0 %v303
  %1095 = vmatpush.msra.mxu0 %v271
  %1096 = vmatpush.msra.mxu0 %v239
  %1097 = vmatpush.msra.mxu0 %v207
  %1098 = vmatpush.msra.mxu0 %v175
  %1099 = vmatpush.msra.mxu0 %v143
  %1100 = vmatpush.msra.mxu0 %v111
  %1101 = vmatpush.msra.mxu0 %v79
  %1102 = vmatpush.msra.mxu0 %v47
  %1103 = vmatmul.f32.gmra.mxu0 %v341
  %v1104 = vpop.f32.mrf.mxu0
  %v1105 = vadd.f32 0.0, %v1104
  %1106 = vmatmul.f32.gmra.mxu0 %v344
  %v1107 = vpop.f32.mrf.mxu0
  %v1108 = vadd.f32 0.0, %v1107
  %1109 = vdwg.mxu0
  %1110 = vmatpush.msra.mxu0 0.0
  %1111 = vmatpush.msra.mxu0 0.0
  %1112 = vmatpush.msra.mxu0 0.0
  %1113 = vmatpush.msra.mxu0 0.0
  %1114 = vmatpush.msra.mxu0 0.0
  %1115 = vmatpush.msra.mxu0 0.0
  %1116 = vmatpush.msra.mxu0 %v435
  %1117 = vmatpush.msra.mxu0 %v304
  %1118 = vmatpush.msra.mxu0 %v272
  %1119 = vmatpush.msra.mxu0 %v240
  %1120 = vmatpush.msra.mxu0 %v208
  %1121 = vmatpush.msra.mxu0 %v176
  %1122 = vmatpush.msra.mxu0 %v144
  %1123 = vmatpush.msra.mxu0 %v112
  %1124 = vmatpush.msra.mxu0 %v80
  %1125 = vmatpush.msra.mxu0 %v48
  %1126 = vmatmul.f32.gmra.mxu0 %v341
  %v1127 = vpop.f32.mrf.mxu0
  %v1128 = vadd.f32 0.0, %v1127
  %1129 = vmatmul.f32.gmra.mxu0 %v344
  %v1130 = vpop.f32.mrf.mxu0
  %v1131 = vadd.f32 0.0, %v1130
  %1132 = vdwg.mxu0
  %1133 = vmatpush.msra.mxu0 0.0
  %1134 = vmatpush.msra.mxu0 0.0
  %1135 = vmatpush.msra.mxu0 0.0
  %1136 = vmatpush.msra.mxu0 0.0
  %1137 = vmatpush.msra.mxu0 0.0
  %1138 = vmatpush.msra.mxu0 0.0
  %1139 = vmatpush.msra.mxu0 %v438
  %1140 = vmatpush.msra.mxu0 %v305
  %1141 = vmatpush.msra.mxu0 %v273
  %1142 = vmatpush.msra.mxu0 %v241
  %1143 = vmatpush.msra.mxu0 %v209
  %1144 = vmatpush.msra.mxu0 %v177
  %1145 = vmatpush.msra.mxu0 %v145
  %1146 = vmatpush.msra.mxu0 %v113
  %1147 = vmatpush.msra.mxu0 %v81
  %1148 = vmatpush.msra.mxu0 %v49
  %1149 = vmatmul.f32.gmra.mxu0 %v341
  %v1150 = vpop.f32.mrf.mxu0
  %v1151 = vadd.f32 0.0, %v1150
  %1152 = vmatmul.f32.gmra.mxu0 %v344
  %v1153 = vpop.f32.mrf.mxu0
  %v1154 = vadd.f32 0.0, %v1153
  %1155 = vdwg.mxu0
  %1156 = vmatpush.msra.mxu0 0.0
  %1157 = vmatpush.msra.mxu0 0.0
  %1158 = vmatpush.msra.mxu0 0.0
  %1159 = vmatpush.msra.mxu0 0.0
  %1160 = vmatpush.msra.mxu0 0.0
  %1161 = vmatpush.msra.mxu0 0.0
  %1162 = vmatpush.msra.mxu0 %v441
  %1163 = vmatpush.msra.mxu0 %v306
  %1164 = vmatpush.msra.mxu0 %v274
  %1165 = vmatpush.msra.mxu0 %v242
  %1166 = vmatpush.msra.mxu0 %v210
  %1167 = vmatpush.msra.mxu0 %v178
  %1168 = vmatpush.msra.mxu0 %v146
  %1169 = vmatpush.msra.mxu0 %v114
  %1170 = vmatpush.msra.mxu0 %v82
  %1171 = vmatpush.msra.mxu0 %v50
  %1172 = vmatmul.f32.gmra.mxu0 %v341
  %v1173 = vpop.f32.mrf.mxu0
  %v1174 = vadd.f32 0.0, %v1173
  %1175 = vmatmul.f32.gmra.mxu0 %v344
  %v1176 = vpop.f32.mrf.mxu0
  %v1177 = vadd.f32 0.0, %v1176
  %1178 = vdwg.mxu0
  %v1179 = vadd.f32 %v461, %v484
  %v1180 = vadd.f32 %v1179, %v507
  %v1181 = vadd.f32 %v1180, %v530
  %v1182 = vadd.f32 %v1181, %v553
  %v1183 = vadd.f32 %v1182, %v576
  %v1184 = vadd.f32 %v1183, %v599
  %v1185 = vadd.f32 %v1184, %v622
  %v1186 = vadd.f32 %v1185, %v645
  %v1187 = vadd.f32 %v1186, %v668
  %v1188 = vadd.f32 %v1187, %v691
  %v1189 = vadd.f32 %v1188, %v714
  %v1190 = vadd.f32 %v1189, %v737
  %v1191 = vadd.f32 %v1190, %v760
  %v1192 = vadd.f32 %v1191, %v783
  %v1193 = vadd.f32 %v1192, %v806
  %v1194 = vadd.f32 %v1193, %v829
  %v1195 = vadd.f32 %v1194, %v852
  %v1196 = vadd.f32 %v1195, %v875
  %v1197 = vadd.f32 %v1196, %v898
  %v1198 = vadd.f32 %v1197, %v921
  %v1199 = vadd.f32 %v1198, %v944
  %v1200 = vadd.f32 %v1199, %v967
  %v1201 = vadd.f32 %v1200, %v990
  %v1202 = vadd.f32 %v1201, %v1013
  %v1203 = vadd.f32 %v1202, %v1036
  %v1204 = vadd.f32 %v1203, %v1059
  %v1205 = vadd.f32 %v1204, %v1082
  %v1206 = vadd.f32 %v1205, %v1105
  %v1207 = vadd.f32 %v1206, %v1128
  %v1208 = vadd.f32 %v1207, %v1151
  %vm1209 = vcmask 670720
  %v1210 = vsel %vm1209, %v1174, 0.0
  %v1211 = vadd.f32 %v1208, %v1210
  %1212 = vadd.xlane.f32.xlu0 %v1211
  %v1213 = vpop.xlane.xlu0 %1212
  %v1214 = vadd.f32 %v464, %v487
  %v1215 = vadd.f32 %v1214, %v510
  %v1216 = vadd.f32 %v1215, %v533
  %v1217 = vadd.f32 %v1216, %v556
  %v1218 = vadd.f32 %v1217, %v579
  %v1219 = vadd.f32 %v1218, %v602
  %v1220 = vadd.f32 %v1219, %v625
  %v1221 = vadd.f32 %v1220, %v648
  %v1222 = vadd.f32 %v1221, %v671
  %v1223 = vadd.f32 %v1222, %v694
  %v1224 = vadd.f32 %v1223, %v717
  %v1225 = vadd.f32 %v1224, %v740
  %v1226 = vadd.f32 %v1225, %v763
  %v1227 = vadd.f32 %v1226, %v786
  %v1228 = vadd.f32 %v1227, %v809
  %v1229 = vadd.f32 %v1228, %v832
  %v1230 = vadd.f32 %v1229, %v855
  %v1231 = vadd.f32 %v1230, %v878
  %v1232 = vadd.f32 %v1231, %v901
  %v1233 = vadd.f32 %v1232, %v924
  %v1234 = vadd.f32 %v1233, %v947
  %v1235 = vadd.f32 %v1234, %v970
  %v1236 = vadd.f32 %v1235, %v993
  %v1237 = vadd.f32 %v1236, %v1016
  %v1238 = vadd.f32 %v1237, %v1039
  %v1239 = vadd.f32 %v1238, %v1062
  %v1240 = vadd.f32 %v1239, %v1085
  %v1241 = vadd.f32 %v1240, %v1108
  %v1242 = vadd.f32 %v1241, %v1131
  %v1243 = vadd.f32 %v1242, %v1154
  %v1244 = vsel %vm1209, %v1177, 0.0
  %v1245 = vadd.f32 %v1243, %v1244
  %1246 = vadd.xlane.f32.xlu0 %v1245
  %v1247 = vpop.xlane.xlu0 %1246
  %v1248 = vrcp.pop 4050.0
  %v1249 = vmul.f32 4050.0, %v1248
  %v1250 = vsub.f32 1.0, %v1249
  %v1251 = vmul.f32 %v1248, %v1250
  %v1252 = vadd.f32 %v1248, %v1251
  %vm1253 = vweird.f32 %v1248
  %v1254 = vsel %vm1253, %v1248, %v1252
  %v1255 = vmul.f32 %v1213, %v1254
  %v1256 = vmul.f32 %v1247, %v1254
  %v1257 = vsub.f32 %v461, %v1255
  %v1258 = vsub.f32 %v484, %v1255
  %v1259 = vsub.f32 %v507, %v1255
  %v1260 = vsub.f32 %v530, %v1255
  %v1261 = vsub.f32 %v553, %v1255
  %v1262 = vsub.f32 %v576, %v1255
  %v1263 = vsub.f32 %v599, %v1255
  %v1264 = vsub.f32 %v622, %v1255
  %v1265 = vsub.f32 %v645, %v1255
  %v1266 = vsub.f32 %v668, %v1255
  %v1267 = vsub.f32 %v691, %v1255
  %v1268 = vsub.f32 %v714, %v1255
  %v1269 = vsub.f32 %v737, %v1255
  %v1270 = vsub.f32 %v760, %v1255
  %v1271 = vsub.f32 %v783, %v1255
  %v1272 = vsub.f32 %v806, %v1255
  %v1273 = vsub.f32 %v829, %v1255
  %v1274 = vsub.f32 %v852, %v1255
  %v1275 = vsub.f32 %v875, %v1255
  %v1276 = vsub.f32 %v898, %v1255
  %v1277 = vsub.f32 %v921, %v1255
  %v1278 = vsub.f32 %v944, %v1255
  %v1279 = vsub.f32 %v967, %v1255
  %v1280 = vsub.f32 %v990, %v1255
  %v1281 = vsub.f32 %v1013, %v1255
  %v1282 = vsub.f32 %v1036, %v1255
  %v1283 = vsub.f32 %v1059, %v1255
  %v1284 = vsub.f32 %v1082, %v1255
  %v1285 = vsub.f32 %v1105, %v1255
  %v1286 = vsub.f32 %v1128, %v1255
  %v1287 = vsub.f32 %v1151, %v1255
  %v1288 = vsub.f32 %v1174, %v1255
  %v1289 = vsub.f32 %v464, %v1256
  %v1290 = vsub.f32 %v487, %v1256
  %v1291 = vsub.f32 %v510, %v1256
  %v1292 = vsub.f32 %v533, %v1256
  %v1293 = vsub.f32 %v556, %v1256
  %v1294 = vsub.f32 %v579, %v1256
  %v1295 = vsub.f32 %v602, %v1256
  %v1296 = vsub.f32 %v625, %v1256
  %v1297 = vsub.f32 %v648, %v1256
  %v1298 = vsub.f32 %v671, %v1256
  %v1299 = vsub.f32 %v694, %v1256
  %v1300 = vsub.f32 %v717, %v1256
  %v1301 = vsub.f32 %v740, %v1256
  %v1302 = vsub.f32 %v763, %v1256
  %v1303 = vsub.f32 %v786, %v1256
  %v1304 = vsub.f32 %v809, %v1256
  %v1305 = vsub.f32 %v832, %v1256
  %v1306 = vsub.f32 %v855, %v1256
  %v1307 = vsub.f32 %v878, %v1256
  %v1308 = vsub.f32 %v901, %v1256
  %v1309 = vsub.f32 %v924, %v1256
  %v1310 = vsub.f32 %v947, %v1256
  %v1311 = vsub.f32 %v970, %v1256
  %v1312 = vsub.f32 %v993, %v1256
  %v1313 = vsub.f32 %v1016, %v1256
  %v1314 = vsub.f32 %v1039, %v1256
  %v1315 = vsub.f32 %v1062, %v1256
  %v1316 = vsub.f32 %v1085, %v1256
  %v1317 = vsub.f32 %v1108, %v1256
  %v1318 = vsub.f32 %v1131, %v1256
  %v1319 = vsub.f32 %v1154, %v1256
  %v1320 = vsub.f32 %v1177, %v1256
  %v1321 = vmul.f32 %v1257, %v1257
  %v1322 = vmul.f32 %v1258, %v1258
  %v1323 = vmul.f32 %v1259, %v1259
  %v1324 = vmul.f32 %v1260, %v1260
  %v1325 = vmul.f32 %v1261, %v1261
  %v1326 = vmul.f32 %v1262, %v1262
  %v1327 = vmul.f32 %v1263, %v1263
  %v1328 = vmul.f32 %v1264, %v1264
  %v1329 = vmul.f32 %v1265, %v1265
  %v1330 = vmul.f32 %v1266, %v1266
  %v1331 = vmul.f32 %v1267, %v1267
  %v1332 = vmul.f32 %v1268, %v1268
  %v1333 = vmul.f32 %v1269, %v1269
  %v1334 = vmul.f32 %v1270, %v1270
  %v1335 = vmul.f32 %v1271, %v1271
  %v1336 = vmul.f32 %v1272, %v1272
  %v1337 = vmul.f32 %v1273, %v1273
  %v1338 = vmul.f32 %v1274, %v1274
  %v1339 = vmul.f32 %v1275, %v1275
  %v1340 = vmul.f32 %v1276, %v1276
  %v1341 = vmul.f32 %v1277, %v1277
  %v1342 = vmul.f32 %v1278, %v1278
  %v1343 = vmul.f32 %v1279, %v1279
  %v1344 = vmul.f32 %v1280, %v1280
  %v1345 = vmul.f32 %v1281, %v1281
  %v1346 = vmul.f32 %v1282, %v1282
  %v1347 = vmul.f32 %v1283, %v1283
  %v1348 = vmul.f32 %v1284, %v1284
  %v1349 = vmul.f32 %v1285, %v1285
  %v1350 = vmul.f32 %v1286, %v1286
  %v1351 = vmul.f32 %v1287, %v1287
  %v1352 = vmul.f32 %v1288, %v1288
  %v1353 = vmul.f32 %v1289, %v1289
  %v1354 = vmul.f32 %v1290, %v1290
  %v1355 = vmul.f32 %v1291, %v1291
  %v1356 = vmul.f32 %v1292, %v1292
  %v1357 = vmul.f32 %v1293, %v1293
  %v1358 = vmul.f32 %v1294, %v1294
  %v1359 = vmul.f32 %v1295, %v1295
  %v1360 = vmul.f32 %v1296, %v1296
  %v1361 = vmul.f32 %v1297, %v1297
  %v1362 = vmul.f32 %v1298, %v1298
  %v1363 = vmul.f32 %v1299, %v1299
  %v1364 = vmul.f32 %v1300, %v1300
  %v1365 = vmul.f32 %v1301, %v1301
  %v1366 = vmul.f32 %v1302, %v1302
  %v1367 = vmul.f32 %v1303, %v1303
  %v1368 = vmul.f32 %v1304, %v1304
  %v1369 = vmul.f32 %v1305, %v1305
  %v1370 = vmul.f32 %v1306, %v1306
  %v1371 = vmul.f32 %v1307, %v1307
  %v1372 = vmul.f32 %v1308, %v1308
  %v1373 = vmul.f32 %v1309, %v1309
  %v1374 = vmul.f32 %v1310, %v1310
  %v1375 = vmul.f32 %v1311, %v1311
  %v1376 = vmul.f32 %v1312, %v1312
  %v1377 = vmul.f32 %v1313, %v1313
  %v1378 = vmul.f32 %v1314, %v1314
  %v1379 = vmul.f32 %v1315, %v1315
  %v1380 = vmul.f32 %v1316, %v1316
  %v1381 = vmul.f32 %v1317, %v1317
  %v1382 = vmul.f32 %v1318, %v1318
  %v1383 = vmul.f32 %v1319, %v1319
  %v1384 = vmul.f32 %v1320, %v1320
  %v1385 = vadd.f32 %v1321, %v1322
  %v1386 = vadd.f32 %v1385, %v1323
  %v1387 = vadd.f32 %v1386, %v1324
  %v1388 = vadd.f32 %v1387, %v1325
  %v1389 = vadd.f32 %v1388, %v1326
  %v1390 = vadd.f32 %v1389, %v1327
  %v1391 = vadd.f32 %v1390, %v1328
  %v1392 = vadd.f32 %v1391, %v1329
  %v1393 = vadd.f32 %v1392, %v1330
  %v1394 = vadd.f32 %v1393, %v1331
  %v1395 = vadd.f32 %v1394, %v1332
  %v1396 = vadd.f32 %v1395, %v1333
  %v1397 = vadd.f32 %v1396, %v1334
  %v1398 = vadd.f32 %v1397, %v1335
  %v1399 = vadd.f32 %v1398, %v1336
  %v1400 = vadd.f32 %v1399, %v1337
  %v1401 = vadd.f32 %v1400, %v1338
  %v1402 = vadd.f32 %v1401, %v1339
  %v1403 = vadd.f32 %v1402, %v1340
  %v1404 = vadd.f32 %v1403, %v1341
  %v1405 = vadd.f32 %v1404, %v1342
  %v1406 = vadd.f32 %v1405, %v1343
  %v1407 = vadd.f32 %v1406, %v1344
  %v1408 = vadd.f32 %v1407, %v1345
  %v1409 = vadd.f32 %v1408, %v1346
  %v1410 = vadd.f32 %v1409, %v1347
  %v1411 = vadd.f32 %v1410, %v1348
  %v1412 = vadd.f32 %v1411, %v1349
  %v1413 = vadd.f32 %v1412, %v1350
  %v1414 = vadd.f32 %v1413, %v1351
  %v1415 = vsel %vm1209, %v1352, 0.0
  %v1416 = vadd.f32 %v1414, %v1415
  %1417 = vadd.xlane.f32.xlu0 %v1416
  %v1418 = vpop.xlane.xlu0 %1417
  %v1419 = vadd.f32 %v1353, %v1354
  %v1420 = vadd.f32 %v1419, %v1355
  %v1421 = vadd.f32 %v1420, %v1356
  %v1422 = vadd.f32 %v1421, %v1357
  %v1423 = vadd.f32 %v1422, %v1358
  %v1424 = vadd.f32 %v1423, %v1359
  %v1425 = vadd.f32 %v1424, %v1360
  %v1426 = vadd.f32 %v1425, %v1361
  %v1427 = vadd.f32 %v1426, %v1362
  %v1428 = vadd.f32 %v1427, %v1363
  %v1429 = vadd.f32 %v1428, %v1364
  %v1430 = vadd.f32 %v1429, %v1365
  %v1431 = vadd.f32 %v1430, %v1366
  %v1432 = vadd.f32 %v1431, %v1367
  %v1433 = vadd.f32 %v1432, %v1368
  %v1434 = vadd.f32 %v1433, %v1369
  %v1435 = vadd.f32 %v1434, %v1370
  %v1436 = vadd.f32 %v1435, %v1371
  %v1437 = vadd.f32 %v1436, %v1372
  %v1438 = vadd.f32 %v1437, %v1373
  %v1439 = vadd.f32 %v1438, %v1374
  %v1440 = vadd.f32 %v1439, %v1375
  %v1441 = vadd.f32 %v1440, %v1376
  %v1442 = vadd.f32 %v1441, %v1377
  %v1443 = vadd.f32 %v1442, %v1378
  %v1444 = vadd.f32 %v1443, %v1379
  %v1445 = vadd.f32 %v1444, %v1380
  %v1446 = vadd.f32 %v1445, %v1381
  %v1447 = vadd.f32 %v1446, %v1382
  %v1448 = vadd.f32 %v1447, %v1383
  %v1449 = vsel %vm1209, %v1384, 0.0
  %v1450 = vadd.f32 %v1448, %v1449
  %1451 = vadd.xlane.f32.xlu0 %v1450
  %v1452 = vpop.xlane.xlu0 %1451
  %v1453 = vmul.f32 %v1418, %v1254
  %v1454 = vmul.f32 %v1452, %v1254
  %v1455 = vld [vmem:[%s2] sm:$0xff]
  %v1456 = vld [vmem:[%s2 + $0x8] sm:$0xff]
  %v1457 = vadd.f32 %v1453, 1e-05
  %v1458 = vadd.f32 %v1454, 1e-05
  %v1459 = vrsqrt.pop %v1457
  %v1460 = vmul.f32 %v1459, %v1457
  %v1461 = vmul.f32 %v1460, %v1459
  %v1462 = vmul.f32 0.5, %v1461
  %v1463 = vsub.f32 1.5, %v1462
  %v1464 = vmul.f32 %v1459, %v1463
  %vm1465 = vweird.f32 %v1457
  %vm1466 = vweird.f32 %v1459
  %vm1467 = vmor %vm1465, %vm1466
  %v1468 = vsel %vm1467, %v1459, %v1464
  %v1469 = vrsqrt.pop %v1458
  %v1470 = vmul.f32 %v1469, %v1458
  %v1471 = vmul.f32 %v1470, %v1469
  %v1472 = vmul.f32 0.5, %v1471
  %v1473 = vsub.f32 1.5, %v1472
  %v1474 = vmul.f32 %v1469, %v1473
  %vm1475 = vweird.f32 %v1458
  %vm1476 = vweird.f32 %v1469
  %vm1477 = vmor %vm1475, %vm1476
  %v1478 = vsel %vm1477, %v1469, %v1474
  %v1479 = vmul.f32 %v1455, %v1468
  %v1480 = vmul.f32 %v1456, %v1478
  %1482 = vset.pattern.permute.xlu0 0
  %1483 = vperm.xlu0 %1482, %v1479
  %v1484 = vpop.permute.xlu0 %1483
  %1487 = vset.pattern.permute.xlu0 0
  %1488 = vperm.xlu0 %1487, %v1480
  %v1489 = vpop.permute.xlu0 %1488
  %v1491 = vmul.f32 %v1257, %v1484
  %v1492 = vmul.f32 %v1258, %v1484
  %v1493 = vmul.f32 %v1259, %v1484
  %v1494 = vmul.f32 %v1260, %v1484
  %v1495 = vmul.f32 %v1261, %v1484
  %v1496 = vmul.f32 %v1262, %v1484
  %v1497 = vmul.f32 %v1263, %v1484
  %v1498 = vmul.f32 %v1264, %v1484
  %v1499 = vmul.f32 %v1265, %v1484
  %v1500 = vmul.f32 %v1266, %v1484
  %v1501 = vmul.f32 %v1267, %v1484
  %v1502 = vmul.f32 %v1268, %v1484
  %v1503 = vmul.f32 %v1269, %v1484
  %v1504 = vmul.f32 %v1270, %v1484
  %v1505 = vmul.f32 %v1271, %v1484
  %v1506 = vmul.f32 %v1272, %v1484
  %v1507 = vmul.f32 %v1273, %v1484
  %v1508 = vmul.f32 %v1274, %v1484
  %v1509 = vmul.f32 %v1275, %v1484
  %v1510 = vmul.f32 %v1276, %v1484
  %v1511 = vmul.f32 %v1277, %v1484
  %v1512 = vmul.f32 %v1278, %v1484
  %v1513 = vmul.f32 %v1279, %v1484
  %v1514 = vmul.f32 %v1280, %v1484
  %v1515 = vmul.f32 %v1281, %v1484
  %v1516 = vmul.f32 %v1282, %v1484
  %v1517 = vmul.f32 %v1283, %v1484
  %v1518 = vmul.f32 %v1284, %v1484
  %v1519 = vmul.f32 %v1285, %v1484
  %v1520 = vmul.f32 %v1286, %v1484
  %v1521 = vmul.f32 %v1287, %v1484
  %v1522 = vmul.f32 %v1288, %v1484
  %v1523 = vmul.f32 %v1289, %v1489
  %v1524 = vmul.f32 %v1290, %v1489
  %v1525 = vmul.f32 %v1291, %v1489
  %v1526 = vmul.f32 %v1292, %v1489
  %v1527 = vmul.f32 %v1293, %v1489
  %v1528 = vmul.f32 %v1294, %v1489
  %v1529 = vmul.f32 %v1295, %v1489
  %v1530 = vmul.f32 %v1296, %v1489
  %v1531 = vmul.f32 %v1297, %v1489
  %v1532 = vmul.f32 %v1298, %v1489
  %v1533 = vmul.f32 %v1299, %v1489
  %v1534 = vmul.f32 %v1300, %v1489
  %v1535 = vmul.f32 %v1301, %v1489
  %v1536 = vmul.f32 %v1302, %v1489
  %v1537 = vmul.f32 %v1303, %v1489
  %v1538 = vmul.f32 %v1304, %v1489
  %v1539 = vmul.f32 %v1305, %v1489
  %v1540 = vmul.f32 %v1306, %v1489
  %v1541 = vmul.f32 %v1307, %v1489
  %v1542 = vmul.f32 %v1308, %v1489
  %v1543 = vmul.f32 %v1309, %v1489
  %v1544 = vmul.f32 %v1310, %v1489
  %v1545 = vmul.f32 %v1311, %v1489
  %v1546 = vmul.f32 %v1312, %v1489
  %v1547 = vmul.f32 %v1313, %v1489
  %v1548 = vmul.f32 %v1314, %v1489
  %v1549 = vmul.f32 %v1315, %v1489
  %v1550 = vmul.f32 %v1316, %v1489
  %v1551 = vmul.f32 %v1317, %v1489
  %v1552 = vmul.f32 %v1318, %v1489
  %v1553 = vmul.f32 %v1319, %v1489
  %v1554 = vmul.f32 %v1320, %v1489
  %v1555 = vld [vmem:[%s3] sm:$0xff]
  %v1556 = vld [vmem:[%s3 + $0x8] sm:$0xff]
  %1558 = vset.pattern.permute.xlu0 0
  %1559 = vperm.xlu0 %1558, %v1555
  %v1560 = vpop.permute.xlu0 %1559
  %1563 = vset.pattern.permute.xlu0 0
  %1564 = vperm.xlu0 %1563, %v1556
  %v1565 = vpop.permute.xlu0 %1564
  %v1567 = vadd.f32 %v1491, %v1560
  %v1568 = vadd.f32 %v1492, %v1560
  %v1569 = vadd.f32 %v1493, %v1560
  %v1570 = vadd.f32 %v1494, %v1560
  %v1571 = vadd.f32 %v1495, %v1560
  %v1572 = vadd.f32 %v1496, %v1560
  %v1573 = vadd.f32 %v1497, %v1560
  %v1574 = vadd.f32 %v1498, %v1560
  %v1575 = vadd.f32 %v1499, %v1560
  %v1576 = vadd.f32 %v1500, %v1560
  %v1577 = vadd.f32 %v1501, %v1560
  %v1578 = vadd.f32 %v1502, %v1560
  %v1579 = vadd.f32 %v1503, %v1560
  %v1580 = vadd.f32 %v1504, %v1560
  %v1581 = vadd.f32 %v1505, %v1560
  %v1582 = vadd.f32 %v1506, %v1560
  %v1583 = vadd.f32 %v1507, %v1560
  %v1584 = vadd.f32 %v1508, %v1560
  %v1585 = vadd.f32 %v1509, %v1560
  %v1586 = vadd.f32 %v1510, %v1560
  %v1587 = vadd.f32 %v1511, %v1560
  %v1588 = vadd.f32 %v1512, %v1560
  %v1589 = vadd.f32 %v1513, %v1560
  %v1590 = vadd.f32 %v1514, %v1560
  %v1591 = vadd.f32 %v1515, %v1560
  %v1592 = vadd.f32 %v1516, %v1560
  %v1593 = vadd.f32 %v1517, %v1560
  %v1594 = vadd.f32 %v1518, %v1560
  %v1595 = vadd.f32 %v1519, %v1560
  %v1596 = vadd.f32 %v1520, %v1560
  %v1597 = vadd.f32 %v1521, %v1560
  %v1598 = vadd.f32 %v1522, %v1560
  %v1599 = vadd.f32 %v1523, %v1565
  %v1600 = vadd.f32 %v1524, %v1565
  %v1601 = vadd.f32 %v1525, %v1565
  %v1602 = vadd.f32 %v1526, %v1565
  %v1603 = vadd.f32 %v1527, %v1565
  %v1604 = vadd.f32 %v1528, %v1565
  %v1605 = vadd.f32 %v1529, %v1565
  %v1606 = vadd.f32 %v1530, %v1565
  %v1607 = vadd.f32 %v1531, %v1565
  %v1608 = vadd.f32 %v1532, %v1565
  %v1609 = vadd.f32 %v1533, %v1565
  %v1610 = vadd.f32 %v1534, %v1565
  %v1611 = vadd.f32 %v1535, %v1565
  %v1612 = vadd.f32 %v1536, %v1565
  %v1613 = vadd.f32 %v1537, %v1565
  %v1614 = vadd.f32 %v1538, %v1565
  %v1615 = vadd.f32 %v1539, %v1565
  %v1616 = vadd.f32 %v1540, %v1565
  %v1617 = vadd.f32 %v1541, %v1565
  %v1618 = vadd.f32 %v1542, %v1565
  %v1619 = vadd.f32 %v1543, %v1565
  %v1620 = vadd.f32 %v1544, %v1565
  %v1621 = vadd.f32 %v1545, %v1565
  %v1622 = vadd.f32 %v1546, %v1565
  %v1623 = vadd.f32 %v1547, %v1565
  %v1624 = vadd.f32 %v1548, %v1565
  %v1625 = vadd.f32 %v1549, %v1565
  %v1626 = vadd.f32 %v1550, %v1565
  %v1627 = vadd.f32 %v1551, %v1565
  %v1628 = vadd.f32 %v1552, %v1565
  %v1629 = vadd.f32 %v1553, %v1565
  %v1630 = vadd.f32 %v1554, %v1565
  %v1631 = vmax.f32 %v1567, 0.0
  %v1632 = vmax.f32 %v1568, 0.0
  %v1633 = vmax.f32 %v1569, 0.0
  %v1634 = vmax.f32 %v1570, 0.0
  %v1635 = vmax.f32 %v1571, 0.0
  %v1636 = vmax.f32 %v1572, 0.0
  %v1637 = vmax.f32 %v1573, 0.0
  %v1638 = vmax.f32 %v1574, 0.0
  %v1639 = vmax.f32 %v1575, 0.0
  %v1640 = vmax.f32 %v1576, 0.0
  %v1641 = vmax.f32 %v1577, 0.0
  %v1642 = vmax.f32 %v1578, 0.0
  %v1643 = vmax.f32 %v1579, 0.0
  %v1644 = vmax.f32 %v1580, 0.0
  %v1645 = vmax.f32 %v1581, 0.0
  %v1646 = vmax.f32 %v1582, 0.0
  %v1647 = vmax.f32 %v1583, 0.0
  %v1648 = vmax.f32 %v1584, 0.0
  %v1649 = vmax.f32 %v1585, 0.0
  %v1650 = vmax.f32 %v1586, 0.0
  %v1651 = vmax.f32 %v1587, 0.0
  %v1652 = vmax.f32 %v1588, 0.0
  %v1653 = vmax.f32 %v1589, 0.0
  %v1654 = vmax.f32 %v1590, 0.0
  %v1655 = vmax.f32 %v1591, 0.0
  %v1656 = vmax.f32 %v1592, 0.0
  %v1657 = vmax.f32 %v1593, 0.0
  %v1658 = vmax.f32 %v1594, 0.0
  %v1659 = vmax.f32 %v1595, 0.0
  %v1660 = vmax.f32 %v1596, 0.0
  %v1661 = vmax.f32 %v1597, 0.0
  %v1662 = vmax.f32 %v1598, 0.0
  %v1663 = vmax.f32 %v1599, 0.0
  %v1664 = vmax.f32 %v1600, 0.0
  %v1665 = vmax.f32 %v1601, 0.0
  %v1666 = vmax.f32 %v1602, 0.0
  %v1667 = vmax.f32 %v1603, 0.0
  %v1668 = vmax.f32 %v1604, 0.0
  %v1669 = vmax.f32 %v1605, 0.0
  %v1670 = vmax.f32 %v1606, 0.0
  %v1671 = vmax.f32 %v1607, 0.0
  %v1672 = vmax.f32 %v1608, 0.0
  %v1673 = vmax.f32 %v1609, 0.0
  %v1674 = vmax.f32 %v1610, 0.0
  %v1675 = vmax.f32 %v1611, 0.0
  %v1676 = vmax.f32 %v1612, 0.0
  %v1677 = vmax.f32 %v1613, 0.0
  %v1678 = vmax.f32 %v1614, 0.0
  %v1679 = vmax.f32 %v1615, 0.0
  %v1680 = vmax.f32 %v1616, 0.0
  %v1681 = vmax.f32 %v1617, 0.0
  %v1682 = vmax.f32 %v1618, 0.0
  %v1683 = vmax.f32 %v1619, 0.0
  %v1684 = vmax.f32 %v1620, 0.0
  %v1685 = vmax.f32 %v1621, 0.0
  %v1686 = vmax.f32 %v1622, 0.0
  %v1687 = vmax.f32 %v1623, 0.0
  %v1688 = vmax.f32 %v1624, 0.0
  %v1689 = vmax.f32 %v1625, 0.0
  %v1690 = vmax.f32 %v1626, 0.0
  %v1691 = vmax.f32 %v1627, 0.0
  %v1692 = vmax.f32 %v1628, 0.0
  %v1693 = vmax.f32 %v1629, 0.0
  %v1694 = vmax.f32 %v1630, 0.0
  %1695 = vst [vmem:[%s4] sm:$0xff] %v1631
  %1696 = vst [vmem:[%s4 + $0x8] sm:$0xff] %v1632
  %1697 = vst [vmem:[%s4 + $0x10] sm:$0xff] %v1633
  %1698 = vst [vmem:[%s4 + $0x18] sm:$0xff] %v1634
  %1699 = vst [vmem:[%s4 + $0x20] sm:$0xff] %v1635
  %1700 = vst [vmem:[%s4 + $0x28] sm:$0xff] %v1636
  %1701 = vst [vmem:[%s4 + $0x30] sm:$0xff] %v1637
  %1702 = vst [vmem:[%s4 + $0x38] sm:$0xff] %v1638
  %1703 = vst [vmem:[%s4 + $0x40] sm:$0xff] %v1639
  %1704 = vst [vmem:[%s4 + $0x48] sm:$0xff] %v1640
  %1705 = vst [vmem:[%s4 + $0x50] sm:$0xff] %v1641
  %1706 = vst [vmem:[%s4 + $0x58] sm:$0xff] %v1642
  %1707 = vst [vmem:[%s4 + $0x60] sm:$0xff] %v1643
  %1708 = vst [vmem:[%s4 + $0x68] sm:$0xff] %v1644
  %1709 = vst [vmem:[%s4 + $0x70] sm:$0xff] %v1645
  %1710 = vst [vmem:[%s4 + $0x78] sm:$0xff] %v1646
  %1711 = vst [vmem:[%s4 + $0x80] sm:$0xff] %v1647
  %1712 = vst [vmem:[%s4 + $0x88] sm:$0xff] %v1648
  %1713 = vst [vmem:[%s4 + $0x90] sm:$0xff] %v1649
  %1714 = vst [vmem:[%s4 + $0x98] sm:$0xff] %v1650
  %1715 = vst [vmem:[%s4 + $0xa0] sm:$0xff] %v1651
  %1716 = vst [vmem:[%s4 + $0xa8] sm:$0xff] %v1652
  %1717 = vst [vmem:[%s4 + $0xb0] sm:$0xff] %v1653
  %1718 = vst [vmem:[%s4 + $0xb8] sm:$0xff] %v1654
  %1719 = vst [vmem:[%s4 + $0xc0] sm:$0xff] %v1655
  %1720 = vst [vmem:[%s4 + $0xc8] sm:$0xff] %v1656
  %1721 = vst [vmem:[%s4 + $0xd0] sm:$0xff] %v1657
  %1722 = vst [vmem:[%s4 + $0xd8] sm:$0xff] %v1658
  %1723 = vst [vmem:[%s4 + $0xe0] sm:$0xff] %v1659
  %1724 = vst [vmem:[%s4 + $0xe8] sm:$0xff] %v1660
  %1725 = vst [vmem:[%s4 + $0xf0] sm:$0xff] %v1661
  %1726 = vst.msk [vmem:[%s4 + $0xf8] sm:$0xff] %vm1209, %v1662
  %1727 = vst [vmem:[%s4 + $0x100] sm:$0xff] %v1663
  %1728 = vst [vmem:[%s4 + $0x108] sm:$0xff] %v1664
  %1729 = vst [vmem:[%s4 + $0x110] sm:$0xff] %v1665
  %1730 = vst [vmem:[%s4 + $0x118] sm:$0xff] %v1666
  %1731 = vst [vmem:[%s4 + $0x120] sm:$0xff] %v1667
  %1732 = vst [vmem:[%s4 + $0x128] sm:$0xff] %v1668
  %1733 = vst [vmem:[%s4 + $0x130] sm:$0xff] %v1669
  %1734 = vst [vmem:[%s4 + $0x138] sm:$0xff] %v1670
  %1735 = vst [vmem:[%s4 + $0x140] sm:$0xff] %v1671
  %1736 = vst [vmem:[%s4 + $0x148] sm:$0xff] %v1672
  %1737 = vst [vmem:[%s4 + $0x150] sm:$0xff] %v1673
  %1738 = vst [vmem:[%s4 + $0x158] sm:$0xff] %v1674
  %1739 = vst [vmem:[%s4 + $0x160] sm:$0xff] %v1675
  %1740 = vst [vmem:[%s4 + $0x168] sm:$0xff] %v1676
  %1741 = vst [vmem:[%s4 + $0x170] sm:$0xff] %v1677
  %1742 = vst [vmem:[%s4 + $0x178] sm:$0xff] %v1678
  %1743 = vst [vmem:[%s4 + $0x180] sm:$0xff] %v1679
  %1744 = vst [vmem:[%s4 + $0x188] sm:$0xff] %v1680
  %1745 = vst [vmem:[%s4 + $0x190] sm:$0xff] %v1681
  %1746 = vst [vmem:[%s4 + $0x198] sm:$0xff] %v1682
  %1747 = vst [vmem:[%s4 + $0x1a0] sm:$0xff] %v1683
  %1748 = vst [vmem:[%s4 + $0x1a8] sm:$0xff] %v1684
  %1749 = vst [vmem:[%s4 + $0x1b0] sm:$0xff] %v1685
  %1750 = vst [vmem:[%s4 + $0x1b8] sm:$0xff] %v1686
  %1751 = vst [vmem:[%s4 + $0x1c0] sm:$0xff] %v1687
  %1752 = vst [vmem:[%s4 + $0x1c8] sm:$0xff] %v1688
  %1753 = vst [vmem:[%s4 + $0x1d0] sm:$0xff] %v1689
  %1754 = vst [vmem:[%s4 + $0x1d8] sm:$0xff] %v1690
  %1755 = vst [vmem:[%s4 + $0x1e0] sm:$0xff] %v1691
  %1756 = vst [vmem:[%s4 + $0x1e8] sm:$0xff] %v1692
  %1757 = vst [vmem:[%s4 + $0x1f0] sm:$0xff] %v1693
  %1758 = vst.msk [vmem:[%s4 + $0x1f8] sm:$0xff] %vm1209, %v1694
  // Predicated region
  $region18: #{dqn_forward.4} parent=0 // pred_check
    _
  $region19: #{dqn_forward.4} parent=0 // pred_check_branch
    %1760 = sbr.rel (0) target = $region21
  $region20: #{dqn_forward.4} parent=0 // pred_region
    _
  $region21: #{dqn_forward.4} parent=0 // pred_fallthru
    _
  // Predicated region
  $region22: #{dqn_forward.4} parent=0 // pred_check
    _
  $region23: #{dqn_forward.4} parent=0 // pred_check_branch
    %1762 = sbr.rel (0) target = $region25
  $region24: #{dqn_forward.4} parent=0 // pred_region
    _
  $region25: #{dqn_forward.4} parent=0 // pred_fallthru
    _

// kernel: dqn_forward.5
$region0: #{dqn_forward.5}
  #allocation0 [shape = 'u32[]', space=smem, size = 0x4, offset = 0x4, fixed_abs, tag = 'smem constant byte address 0x4 - core index']
  #allocation1 [shape = 'u32[72,128]{1,0:T(1,128)}', space=vmem, size = 0x9000, scoped, tag = 'internal scratch']
  %s0 = inlined_call_operand.vmem [shape: f32[400,882], index: 0, kind: input, shape index: {}]
  %s1 = inlined_call_operand.vmem [shape: f32[32,400], index: 1, kind: input, shape index: {}]
  %s2 = inlined_call_operand.vmem [shape: f32[32,1], index: 2, kind: input, shape index: {}]
  %s3 = inlined_call_operand.vmem [shape: f32[32,1], index: 3, kind: input, shape index: {}]
  %s4 = inlined_call_operand.vmem [shape: f32[32,882], index: 4, kind: output, shape index: {}]
  %s5 = sld [smem:[#allocation0]]
  $region26: #{dqn_forward.5} parent=0
    _
  %s7 = ssub.s32 1, %s5
  %s8 = scalar_select 0, %s7, %s5
  // Predicated region
  $region2: #{dqn_forward.5} parent=0 // pred_check
    _
  $region3: #{dqn_forward.5} parent=0 // pred_check_branch
    %10 = sbr.rel (0) target = $region5
  $region4: #{dqn_forward.5} parent=0 // pred_region
    _
  $region5: #{dqn_forward.5} parent=0 // pred_fallthru
    _
  // Predicated region
  $region6: #{dqn_forward.5} parent=0 // pred_check
    _
  $region7: #{dqn_forward.5} parent=0 // pred_check_branch
    %12 = sbr.rel (0) target = $region9
  $region8: #{dqn_forward.5} parent=0 // pred_region
    _
  $region9: #{dqn_forward.5} parent=0 // pred_fallthru
    _
  // Predicated region
  $region10: #{dqn_forward.5} parent=0 // pred_check
    _
  $region11: #{dqn_forward.5} parent=0 // pred_check_branch
    %14 = sbr.rel (0) target = $region13
  $region12: #{dqn_forward.5} parent=0 // pred_region
    _
  $region13: #{dqn_forward.5} parent=0 // pred_fallthru
    _
  // Predicated region
  $region14: #{dqn_forward.5} parent=0 // pred_check
    _
  $region15: #{dqn_forward.5} parent=0 // pred_check_branch
    %16 = sbr.rel (0) target = $region17
  $region16: #{dqn_forward.5} parent=0 // pred_region
    _
  $region17: #{dqn_forward.5} parent=0 // pred_fallthru
    _
  %v17 = vld [vmem:[%s1] sm:$0xff]
  %v18 = vld [vmem:[%s1 + $0x8] sm:$0xff]
  %v19 = vld [vmem:[%s1 + $0x10] sm:$0xff]
  %v20 = vld [vmem:[%s1 + $0x18] sm:$0xff]
  %v21 = vld [vmem:[%s1 + $0x20] sm:$0xff]
  %v22 = vld [vmem:[%s1 + $0x28] sm:$0xff]
  %v23 = vld [vmem:[%s1 + $0x30] sm:$0xff]
  %v24 = vld [vmem:[%s1 + $0x38] sm:$0xff]
  %v25 = vld [vmem:[%s1 + $0x40] sm:$0xff]
  %v26 = vld [vmem:[%s1 + $0x48] sm:$0xff]
  %v27 = vld [vmem:[%s1 + $0x50] sm:$0xff]
  %v28 = vld [vmem:[%s1 + $0x58] sm:$0xff]
  %v29 = vld [vmem:[%s1 + $0x60] sm:$0xff]
  %v30 = vld [vmem:[%s1 + $0x68] sm:$0xff]
  %v31 = vld [vmem:[%s1 + $0x70] sm:$0xff]
  %v32 = vld [vmem:[%s1 + $0x78] sm:$0xff]
  %v33 = vld [vmem:[%s0] sm:$0xff]
  %v34 = vld [vmem:[%s0 + $0x8] sm:$0xff]
  %v35 = vld [vmem:[%s0 + $0x10] sm:$0xff]
  %v36 = vld [vmem:[%s0 + $0x18] sm:$0xff]
  %v37 = vld [vmem:[%s0 + $0x20] sm:$0xff]
  %v38 = vld [vmem:[%s0 + $0x28] sm:$0xff]
  %v39 = vld [vmem:[%s0 + $0x30] sm:$0xff]
  %v40 = vld [vmem:[%s0 + $0x38] sm:$0xff]
  %v41 = vld [vmem:[%s0 + $0x40] sm:$0xff]
  %v42 = vld [vmem:[%s0 + $0x48] sm:$0xff]
  %v43 = vld [vmem:[%s0 + $0x50] sm:$0xff]
  %v44 = vld [vmem:[%s0 + $0x58] sm:$0xff]
  %v45 = vld [vmem:[%s0 + $0x60] sm:$0xff]
  %v46 = vld [vmem:[%s0 + $0x68] sm:$0xff]
  %v47 = vld [vmem:[%s0 + $0x70] sm:$0xff]
  %v48 = vld [vmem:[%s0 + $0x78] sm:$0xff]
  %v49 = vld [vmem:[%s0 + $0x80] sm:$0xff]
  %v50 = vld [vmem:[%s0 + $0x88] sm:$0xff]
  %v51 = vld [vmem:[%s0 + $0x90] sm:$0xff]
  %v52 = vld [vmem:[%s0 + $0x98] sm:$0xff]
  %v53 = vld [vmem:[%s0 + $0xa0] sm:$0xff]
  %v54 = vld [vmem:[%s0 + $0xa8] sm:$0xff]
  %v55 = vld [vmem:[%s0 + $0xb0] sm:$0xff]
  %v56 = vld [vmem:[%s0 + $0xb8] sm:$0xff]
  %v57 = vld [vmem:[%s0 + $0xc0] sm:$0xff]
  %v58 = vld [vmem:[%s0 + $0xc8] sm:$0xff]
  %v59 = vld [vmem:[%s0 + $0xd0] sm:$0xff]
  %v60 = vld [vmem:[%s0 + $0xd8] sm:$0xff]
  %v61 = vld [vmem:[%s0 + $0xe0] sm:$0xff]
  %v62 = vld [vmem:[%s0 + $0xe8] sm:$0xff]
  %v63 = vld [vmem:[%s0 + $0xf0] sm:$0xff]
  %v64 = vld [vmem:[%s0 + $0xf8] sm:$0xff]
  %v65 = vld [vmem:[%s0 + $0x100] sm:$0xff]
  %v66 = vld [vmem:[%s0 + $0x108] sm:$0xff]
  %v67 = vld [vmem:[%s0 + $0x110] sm:$0xff]
  %v68 = vld [vmem:[%s0 + $0x118] sm:$0xff]
  %v69 = vld [vmem:[%s0 + $0x120] sm:$0xff]
  %v70 = vld [vmem:[%s0 + $0x128] sm:$0xff]
  %v71 = vld [vmem:[%s0 + $0x130] sm:$0xff]
  %v72 = vld [vmem:[%s0 + $0x138] sm:$0xff]
  %v73 = vld [vmem:[%s0 + $0x140] sm:$0xff]
  %v74 = vld [vmem:[%s0 + $0x148] sm:$0xff]
  %v75 = vld [vmem:[%s0 + $0x150] sm:$0xff]
  %v76 = vld [vmem:[%s0 + $0x158] sm:$0xff]
  %v77 = vld [vmem:[%s0 + $0x160] sm:$0xff]
  %v78 = vld [vmem:[%s0 + $0x168] sm:$0xff]
  %v79 = vld [vmem:[%s0 + $0x170] sm:$0xff]
  %v80 = vld [vmem:[%s0 + $0x178] sm:$0xff]
  %v81 = vld [vmem:[%s0 + $0x180] sm:$0xff]
  %v82 = vld [vmem:[%s0 + $0x188] sm:$0xff]
  %v83 = vld [vmem:[%s0 + $0x190] sm:$0xff]
  %v84 = vld [vmem:[%s0 + $0x198] sm:$0xff]
  %v85 = vld [vmem:[%s0 + $0x1a0] sm:$0xff]
  %v86 = vld [vmem:[%s0 + $0x1a8] sm:$0xff]
  %v87 = vld [vmem:[%s0 + $0x1b0] sm:$0xff]
  %v88 = vld [vmem:[%s0 + $0x1b8] sm:$0xff]
  %v89 = vld [vmem:[%s0 + $0x1c0] sm:$0xff]
  %v90 = vld [vmem:[%s0 + $0x1c8] sm:$0xff]
  %v91 = vld [vmem:[%s0 + $0x1d0] sm:$0xff]
  %v92 = vld [vmem:[%s0 + $0x1d8] sm:$0xff]
  %v93 = vld [vmem:[%s0 + $0x1e0] sm:$0xff]
  %v94 = vld [vmem:[%s0 + $0x1e8] sm:$0xff]
  %v95 = vld [vmem:[%s0 + $0x1f0] sm:$0xff]
  %v96 = vld [vmem:[%s0 + $0x1f8] sm:$0xff]
  %v97 = vld [vmem:[%s0 + $0x200] sm:$0xff]
  %v98 = vld [vmem:[%s0 + $0x208] sm:$0xff]
  %v99 = vld [vmem:[%s0 + $0x210] sm:$0xff]
  %v100 = vld [vmem:[%s0 + $0x218] sm:$0xff]
  %v101 = vld [vmem:[%s0 + $0x220] sm:$0xff]
  %v102 = vld [vmem:[%s0 + $0x228] sm:$0xff]
  %v103 = vld [vmem:[%s0 + $0x230] sm:$0xff]
  %v104 = vld [vmem:[%s0 + $0x238] sm:$0xff]
  %v105 = vld [vmem:[%s0 + $0x240] sm:$0xff]
  %v106 = vld [vmem:[%s0 + $0x248] sm:$0xff]
  %v107 = vld [vmem:[%s0 + $0x250] sm:$0xff]
  %v108 = vld [vmem:[%s0 + $0x258] sm:$0xff]
  %v109 = vld [vmem:[%s0 + $0x260] sm:$0xff]
  %v110 = vld [vmem:[%s0 + $0x268] sm:$0xff]
  %v111 = vld [vmem:[%s0 + $0x270] sm:$0xff]
  %v112 = vld [vmem:[%s0 + $0x278] sm:$0xff]
  %v113 = vld [vmem:[%s0 + $0x280] sm:$0xff]
  %v114 = vld [vmem:[%s0 + $0x288] sm:$0xff]
  %v115 = vld [vmem:[%s0 + $0x290] sm:$0xff]
  %v116 = vld [vmem:[%s0 + $0x298] sm:$0xff]
  %v117 = vld [vmem:[%s0 + $0x2a0] sm:$0xff]
  %v118 = vld [vmem:[%s0 + $0x2a8] sm:$0xff]
  %v119 = vld [vmem:[%s0 + $0x2b0] sm:$0xff]
  %v120 = vld [vmem:[%s0 + $0x2b8] sm:$0xff]
  %v121 = vld [vmem:[%s0 + $0x2c0] sm:$0xff]
  %v122 = vld [vmem:[%s0 + $0x2c8] sm:$0xff]
  %v123 = vld [vmem:[%s0 + $0x2d0] sm:$0xff]
  %v124 = vld [vmem:[%s0 + $0x2d8] sm:$0xff]
  %v125 = vld [vmem:[%s0 + $0x2e0] sm:$0xff]
  %v126 = vld [vmem:[%s0 + $0x2e8] sm:$0xff]
  %v127 = vld [vmem:[%s0 + $0x2f0] sm:$0xff]
  %v128 = vld [vmem:[%s0 + $0x2f8] sm:$0xff]
  %v129 = vld [vmem:[%s0 + $0x300] sm:$0xff]
  %v130 = vld [vmem:[%s0 + $0x308] sm:$0xff]
  %v131 = vld [vmem:[%s0 + $0x310] sm:$0xff]
  %v132 = vld [vmem:[%s0 + $0x318] sm:$0xff]
  %v133 = vld [vmem:[%s0 + $0x320] sm:$0xff]
  %v134 = vld [vmem:[%s0 + $0x328] sm:$0xff]
  %v135 = vld [vmem:[%s0 + $0x330] sm:$0xff]
  %v136 = vld [vmem:[%s0 + $0x338] sm:$0xff]
  %v137 = vld [vmem:[%s0 + $0x340] sm:$0xff]
  %v138 = vld [vmem:[%s0 + $0x348] sm:$0xff]
  %v139 = vld [vmem:[%s0 + $0x350] sm:$0xff]
  %v140 = vld [vmem:[%s0 + $0x358] sm:$0xff]
  %v141 = vld [vmem:[%s0 + $0x360] sm:$0xff]
  %v142 = vld [vmem:[%s0 + $0x368] sm:$0xff]
  %v143 = vld [vmem:[%s0 + $0x370] sm:$0xff]
  %v144 = vld [vmem:[%s0 + $0x378] sm:$0xff]
  %v145 = vld [vmem:[%s0 + $0x380] sm:$0xff]
  %v146 = vld [vmem:[%s0 + $0x388] sm:$0xff]
  %v147 = vld [vmem:[%s0 + $0x390] sm:$0xff]
  %v148 = vld [vmem:[%s0 + $0x398] sm:$0xff]
  %v149 = vld [vmem:[%s0 + $0x3a0] sm:$0xff]
  %v150 = vld [vmem:[%s0 + $0x3a8] sm:$0xff]
  %v151 = vld [vmem:[%s0 + $0x3b0] sm:$0xff]
  %v152 = vld [vmem:[%s0 + $0x3b8] sm:$0xff]
  %v153 = vld [vmem:[%s0 + $0x3c0] sm:$0xff]
  %v154 = vld [vmem:[%s0 + $0x3c8] sm:$0xff]
  %v155 = vld [vmem:[%s0 + $0x3d0] sm:$0xff]
  %v156 = vld [vmem:[%s0 + $0x3d8] sm:$0xff]
  %v157 = vld [vmem:[%s0 + $0x3e0] sm:$0xff]
  %v158 = vld [vmem:[%s0 + $0x3e8] sm:$0xff]
  %v159 = vld [vmem:[%s0 + $0x3f0] sm:$0xff]
  %v160 = vld [vmem:[%s0 + $0x3f8] sm:$0xff]
  %v161 = vld [vmem:[%s0 + $0x400] sm:$0xff]
  %v162 = vld [vmem:[%s0 + $0x408] sm:$0xff]
  %v163 = vld [vmem:[%s0 + $0x410] sm:$0xff]
  %v164 = vld [vmem:[%s0 + $0x418] sm:$0xff]
  %v165 = vld [vmem:[%s0 + $0x420] sm:$0xff]
  %v166 = vld [vmem:[%s0 + $0x428] sm:$0xff]
  %v167 = vld [vmem:[%s0 + $0x430] sm:$0xff]
  %v168 = vld [vmem:[%s0 + $0x438] sm:$0xff]
  %v169 = vld [vmem:[%s0 + $0x440] sm:$0xff]
  %v170 = vld [vmem:[%s0 + $0x448] sm:$0xff]
  %v171 = vld [vmem:[%s0 + $0x450] sm:$0xff]
  %v172 = vld [vmem:[%s0 + $0x458] sm:$0xff]
  %v173 = vld [vmem:[%s0 + $0x460] sm:$0xff]
  %v174 = vld [vmem:[%s0 + $0x468] sm:$0xff]
  %v175 = vld [vmem:[%s0 + $0x470] sm:$0xff]
  %v176 = vld [vmem:[%s0 + $0x478] sm:$0xff]
  %v177 = vld [vmem:[%s0 + $0x480] sm:$0xff]
  %v178 = vld [vmem:[%s0 + $0x488] sm:$0xff]
  %v179 = vld [vmem:[%s0 + $0x490] sm:$0xff]
  %v180 = vld [vmem:[%s0 + $0x498] sm:$0xff]
  %v181 = vld [vmem:[%s0 + $0x4a0] sm:$0xff]
  %v182 = vld [vmem:[%s0 + $0x4a8] sm:$0xff]
  %v183 = vld [vmem:[%s0 + $0x4b0] sm:$0xff]
  %v184 = vld [vmem:[%s0 + $0x4b8] sm:$0xff]
  %v185 = vld [vmem:[%s0 + $0x4c0] sm:$0xff]
  %v186 = vld [vmem:[%s0 + $0x4c8] sm:$0xff]
  %v187 = vld [vmem:[%s0 + $0x4d0] sm:$0xff]
  %v188 = vld [vmem:[%s0 + $0x4d8] sm:$0xff]
  %v189 = vld [vmem:[%s0 + $0x4e0] sm:$0xff]
  %v190 = vld [vmem:[%s0 + $0x4e8] sm:$0xff]
  %v191 = vld [vmem:[%s0 + $0x4f0] sm:$0xff]
  %v192 = vld [vmem:[%s0 + $0x4f8] sm:$0xff]
  %v193 = vld [vmem:[%s0 + $0x500] sm:$0xff]
  %v194 = vld [vmem:[%s0 + $0x508] sm:$0xff]
  %v195 = vld [vmem:[%s0 + $0x510] sm:$0xff]
  %v196 = vld [vmem:[%s0 + $0x518] sm:$0xff]
  %v197 = vld [vmem:[%s0 + $0x520] sm:$0xff]
  %v198 = vld [vmem:[%s0 + $0x528] sm:$0xff]
  %v199 = vld [vmem:[%s0 + $0x530] sm:$0xff]
  %v200 = vld [vmem:[%s0 + $0x538] sm:$0xff]
  %v201 = vld [vmem:[%s0 + $0x540] sm:$0xff]
  %v202 = vld [vmem:[%s0 + $0x548] sm:$0xff]
  %v203 = vld [vmem:[%s0 + $0x550] sm:$0xff]
  %v204 = vld [vmem:[%s0 + $0x558] sm:$0xff]
  %v205 = vld [vmem:[%s0 + $0x560] sm:$0xff]
  %v206 = vld [vmem:[%s0 + $0x568] sm:$0xff]
  %v207 = vld [vmem:[%s0 + $0x570] sm:$0xff]
  %v208 = vld [vmem:[%s0 + $0x578] sm:$0xff]
  %v209 = vld [vmem:[%s0 + $0x580] sm:$0xff]
  %v210 = vld [vmem:[%s0 + $0x588] sm:$0xff]
  %v211 = vld [vmem:[%s0 + $0x590] sm:$0xff]
  %v212 = vld [vmem:[%s0 + $0x598] sm:$0xff]
  %v213 = vld [vmem:[%s0 + $0x5a0] sm:$0xff]
  %v214 = vld [vmem:[%s0 + $0x5a8] sm:$0xff]
  %v215 = vld [vmem:[%s0 + $0x5b0] sm:$0xff]
  %v216 = vld [vmem:[%s0 + $0x5b8] sm:$0xff]
  %v217 = vld [vmem:[%s0 + $0x5c0] sm:$0xff]
  %v218 = vld [vmem:[%s0 + $0x5c8] sm:$0xff]
  %v219 = vld [vmem:[%s0 + $0x5d0] sm:$0xff]
  %v220 = vld [vmem:[%s0 + $0x5d8] sm:$0xff]
  %v221 = vld [vmem:[%s0 + $0x5e0] sm:$0xff]
  %v222 = vld [vmem:[%s0 + $0x5e8] sm:$0xff]
  %v223 = vld [vmem:[%s0 + $0x5f0] sm:$0xff]
  %v224 = vld [vmem:[%s0 + $0x5f8] sm:$0xff]
  %v225 = vld [vmem:[%s0 + $0x600] sm:$0xff]
  %v226 = vld [vmem:[%s0 + $0x608] sm:$0xff]
  %v227 = vld [vmem:[%s0 + $0x610] sm:$0xff]
  %v228 = vld [vmem:[%s0 + $0x618] sm:$0xff]
  %v229 = vld [vmem:[%s0 + $0x620] sm:$0xff]
  %v230 = vld [vmem:[%s0 + $0x628] sm:$0xff]
  %v231 = vld [vmem:[%s0 + $0x630] sm:$0xff]
  %v232 = vld [vmem:[%s0 + $0x638] sm:$0xff]
  %v233 = vld [vmem:[%s0 + $0x640] sm:$0xff]
  %v234 = vld [vmem:[%s0 + $0x648] sm:$0xff]
  %v235 = vld [vmem:[%s0 + $0x650] sm:$0xff]
  %v236 = vld [vmem:[%s0 + $0x658] sm:$0xff]
  %v237 = vld [vmem:[%s0 + $0x660] sm:$0xff]
  %v238 = vld [vmem:[%s0 + $0x668] sm:$0xff]
  %v239 = vld [vmem:[%s0 + $0x670] sm:$0xff]
  %v240 = vld [vmem:[%s0 + $0x678] sm:$0xff]
  %v241 = vld [vmem:[%s0 + $0x680] sm:$0xff]
  %v242 = vld [vmem:[%s0 + $0x688] sm:$0xff]
  %v243 = vld [vmem:[%s0 + $0x690] sm:$0xff]
  %v244 = vld [vmem:[%s0 + $0x698] sm:$0xff]
  %v245 = vld [vmem:[%s0 + $0x6a0] sm:$0xff]
  %v246 = vld [vmem:[%s0 + $0x6a8] sm:$0xff]
  %v247 = vld [vmem:[%s0 + $0x6b0] sm:$0xff]
  %v248 = vld [vmem:[%s0 + $0x6b8] sm:$0xff]
  %v249 = vld [vmem:[%s0 + $0x6c0] sm:$0xff]
  %v250 = vld [vmem:[%s0 + $0x6c8] sm:$0xff]
  %v251 = vld [vmem:[%s0 + $0x6d0] sm:$0xff]
  %v252 = vld [vmem:[%s0 + $0x6d8] sm:$0xff]
  %v253 = vld [vmem:[%s0 + $0x6e0] sm:$0xff]
  %v254 = vld [vmem:[%s0 + $0x6e8] sm:$0xff]
  %v255 = vld [vmem:[%s0 + $0x6f0] sm:$0xff]
  %v256 = vld [vmem:[%s0 + $0x6f8] sm:$0xff]
  %v257 = vld [vmem:[%s0 + $0x700] sm:$0xff]
  %v258 = vld [vmem:[%s0 + $0x708] sm:$0xff]
  %v259 = vld [vmem:[%s0 + $0x710] sm:$0xff]
  %v260 = vld [vmem:[%s0 + $0x718] sm:$0xff]
  %v261 = vld [vmem:[%s0 + $0x720] sm:$0xff]
  %v262 = vld [vmem:[%s0 + $0x728] sm:$0xff]
  %v263 = vld [vmem:[%s0 + $0x730] sm:$0xff]
  %v264 = vld [vmem:[%s0 + $0x738] sm:$0xff]
  %v265 = vld [vmem:[%s0 + $0x740] sm:$0xff]
  %v266 = vld [vmem:[%s0 + $0x748] sm:$0xff]
  %v267 = vld [vmem:[%s0 + $0x750] sm:$0xff]
  %v268 = vld [vmem:[%s0 + $0x758] sm:$0xff]
  %v269 = vld [vmem:[%s0 + $0x760] sm:$0xff]
  %v270 = vld [vmem:[%s0 + $0x768] sm:$0xff]
  %v271 = vld [vmem:[%s0 + $0x770] sm:$0xff]
  %v272 = vld [vmem:[%s0 + $0x778] sm:$0xff]
  %v273 = vld [vmem:[%s0 + $0x780] sm:$0xff]
  %v274 = vld [vmem:[%s0 + $0x788] sm:$0xff]
  %v275 = vld [vmem:[%s0 + $0x790] sm:$0xff]
  %v276 = vld [vmem:[%s0 + $0x798] sm:$0xff]
  %v277 = vld [vmem:[%s0 + $0x7a0] sm:$0xff]
  %v278 = vld [vmem:[%s0 + $0x7a8] sm:$0xff]
  %v279 = vld [vmem:[%s0 + $0x7b0] sm:$0xff]
  %v280 = vld [vmem:[%s0 + $0x7b8] sm:$0xff]
  %v281 = vld [vmem:[%s0 + $0x7c0] sm:$0xff]
  %v282 = vld [vmem:[%s0 + $0x7c8] sm:$0xff]
  %v283 = vld [vmem:[%s0 + $0x7d0] sm:$0xff]
  %v284 = vld [vmem:[%s0 + $0x7d8] sm:$0xff]
  %v285 = vld [vmem:[%s0 + $0x7e0] sm:$0xff]
  %v286 = vld [vmem:[%s0 + $0x7e8] sm:$0xff]
  %v287 = vld [vmem:[%s0 + $0x7f0] sm:$0xff]
  %v288 = vld [vmem:[%s0 + $0x7f8] sm:$0xff]
  %v289 = vld [vmem:[%s0 + $0x800] sm:$0xff]
  %v290 = vld [vmem:[%s0 + $0x808] sm:$0xff]
  %v291 = vld [vmem:[%s0 + $0x810] sm:$0xff]
  %v292 = vld [vmem:[%s0 + $0x818] sm:$0xff]
  %v293 = vld [vmem:[%s0 + $0x820] sm:$0xff]
  %v294 = vld [vmem:[%s0 + $0x828] sm:$0xff]
  %v295 = vld [vmem:[%s0 + $0x830] sm:$0xff]
  %v296 = vld [vmem:[%s0 + $0x838] sm:$0xff]
  %v297 = vld [vmem:[%s0 + $0x840] sm:$0xff]
  %v298 = vld [vmem:[%s0 + $0x848] sm:$0xff]
  %v299 = vld [vmem:[%s0 + $0x850] sm:$0xff]
  %v300 = vld [vmem:[%s0 + $0x858] sm:$0xff]
  %v301 = vld [vmem:[%s0 + $0x860] sm:$0xff]
  %v302 = vld [vmem:[%s0 + $0x868] sm:$0xff]
  %v303 = vld [vmem:[%s0 + $0x870] sm:$0xff]
  %v304 = vld [vmem:[%s0 + $0x878] sm:$0xff]
  %v305 = vld [vmem:[%s0 + $0x880] sm:$0xff]
  %v306 = vld [vmem:[%s0 + $0x888] sm:$0xff]
  %v307 = vld [vmem:[%s0 + $0x890] sm:$0xff]
  %v308 = vld [vmem:[%s0 + $0x898] sm:$0xff]
  %v309 = vld [vmem:[%s0 + $0x8a0] sm:$0xff]
  %v310 = vld [vmem:[%s0 + $0x8a8] sm:$0xff]
  %v311 = vld [vmem:[%s0 + $0x8b0] sm:$0xff]
  %v312 = vld [vmem:[%s0 + $0x8b8] sm:$0xff]
  %v313 = vld [vmem:[%s0 + $0x8c0] sm:$0xff]
  %v314 = vld [vmem:[%s0 + $0x8c8] sm:$0xff]
  %v315 = vld [vmem:[%s0 + $0x8d0] sm:$0xff]
  %v316 = vld [vmem:[%s0 + $0x8d8] sm:$0xff]
  %v317 = vld [vmem:[%s0 + $0x8e0] sm:$0xff]
  %v318 = vld [vmem:[%s0 + $0x8e8] sm:$0xff]
  %v319 = vld [vmem:[%s0 + $0x8f0] sm:$0xff]
  %v320 = vld [vmem:[%s0 + $0x8f8] sm:$0xff]
  %v321 = vld [vmem:[%s0 + $0x900] sm:$0xff]
  %v322 = vld [vmem:[%s0 + $0x908] sm:$0xff]
  %v323 = vld [vmem:[%s0 + $0x910] sm:$0xff]
  %v324 = vld [vmem:[%s0 + $0x918] sm:$0xff]
  %v325 = vld [vmem:[%s0 + $0x920] sm:$0xff]
  %v326 = vld [vmem:[%s0 + $0x928] sm:$0xff]
  %v327 = vld [vmem:[%s0 + $0x930] sm:$0xff]
  %v328 = vld [vmem:[%s0 + $0x938] sm:$0xff]
  %v329 = vld [vmem:[%s0 + $0x940] sm:$0xff]
  %v330 = vld [vmem:[%s0 + $0x948] sm:$0xff]
  %v331 = vld [vmem:[%s0 + $0x950] sm:$0xff]
  %v332 = vld [vmem:[%s0 + $0x958] sm:$0xff]
  %v333 = vld [vmem:[%s0 + $0x960] sm:$0xff]
  %v334 = vld [vmem:[%s0 + $0x968] sm:$0xff]
  %v335 = vld [vmem:[%s0 + $0x970] sm:$0xff]
  %v336 = vld [vmem:[%s0 + $0x978] sm:$0xff]
  %v337 = vld [vmem:[%s0 + $0x980] sm:$0xff]
  %v338 = vld [vmem:[%s0 + $0x988] sm:$0xff]
  %v339 = vld [vmem:[%s0 + $0x990] sm:$0xff]
  %v340 = vld [vmem:[%s0 + $0x998] sm:$0xff]
  %v341 = vld [vmem:[%s0 + $0x9a0] sm:$0xff]
  %v342 = vld [vmem:[%s0 + $0x9a8] sm:$0xff]
  %v343 = vld [vmem:[%s0 + $0x9b0] sm:$0xff]
  %v344 = vld [vmem:[%s0 + $0x9b8] sm:$0xff]
  %v345 = vld [vmem:[%s0 + $0x9c0] sm:$0xff]
  %v346 = vld [vmem:[%s0 + $0x9c8] sm:$0xff]
  %v347 = vld [vmem:[%s0 + $0x9d0] sm:$0xff]
  %v348 = vld [vmem:[%s0 + $0x9d8] sm:$0xff]
  %v349 = vld [vmem:[%s0 + $0x9e0] sm:$0xff]
  %v350 = vld [vmem:[%s0 + $0x9e8] sm:$0xff]
  %v351 = vld [vmem:[%s0 + $0x9f0] sm:$0xff]
  %v352 = vld [vmem:[%s0 + $0x9f8] sm:$0xff]
  %v353 = vld [vmem:[%s0 + $0xa00] sm:$0xff]
  %v354 = vld [vmem:[%s0 + $0xa08] sm:$0xff]
  %v355 = vld [vmem:[%s0 + $0xa10] sm:$0xff]
  %v356 = vld [vmem:[%s0 + $0xa18] sm:$0xff]
  %v357 = vld [vmem:[%s0 + $0xa20] sm:$0xff]
  %v358 = vld [vmem:[%s0 + $0xa28] sm:$0xff]
  %v359 = vld [vmem:[%s0 + $0xa30] sm:$0xff]
  %v360 = vld [vmem:[%s0 + $0xa38] sm:$0xff]
  %v361 = vld [vmem:[%s0 + $0xa40] sm:$0xff]
  %v362 = vld [vmem:[%s0 + $0xa48] sm:$0xff]
  %v363 = vld [vmem:[%s0 + $0xa50] sm:$0xff]
  %v364 = vld [vmem:[%s0 + $0xa58] sm:$0xff]
  %v365 = vld [vmem:[%s0 + $0xa60] sm:$0xff]
  %v366 = vld [vmem:[%s0 + $0xa68] sm:$0xff]
  %v367 = vld [vmem:[%s0 + $0xa70] sm:$0xff]
  %v368 = vld [vmem:[%s0 + $0xa78] sm:$0xff]
  %v369 = vld [vmem:[%s0 + $0xa80] sm:$0xff]
  %v370 = vld [vmem:[%s0 + $0xa88] sm:$0xff]
  %v371 = vld [vmem:[%s0 + $0xa90] sm:$0xff]
  %v372 = vld [vmem:[%s0 + $0xa98] sm:$0xff]
  %v373 = vld [vmem:[%s0 + $0xaa0] sm:$0xff]
  %v374 = vld [vmem:[%s0 + $0xaa8] sm:$0xff]
  %v375 = vld [vmem:[%s0 + $0xab0] sm:$0xff]
  %v376 = vld [vmem:[%s0 + $0xab8] sm:$0xff]
  %v377 = vld [vmem:[%s0 + $0xac0] sm:$0xff]
  %v378 = vld [vmem:[%s0 + $0xac8] sm:$0xff]
  %v379 = vld [vmem:[%s0 + $0xad0] sm:$0xff]
  %v380 = vld [vmem:[%s0 + $0xad8] sm:$0xff]
  %v381 = vld [vmem:[%s0 + $0xae0] sm:$0xff]
  %v382 = vld [vmem:[%s0 + $0xae8] sm:$0xff]
  %vm383 = vcmask 130048
  %v385 = vsel %vm383, %v20, 0
  %v388 = vsel %vm383, %v24, 0
  %v391 = vsel %vm383, %v28, 0
  %v394 = vsel %vm383, %v32, 0
  %396 = vmatpush.msra.mxu0 %v138
  %397 = vmatpush.msra.mxu0 %v131
  %398 = vmatpush.msra.mxu0 %v124
  %399 = vmatpush.msra.mxu0 %v117
  %400 = vmatpush.msra.mxu0 %v110
  %401 = vmatpush.msra.mxu0 %v103
  %402 = vmatpush.msra.mxu0 %v96
  %403 = vmatpush.msra.mxu0 %v89
  %404 = vmatpush.msra.mxu0 %v82
  %405 = vmatpush.msra.mxu0 %v75
  %406 = vmatpush.msra.mxu0 %v68
  %407 = vmatpush.msra.mxu0 %v61
  %408 = vmatpush.msra.mxu0 %v54
  %409 = vmatpush.msra.mxu0 %v47
  %410 = vmatpush.msra.mxu0 %v40
  %411 = vmatpush.msra.mxu0 %v33
  %412 = vmatmul.f32.gmra.mxu0 %v17
  %v413 = vpop.f32.mrf.mxu0
  %v414 = vadd.f32 0.0, %v413
  %415 = vmatmul.f32.gmra.mxu0 %v21
  %v416 = vpop.f32.mrf.mxu0
  %v417 = vadd.f32 0.0, %v416
  %418 = vmatmul.f32.gmra.mxu0 %v25
  %v419 = vpop.f32.mrf.mxu0
  %v420 = vadd.f32 0.0, %v419
  %421 = vmatmul.f32.gmra.mxu0 %v29
  %v422 = vpop.f32.mrf.mxu0
  %v423 = vadd.f32 0.0, %v422
  %424 = vdwg.mxu0
  %425 = vmatpush.msra.mxu0 %v250
  %426 = vmatpush.msra.mxu0 %v243
  %427 = vmatpush.msra.mxu0 %v236
  %428 = vmatpush.msra.mxu0 %v229
  %429 = vmatpush.msra.mxu0 %v222
  %430 = vmatpush.msra.mxu0 %v215
  %431 = vmatpush.msra.mxu0 %v208
  %432 = vmatpush.msra.mxu0 %v201
  %433 = vmatpush.msra.mxu0 %v194
  %434 = vmatpush.msra.mxu0 %v187
  %435 = vmatpush.msra.mxu0 %v180
  %436 = vmatpush.msra.mxu0 %v173
  %437 = vmatpush.msra.mxu0 %v166
  %438 = vmatpush.msra.mxu0 %v159
  %439 = vmatpush.msra.mxu0 %v152
  %440 = vmatpush.msra.mxu0 %v145
  %441 = vmatmul.f32.gmra.mxu0 %v18
  %v442 = vpop.f32.mrf.mxu0
  %v443 = vadd.f32 %v414, %v442
  %444 = vmatmul.f32.gmra.mxu0 %v22
  %v445 = vpop.f32.mrf.mxu0
  %v446 = vadd.f32 %v417, %v445
  %447 = vmatmul.f32.gmra.mxu0 %v26
  %v448 = vpop.f32.mrf.mxu0
  %v449 = vadd.f32 %v420, %v448
  %450 = vmatmul.f32.gmra.mxu0 %v30
  %v451 = vpop.f32.mrf.mxu0
  %v452 = vadd.f32 %v423, %v451
  %453 = vdwg.mxu0
  %454 = vmatpush.msra.mxu0 %v362
  %455 = vmatpush.msra.mxu0 %v355
  %456 = vmatpush.msra.mxu0 %v348
  %457 = vmatpush.msra.mxu0 %v341
  %458 = vmatpush.msra.mxu0 %v334
  %459 = vmatpush.msra.mxu0 %v327
  %460 = vmatpush.msra.mxu0 %v320
  %461 = vmatpush.msra.mxu0 %v313
  %462 = vmatpush.msra.mxu0 %v306
  %463 = vmatpush.msra.mxu0 %v299
  %464 = vmatpush.msra.mxu0 %v292
  %465 = vmatpush.msra.mxu0 %v285
  %466 = vmatpush.msra.mxu0 %v278
  %467 = vmatpush.msra.mxu0 %v271
  %468 = vmatpush.msra.mxu0 %v264
  %469 = vmatpush.msra.mxu0 %v257
  %470 = vmatmul.f32.gmra.mxu0 %v19
  %v471 = vpop.f32.mrf.mxu0
  %v472 = vadd.f32 %v443, %v471
  %473 = vmatmul.f32.gmra.mxu0 %v23
  %v474 = vpop.f32.mrf.mxu0
  %v475 = vadd.f32 %v446, %v474
  %476 = vmatmul.f32.gmra.mxu0 %v27
  %v477 = vpop.f32.mrf.mxu0
  %v478 = vadd.f32 %v449, %v477
  %479 = vmatmul.f32.gmra.mxu0 %v31
  %v480 = vpop.f32.mrf.mxu0
  %v481 = vadd.f32 %v452, %v480
  %482 = vdwg.mxu0
  %483 = vmatpush.msra.mxu0 0.0
  %484 = vmatpush.msra.mxu0 0.0
  %485 = vmatpush.msra.mxu0 0.0
  %486 = vmatpush.msra.mxu0 0.0
  %487 = vmatpush.msra.mxu0 0.0
  %488 = vmatpush.msra.mxu0 0.0
  %489 = vmatpush.msra.mxu0 0.0
  %490 = vmatpush.msra.mxu0 0.0
  %491 = vmatpush.msra.mxu0 0.0
  %492 = vmatpush.msra.mxu0 0.0
  %493 = vmatpush.msra.mxu0 0.0
  %494 = vmatpush.msra.mxu0 0.0
  %495 = vmatpush.msra.mxu0 0.0
  %496 = vmatpush.msra.mxu0 0.0
  %497 = vmatpush.msra.mxu0 %v376
  %498 = vmatpush.msra.mxu0 %v369
  %499 = vmatmul.f32.gmra.mxu0 %v385
  %v500 = vpop.f32.mrf.mxu0
  %v501 = vadd.f32 %v472, %v500
  %502 = vmatmul.f32.gmra.mxu0 %v388
  %v503 = vpop.f32.mrf.mxu0
  %v504 = vadd.f32 %v475, %v503
  %505 = vmatmul.f32.gmra.mxu0 %v391
  %v506 = vpop.f32.mrf.mxu0
  %v507 = vadd.f32 %v478, %v506
  %508 = vmatmul.f32.gmra.mxu0 %v394
  %v509 = vpop.f32.mrf.mxu0
  %v510 = vadd.f32 %v481, %v509
  %511 = vdwg.mxu0
  %512 = vmatpush.msra.mxu0 %v139
  %513 = vmatpush.msra.mxu0 %v132
  %514 = vmatpush.msra.mxu0 %v125
  %515 = vmatpush.msra.mxu0 %v118
  %516 = vmatpush.msra.mxu0 %v111
  %517 = vmatpush.msra.mxu0 %v104
  %518 = vmatpush.msra.mxu0 %v97
  %519 = vmatpush.msra.mxu0 %v90
  %520 = vmatpush.msra.mxu0 %v83
  %521 = vmatpush.msra.mxu0 %v76
  %522 = vmatpush.msra.mxu0 %v69
  %523 = vmatpush.msra.mxu0 %v62
  %524 = vmatpush.msra.mxu0 %v55
  %525 = vmatpush.msra.mxu0 %v48
  %526 = vmatpush.msra.mxu0 %v41
  %527 = vmatpush.msra.mxu0 %v34
  %528 = vmatmul.f32.gmra.mxu0 %v17
  %v529 = vpop.f32.mrf.mxu0
  %v530 = vadd.f32 0.0, %v529
  %531 = vmatmul.f32.gmra.mxu0 %v21
  %v532 = vpop.f32.mrf.mxu0
  %v533 = vadd.f32 0.0, %v532
  %534 = vmatmul.f32.gmra.mxu0 %v25
  %v535 = vpop.f32.mrf.mxu0
  %v536 = vadd.f32 0.0, %v535
  %537 = vmatmul.f32.gmra.mxu0 %v29
  %v538 = vpop.f32.mrf.mxu0
  %v539 = vadd.f32 0.0, %v538
  %540 = vdwg.mxu0
  %541 = vmatpush.msra.mxu0 %v251
  %542 = vmatpush.msra.mxu0 %v244
  %543 = vmatpush.msra.mxu0 %v237
  %544 = vmatpush.msra.mxu0 %v230
  %545 = vmatpush.msra.mxu0 %v223
  %546 = vmatpush.msra.mxu0 %v216
  %547 = vmatpush.msra.mxu0 %v209
  %548 = vmatpush.msra.mxu0 %v202
  %549 = vmatpush.msra.mxu0 %v195
  %550 = vmatpush.msra.mxu0 %v188
  %551 = vmatpush.msra.mxu0 %v181
  %552 = vmatpush.msra.mxu0 %v174
  %553 = vmatpush.msra.mxu0 %v167
  %554 = vmatpush.msra.mxu0 %v160
  %555 = vmatpush.msra.mxu0 %v153
  %556 = vmatpush.msra.mxu0 %v146
  %557 = vmatmul.f32.gmra.mxu0 %v18
  %v558 = vpop.f32.mrf.mxu0
  %v559 = vadd.f32 %v530, %v558
  %560 = vmatmul.f32.gmra.mxu0 %v22
  %v561 = vpop.f32.mrf.mxu0
  %v562 = vadd.f32 %v533, %v561
  %563 = vmatmul.f32.gmra.mxu0 %v26
  %v564 = vpop.f32.mrf.mxu0
  %v565 = vadd.f32 %v536, %v564
  %566 = vmatmul.f32.gmra.mxu0 %v30
  %v567 = vpop.f32.mrf.mxu0
  %v568 = vadd.f32 %v539, %v567
  %569 = vdwg.mxu0
  %570 = vmatpush.msra.mxu0 %v363
  %571 = vmatpush.msra.mxu0 %v356
  %572 = vmatpush.msra.mxu0 %v349
  %573 = vmatpush.msra.mxu0 %v342
  %574 = vmatpush.msra.mxu0 %v335
  %575 = vmatpush.msra.mxu0 %v328
  %576 = vmatpush.msra.mxu0 %v321
  %577 = vmatpush.msra.mxu0 %v314
  %578 = vmatpush.msra.mxu0 %v307
  %579 = vmatpush.msra.mxu0 %v300
  %580 = vmatpush.msra.mxu0 %v293
  %581 = vmatpush.msra.mxu0 %v286
  %582 = vmatpush.msra.mxu0 %v279
  %583 = vmatpush.msra.mxu0 %v272
  %584 = vmatpush.msra.mxu0 %v265
  %585 = vmatpush.msra.mxu0 %v258
  %586 = vmatmul.f32.gmra.mxu0 %v19
  %v587 = vpop.f32.mrf.mxu0
  %v588 = vadd.f32 %v559, %v587
  %589 = vmatmul.f32.gmra.mxu0 %v23
  %v590 = vpop.f32.mrf.mxu0
  %v591 = vadd.f32 %v562, %v590
  %592 = vmatmul.f32.gmra.mxu0 %v27
  %v593 = vpop.f32.mrf.mxu0
  %v594 = vadd.f32 %v565, %v593
  %595 = vmatmul.f32.gmra.mxu0 %v31
  %v596 = vpop.f32.mrf.mxu0
  %v597 = vadd.f32 %v568, %v596
  %598 = vdwg.mxu0
  %599 = vmatpush.msra.mxu0 0.0
  %600 = vmatpush.msra.mxu0 0.0
  %601 = vmatpush.msra.mxu0 0.0
  %602 = vmatpush.msra.mxu0 0.0
  %603 = vmatpush.msra.mxu0 0.0
  %604 = vmatpush.msra.mxu0 0.0
  %605 = vmatpush.msra.mxu0 0.0
  %606 = vmatpush.msra.mxu0 0.0
  %607 = vmatpush.msra.mxu0 0.0
  %608 = vmatpush.msra.mxu0 0.0
  %609 = vmatpush.msra.mxu0 0.0
  %610 = vmatpush.msra.mxu0 0.0
  %611 = vmatpush.msra.mxu0 0.0
  %612 = vmatpush.msra.mxu0 0.0
  %613 = vmatpush.msra.mxu0 %v377
  %614 = vmatpush.msra.mxu0 %v370
  %615 = vmatmul.f32.gmra.mxu0 %v385
  %v616 = vpop.f32.mrf.mxu0
  %v617 = vadd.f32 %v588, %v616
  %618 = vmatmul.f32.gmra.mxu0 %v388
  %v619 = vpop.f32.mrf.mxu0
  %v620 = vadd.f32 %v591, %v619
  %621 = vmatmul.f32.gmra.mxu0 %v391
  %v622 = vpop.f32.mrf.mxu0
  %v623 = vadd.f32 %v594, %v622
  %624 = vmatmul.f32.gmra.mxu0 %v394
  %v625 = vpop.f32.mrf.mxu0
  %v626 = vadd.f32 %v597, %v625
  %627 = vdwg.mxu0
  %628 = vmatpush.msra.mxu0 %v140
  %629 = vmatpush.msra.mxu0 %v133
  %630 = vmatpush.msra.mxu0 %v126
  %631 = vmatpush.msra.mxu0 %v119
  %632 = vmatpush.msra.mxu0 %v112
  %633 = vmatpush.msra.mxu0 %v105
  %634 = vmatpush.msra.mxu0 %v98
  %635 = vmatpush.msra.mxu0 %v91
  %636 = vmatpush.msra.mxu0 %v84
  %637 = vmatpush.msra.mxu0 %v77
  %638 = vmatpush.msra.mxu0 %v70
  %639 = vmatpush.msra.mxu0 %v63
  %640 = vmatpush.msra.mxu0 %v56
  %641 = vmatpush.msra.mxu0 %v49
  %642 = vmatpush.msra.mxu0 %v42
  %643 = vmatpush.msra.mxu0 %v35
  %644 = vmatmul.f32.gmra.mxu0 %v17
  %v645 = vpop.f32.mrf.mxu0
  %v646 = vadd.f32 0.0, %v645
  %647 = vmatmul.f32.gmra.mxu0 %v21
  %v648 = vpop.f32.mrf.mxu0
  %v649 = vadd.f32 0.0, %v648
  %650 = vmatmul.f32.gmra.mxu0 %v25
  %v651 = vpop.f32.mrf.mxu0
  %v652 = vadd.f32 0.0, %v651
  %653 = vmatmul.f32.gmra.mxu0 %v29
  %v654 = vpop.f32.mrf.mxu0
  %v655 = vadd.f32 0.0, %v654
  %656 = vdwg.mxu0
  %657 = vmatpush.msra.mxu0 %v252
  %658 = vmatpush.msra.mxu0 %v245
  %659 = vmatpush.msra.mxu0 %v238
  %660 = vmatpush.msra.mxu0 %v231
  %661 = vmatpush.msra.mxu0 %v224
  %662 = vmatpush.msra.mxu0 %v217
  %663 = vmatpush.msra.mxu0 %v210
  %664 = vmatpush.msra.mxu0 %v203
  %665 = vmatpush.msra.mxu0 %v196
  %666 = vmatpush.msra.mxu0 %v189
  %667 = vmatpush.msra.mxu0 %v182
  %668 = vmatpush.msra.mxu0 %v175
  %669 = vmatpush.msra.mxu0 %v168
  %670 = vmatpush.msra.mxu0 %v161
  %671 = vmatpush.msra.mxu0 %v154
  %672 = vmatpush.msra.mxu0 %v147
  %673 = vmatmul.f32.gmra.mxu0 %v18
  %v674 = vpop.f32.mrf.mxu0
  %v675 = vadd.f32 %v646, %v674
  %676 = vmatmul.f32.gmra.mxu0 %v22
  %v677 = vpop.f32.mrf.mxu0
  %v678 = vadd.f32 %v649, %v677
  %679 = vmatmul.f32.gmra.mxu0 %v26
  %v680 = vpop.f32.mrf.mxu0
  %v681 = vadd.f32 %v652, %v680
  %682 = vmatmul.f32.gmra.mxu0 %v30
  %v683 = vpop.f32.mrf.mxu0
  %v684 = vadd.f32 %v655, %v683
  %685 = vdwg.mxu0
  %686 = vmatpush.msra.mxu0 %v364
  %687 = vmatpush.msra.mxu0 %v357
  %688 = vmatpush.msra.mxu0 %v350
  %689 = vmatpush.msra.mxu0 %v343
  %690 = vmatpush.msra.mxu0 %v336
  %691 = vmatpush.msra.mxu0 %v329
  %692 = vmatpush.msra.mxu0 %v322
  %693 = vmatpush.msra.mxu0 %v315
  %694 = vmatpush.msra.mxu0 %v308
  %695 = vmatpush.msra.mxu0 %v301
  %696 = vmatpush.msra.mxu0 %v294
  %697 = vmatpush.msra.mxu0 %v287
  %698 = vmatpush.msra.mxu0 %v280
  %699 = vmatpush.msra.mxu0 %v273
  %700 = vmatpush.msra.mxu0 %v266
  %701 = vmatpush.msra.mxu0 %v259
  %702 = vmatmul.f32.gmra.mxu0 %v19
  %v703 = vpop.f32.mrf.mxu0
  %v704 = vadd.f32 %v675, %v703
  %705 = vmatmul.f32.gmra.mxu0 %v23
  %v706 = vpop.f32.mrf.mxu0
  %v707 = vadd.f32 %v678, %v706
  %708 = vmatmul.f32.gmra.mxu0 %v27
  %v709 = vpop.f32.mrf.mxu0
  %v710 = vadd.f32 %v681, %v709
  %711 = vmatmul.f32.gmra.mxu0 %v31
  %v712 = vpop.f32.mrf.mxu0
  %v713 = vadd.f32 %v684, %v712
  %714 = vdwg.mxu0
  %715 = vmatpush.msra.mxu0 0.0
  %716 = vmatpush.msra.mxu0 0.0
  %717 = vmatpush.msra.mxu0 0.0
  %718 = vmatpush.msra.mxu0 0.0
  %719 = vmatpush.msra.mxu0 0.0
  %720 = vmatpush.msra.mxu0 0.0
  %721 = vmatpush.msra.mxu0 0.0
  %722 = vmatpush.msra.mxu0 0.0
  %723 = vmatpush.msra.mxu0 0.0
  %724 = vmatpush.msra.mxu0 0.0
  %725 = vmatpush.msra.mxu0 0.0
  %726 = vmatpush.msra.mxu0 0.0
  %727 = vmatpush.msra.mxu0 0.0
  %728 = vmatpush.msra.mxu0 0.0
  %729 = vmatpush.msra.mxu0 %v378
  %730 = vmatpush.msra.mxu0 %v371
  %731 = vmatmul.f32.gmra.mxu0 %v385
  %v732 = vpop.f32.mrf.mxu0
  %v733 = vadd.f32 %v704, %v732
  %734 = vmatmul.f32.gmra.mxu0 %v388
  %v735 = vpop.f32.mrf.mxu0
  %v736 = vadd.f32 %v707, %v735
  %737 = vmatmul.f32.gmra.mxu0 %v391
  %v738 = vpop.f32.mrf.mxu0
  %v739 = vadd.f32 %v710, %v738
  %740 = vmatmul.f32.gmra.mxu0 %v394
  %v741 = vpop.f32.mrf.mxu0
  %v742 = vadd.f32 %v713, %v741
  %743 = vdwg.mxu0
  %744 = vmatpush.msra.mxu0 %v141
  %745 = vmatpush.msra.mxu0 %v134
  %746 = vmatpush.msra.mxu0 %v127
  %747 = vmatpush.msra.mxu0 %v120
  %748 = vmatpush.msra.mxu0 %v113
  %749 = vmatpush.msra.mxu0 %v106
  %750 = vmatpush.msra.mxu0 %v99
  %751 = vmatpush.msra.mxu0 %v92
  %752 = vmatpush.msra.mxu0 %v85
  %753 = vmatpush.msra.mxu0 %v78
  %754 = vmatpush.msra.mxu0 %v71
  %755 = vmatpush.msra.mxu0 %v64
  %756 = vmatpush.msra.mxu0 %v57
  %757 = vmatpush.msra.mxu0 %v50
  %758 = vmatpush.msra.mxu0 %v43
  %759 = vmatpush.msra.mxu0 %v36
  %760 = vmatmul.f32.gmra.mxu0 %v17
  %v761 = vpop.f32.mrf.mxu0
  %v762 = vadd.f32 0.0, %v761
  %763 = vmatmul.f32.gmra.mxu0 %v21
  %v764 = vpop.f32.mrf.mxu0
  %v765 = vadd.f32 0.0, %v764
  %766 = vmatmul.f32.gmra.mxu0 %v25
  %v767 = vpop.f32.mrf.mxu0
  %v768 = vadd.f32 0.0, %v767
  %769 = vmatmul.f32.gmra.mxu0 %v29
  %v770 = vpop.f32.mrf.mxu0
  %v771 = vadd.f32 0.0, %v770
  %772 = vdwg.mxu0
  %773 = vmatpush.msra.mxu0 %v253
  %774 = vmatpush.msra.mxu0 %v246
  %775 = vmatpush.msra.mxu0 %v239
  %776 = vmatpush.msra.mxu0 %v232
  %777 = vmatpush.msra.mxu0 %v225
  %778 = vmatpush.msra.mxu0 %v218
  %779 = vmatpush.msra.mxu0 %v211
  %780 = vmatpush.msra.mxu0 %v204
  %781 = vmatpush.msra.mxu0 %v197
  %782 = vmatpush.msra.mxu0 %v190
  %783 = vmatpush.msra.mxu0 %v183
  %784 = vmatpush.msra.mxu0 %v176
  %785 = vmatpush.msra.mxu0 %v169
  %786 = vmatpush.msra.mxu0 %v162
  %787 = vmatpush.msra.mxu0 %v155
  %788 = vmatpush.msra.mxu0 %v148
  %789 = vmatmul.f32.gmra.mxu0 %v18
  %v790 = vpop.f32.mrf.mxu0
  %v791 = vadd.f32 %v762, %v790
  %792 = vmatmul.f32.gmra.mxu0 %v22
  %v793 = vpop.f32.mrf.mxu0
  %v794 = vadd.f32 %v765, %v793
  %795 = vmatmul.f32.gmra.mxu0 %v26
  %v796 = vpop.f32.mrf.mxu0
  %v797 = vadd.f32 %v768, %v796
  %798 = vmatmul.f32.gmra.mxu0 %v30
  %v799 = vpop.f32.mrf.mxu0
  %v800 = vadd.f32 %v771, %v799
  %801 = vdwg.mxu0
  %802 = vmatpush.msra.mxu0 %v365
  %803 = vmatpush.msra.mxu0 %v358
  %804 = vmatpush.msra.mxu0 %v351
  %805 = vmatpush.msra.mxu0 %v344
  %806 = vmatpush.msra.mxu0 %v337
  %807 = vmatpush.msra.mxu0 %v330
  %808 = vmatpush.msra.mxu0 %v323
  %809 = vmatpush.msra.mxu0 %v316
  %810 = vmatpush.msra.mxu0 %v309
  %811 = vmatpush.msra.mxu0 %v302
  %812 = vmatpush.msra.mxu0 %v295
  %813 = vmatpush.msra.mxu0 %v288
  %814 = vmatpush.msra.mxu0 %v281
  %815 = vmatpush.msra.mxu0 %v274
  %816 = vmatpush.msra.mxu0 %v267
  %817 = vmatpush.msra.mxu0 %v260
  %818 = vmatmul.f32.gmra.mxu0 %v19
  %v819 = vpop.f32.mrf.mxu0
  %v820 = vadd.f32 %v791, %v819
  %821 = vmatmul.f32.gmra.mxu0 %v23
  %v822 = vpop.f32.mrf.mxu0
  %v823 = vadd.f32 %v794, %v822
  %824 = vmatmul.f32.gmra.mxu0 %v27
  %v825 = vpop.f32.mrf.mxu0
  %v826 = vadd.f32 %v797, %v825
  %827 = vmatmul.f32.gmra.mxu0 %v31
  %v828 = vpop.f32.mrf.mxu0
  %v829 = vadd.f32 %v800, %v828
  %830 = vdwg.mxu0
  %831 = vmatpush.msra.mxu0 0.0
  %832 = vmatpush.msra.mxu0 0.0
  %833 = vmatpush.msra.mxu0 0.0
  %834 = vmatpush.msra.mxu0 0.0
  %835 = vmatpush.msra.mxu0 0.0
  %836 = vmatpush.msra.mxu0 0.0
  %837 = vmatpush.msra.mxu0 0.0
  %838 = vmatpush.msra.mxu0 0.0
  %839 = vmatpush.msra.mxu0 0.0
  %840 = vmatpush.msra.mxu0 0.0
  %841 = vmatpush.msra.mxu0 0.0
  %842 = vmatpush.msra.mxu0 0.0
  %843 = vmatpush.msra.mxu0 0.0
  %844 = vmatpush.msra.mxu0 0.0
  %845 = vmatpush.msra.mxu0 %v379
  %846 = vmatpush.msra.mxu0 %v372
  %847 = vmatmul.f32.gmra.mxu0 %v385
  %v848 = vpop.f32.mrf.mxu0
  %v849 = vadd.f32 %v820, %v848
  %850 = vmatmul.f32.gmra.mxu0 %v388
  %v851 = vpop.f32.mrf.mxu0
  %v852 = vadd.f32 %v823, %v851
  %853 = vmatmul.f32.gmra.mxu0 %v391
  %v854 = vpop.f32.mrf.mxu0
  %v855 = vadd.f32 %v826, %v854
  %856 = vmatmul.f32.gmra.mxu0 %v394
  %v857 = vpop.f32.mrf.mxu0
  %v858 = vadd.f32 %v829, %v857
  %859 = vdwg.mxu0
  %860 = vmatpush.msra.mxu0 %v142
  %861 = vmatpush.msra.mxu0 %v135
  %862 = vmatpush.msra.mxu0 %v128
  %863 = vmatpush.msra.mxu0 %v121
  %864 = vmatpush.msra.mxu0 %v114
  %865 = vmatpush.msra.mxu0 %v107
  %866 = vmatpush.msra.mxu0 %v100
  %867 = vmatpush.msra.mxu0 %v93
  %868 = vmatpush.msra.mxu0 %v86
  %869 = vmatpush.msra.mxu0 %v79
  %870 = vmatpush.msra.mxu0 %v72
  %871 = vmatpush.msra.mxu0 %v65
  %872 = vmatpush.msra.mxu0 %v58
  %873 = vmatpush.msra.mxu0 %v51
  %874 = vmatpush.msra.mxu0 %v44
  %875 = vmatpush.msra.mxu0 %v37
  %876 = vmatmul.f32.gmra.mxu0 %v17
  %v877 = vpop.f32.mrf.mxu0
  %v878 = vadd.f32 0.0, %v877
  %879 = vmatmul.f32.gmra.mxu0 %v21
  %v880 = vpop.f32.mrf.mxu0
  %v881 = vadd.f32 0.0, %v880
  %882 = vmatmul.f32.gmra.mxu0 %v25
  %v883 = vpop.f32.mrf.mxu0
  %v884 = vadd.f32 0.0, %v883
  %885 = vmatmul.f32.gmra.mxu0 %v29
  %v886 = vpop.f32.mrf.mxu0
  %v887 = vadd.f32 0.0, %v886
  %888 = vdwg.mxu0
  %889 = vmatpush.msra.mxu0 %v254
  %890 = vmatpush.msra.mxu0 %v247
  %891 = vmatpush.msra.mxu0 %v240
  %892 = vmatpush.msra.mxu0 %v233
  %893 = vmatpush.msra.mxu0 %v226
  %894 = vmatpush.msra.mxu0 %v219
  %895 = vmatpush.msra.mxu0 %v212
  %896 = vmatpush.msra.mxu0 %v205
  %897 = vmatpush.msra.mxu0 %v198
  %898 = vmatpush.msra.mxu0 %v191
  %899 = vmatpush.msra.mxu0 %v184
  %900 = vmatpush.msra.mxu0 %v177
  %901 = vmatpush.msra.mxu0 %v170
  %902 = vmatpush.msra.mxu0 %v163
  %903 = vmatpush.msra.mxu0 %v156
  %904 = vmatpush.msra.mxu0 %v149
  %905 = vmatmul.f32.gmra.mxu0 %v18
  %v906 = vpop.f32.mrf.mxu0
  %v907 = vadd.f32 %v878, %v906
  %908 = vmatmul.f32.gmra.mxu0 %v22
  %v909 = vpop.f32.mrf.mxu0
  %v910 = vadd.f32 %v881, %v909
  %911 = vmatmul.f32.gmra.mxu0 %v26
  %v912 = vpop.f32.mrf.mxu0
  %v913 = vadd.f32 %v884, %v912
  %914 = vmatmul.f32.gmra.mxu0 %v30
  %v915 = vpop.f32.mrf.mxu0
  %v916 = vadd.f32 %v887, %v915
  %917 = vdwg.mxu0
  %918 = vmatpush.msra.mxu0 %v366
  %919 = vmatpush.msra.mxu0 %v359
  %920 = vmatpush.msra.mxu0 %v352
  %921 = vmatpush.msra.mxu0 %v345
  %922 = vmatpush.msra.mxu0 %v338
  %923 = vmatpush.msra.mxu0 %v331
  %924 = vmatpush.msra.mxu0 %v324
  %925 = vmatpush.msra.mxu0 %v317
  %926 = vmatpush.msra.mxu0 %v310
  %927 = vmatpush.msra.mxu0 %v303
  %928 = vmatpush.msra.mxu0 %v296
  %929 = vmatpush.msra.mxu0 %v289
  %930 = vmatpush.msra.mxu0 %v282
  %931 = vmatpush.msra.mxu0 %v275
  %932 = vmatpush.msra.mxu0 %v268
  %933 = vmatpush.msra.mxu0 %v261
  %934 = vmatmul.f32.gmra.mxu0 %v19
  %v935 = vpop.f32.mrf.mxu0
  %v936 = vadd.f32 %v907, %v935
  %937 = vmatmul.f32.gmra.mxu0 %v23
  %v938 = vpop.f32.mrf.mxu0
  %v939 = vadd.f32 %v910, %v938
  %940 = vmatmul.f32.gmra.mxu0 %v27
  %v941 = vpop.f32.mrf.mxu0
  %v942 = vadd.f32 %v913, %v941
  %943 = vmatmul.f32.gmra.mxu0 %v31
  %v944 = vpop.f32.mrf.mxu0
  %v945 = vadd.f32 %v916, %v944
  %946 = vdwg.mxu0
  %947 = vmatpush.msra.mxu0 0.0
  %948 = vmatpush.msra.mxu0 0.0
  %949 = vmatpush.msra.mxu0 0.0
  %950 = vmatpush.msra.mxu0 0.0
  %951 = vmatpush.msra.mxu0 0.0
  %952 = vmatpush.msra.mxu0 0.0
  %953 = vmatpush.msra.mxu0 0.0
  %954 = vmatpush.msra.mxu0 0.0
  %955 = vmatpush.msra.mxu0 0.0
  %956 = vmatpush.msra.mxu0 0.0
  %957 = vmatpush.msra.mxu0 0.0
  %958 = vmatpush.msra.mxu0 0.0
  %959 = vmatpush.msra.mxu0 0.0
  %960 = vmatpush.msra.mxu0 0.0
  %961 = vmatpush.msra.mxu0 %v380
  %962 = vmatpush.msra.mxu0 %v373
  %963 = vmatmul.f32.gmra.mxu0 %v385
  %v964 = vpop.f32.mrf.mxu0
  %v965 = vadd.f32 %v936, %v964
  %966 = vmatmul.f32.gmra.mxu0 %v388
  %v967 = vpop.f32.mrf.mxu0
  %v968 = vadd.f32 %v939, %v967
  %969 = vmatmul.f32.gmra.mxu0 %v391
  %v970 = vpop.f32.mrf.mxu0
  %v971 = vadd.f32 %v942, %v970
  %972 = vmatmul.f32.gmra.mxu0 %v394
  %v973 = vpop.f32.mrf.mxu0
  %v974 = vadd.f32 %v945, %v973
  %975 = vdwg.mxu0
  %976 = vmatpush.msra.mxu0 %v143
  %977 = vmatpush.msra.mxu0 %v136
  %978 = vmatpush.msra.mxu0 %v129
  %979 = vmatpush.msra.mxu0 %v122
  %980 = vmatpush.msra.mxu0 %v115
  %981 = vmatpush.msra.mxu0 %v108
  %982 = vmatpush.msra.mxu0 %v101
  %983 = vmatpush.msra.mxu0 %v94
  %984 = vmatpush.msra.mxu0 %v87
  %985 = vmatpush.msra.mxu0 %v80
  %986 = vmatpush.msra.mxu0 %v73
  %987 = vmatpush.msra.mxu0 %v66
  %988 = vmatpush.msra.mxu0 %v59
  %989 = vmatpush.msra.mxu0 %v52
  %990 = vmatpush.msra.mxu0 %v45
  %991 = vmatpush.msra.mxu0 %v38
  %992 = vmatmul.f32.gmra.mxu0 %v17
  %v993 = vpop.f32.mrf.mxu0
  %v994 = vadd.f32 0.0, %v993
  %995 = vmatmul.f32.gmra.mxu0 %v21
  %v996 = vpop.f32.mrf.mxu0
  %v997 = vadd.f32 0.0, %v996
  %998 = vmatmul.f32.gmra.mxu0 %v25
  %v999 = vpop.f32.mrf.mxu0
  %v1000 = vadd.f32 0.0, %v999
  %1001 = vmatmul.f32.gmra.mxu0 %v29
  %v1002 = vpop.f32.mrf.mxu0
  %v1003 = vadd.f32 0.0, %v1002
  %1004 = vdwg.mxu0
  %1005 = vmatpush.msra.mxu0 %v255
  %1006 = vmatpush.msra.mxu0 %v248
  %1007 = vmatpush.msra.mxu0 %v241
  %1008 = vmatpush.msra.mxu0 %v234
  %1009 = vmatpush.msra.mxu0 %v227
  %1010 = vmatpush.msra.mxu0 %v220
  %1011 = vmatpush.msra.mxu0 %v213
  %1012 = vmatpush.msra.mxu0 %v206
  %1013 = vmatpush.msra.mxu0 %v199
  %1014 = vmatpush.msra.mxu0 %v192
  %1015 = vmatpush.msra.mxu0 %v185
  %1016 = vmatpush.msra.mxu0 %v178
  %1017 = vmatpush.msra.mxu0 %v171
  %1018 = vmatpush.msra.mxu0 %v164
  %1019 = vmatpush.msra.mxu0 %v157
  %1020 = vmatpush.msra.mxu0 %v150
  %1021 = vmatmul.f32.gmra.mxu0 %v18
  %v1022 = vpop.f32.mrf.mxu0
  %v1023 = vadd.f32 %v994, %v1022
  %1024 = vmatmul.f32.gmra.mxu0 %v22
  %v1025 = vpop.f32.mrf.mxu0
  %v1026 = vadd.f32 %v997, %v1025
  %1027 = vmatmul.f32.gmra.mxu0 %v26
  %v1028 = vpop.f32.mrf.mxu0
  %v1029 = vadd.f32 %v1000, %v1028
  %1030 = vmatmul.f32.gmra.mxu0 %v30
  %v1031 = vpop.f32.mrf.mxu0
  %v1032 = vadd.f32 %v1003, %v1031
  %1033 = vdwg.mxu0
  %1034 = vmatpush.msra.mxu0 %v367
  %1035 = vmatpush.msra.mxu0 %v360
  %1036 = vmatpush.msra.mxu0 %v353
  %1037 = vmatpush.msra.mxu0 %v346
  %1038 = vmatpush.msra.mxu0 %v339
  %1039 = vmatpush.msra.mxu0 %v332
  %1040 = vmatpush.msra.mxu0 %v325
  %1041 = vmatpush.msra.mxu0 %v318
  %1042 = vmatpush.msra.mxu0 %v311
  %1043 = vmatpush.msra.mxu0 %v304
  %1044 = vmatpush.msra.mxu0 %v297
  %1045 = vmatpush.msra.mxu0 %v290
  %1046 = vmatpush.msra.mxu0 %v283
  %1047 = vmatpush.msra.mxu0 %v276
  %1048 = vmatpush.msra.mxu0 %v269
  %1049 = vmatpush.msra.mxu0 %v262
  %1050 = vmatmul.f32.gmra.mxu0 %v19
  %v1051 = vpop.f32.mrf.mxu0
  %v1052 = vadd.f32 %v1023, %v1051
  %1053 = vmatmul.f32.gmra.mxu0 %v23
  %v1054 = vpop.f32.mrf.mxu0
  %v1055 = vadd.f32 %v1026, %v1054
  %1056 = vmatmul.f32.gmra.mxu0 %v27
  %v1057 = vpop.f32.mrf.mxu0
  %v1058 = vadd.f32 %v1029, %v1057
  %1059 = vmatmul.f32.gmra.mxu0 %v31
  %v1060 = vpop.f32.mrf.mxu0
  %v1061 = vadd.f32 %v1032, %v1060
  %1062 = vdwg.mxu0
  %1063 = vmatpush.msra.mxu0 0.0
  %1064 = vmatpush.msra.mxu0 0.0
  %1065 = vmatpush.msra.mxu0 0.0
  %1066 = vmatpush.msra.mxu0 0.0
  %1067 = vmatpush.msra.mxu0 0.0
  %1068 = vmatpush.msra.mxu0 0.0
  %1069 = vmatpush.msra.mxu0 0.0
  %1070 = vmatpush.msra.mxu0 0.0
  %1071 = vmatpush.msra.mxu0 0.0
  %1072 = vmatpush.msra.mxu0 0.0
  %1073 = vmatpush.msra.mxu0 0.0
  %1074 = vmatpush.msra.mxu0 0.0
  %1075 = vmatpush.msra.mxu0 0.0
  %1076 = vmatpush.msra.mxu0 0.0
  %1077 = vmatpush.msra.mxu0 %v381
  %1078 = vmatpush.msra.mxu0 %v374
  %1079 = vmatmul.f32.gmra.mxu0 %v385
  %v1080 = vpop.f32.mrf.mxu0
  %v1081 = vadd.f32 %v1052, %v1080
  %1082 = vmatmul.f32.gmra.mxu0 %v388
  %v1083 = vpop.f32.mrf.mxu0
  %v1084 = vadd.f32 %v1055, %v1083
  %1085 = vmatmul.f32.gmra.mxu0 %v391
  %v1086 = vpop.f32.mrf.mxu0
  %v1087 = vadd.f32 %v1058, %v1086
  %1088 = vmatmul.f32.gmra.mxu0 %v394
  %v1089 = vpop.f32.mrf.mxu0
  %v1090 = vadd.f32 %v1061, %v1089
  %1091 = vdwg.mxu0
  %1092 = vmatpush.msra.mxu0 %v144
  %1093 = vmatpush.msra.mxu0 %v137
  %1094 = vmatpush.msra.mxu0 %v130
  %1095 = vmatpush.msra.mxu0 %v123
  %1096 = vmatpush.msra.mxu0 %v116
  %1097 = vmatpush.msra.mxu0 %v109
  %1098 = vmatpush.msra.mxu0 %v102
  %1099 = vmatpush.msra.mxu0 %v95
  %1100 = vmatpush.msra.mxu0 %v88
  %1101 = vmatpush.msra.mxu0 %v81
  %1102 = vmatpush.msra.mxu0 %v74
  %1103 = vmatpush.msra.mxu0 %v67
  %1104 = vmatpush.msra.mxu0 %v60
  %1105 = vmatpush.msra.mxu0 %v53
  %1106 = vmatpush.msra.mxu0 %v46
  %1107 = vmatpush.msra.mxu0 %v39
  %1108 = vmatmul.f32.gmra.mxu0 %v17
  %v1109 = vpop.f32.mrf.mxu0
  %v1110 = vadd.f32 0.0, %v1109
  %1111 = vmatmul.f32.gmra.mxu0 %v21
  %v1112 = vpop.f32.mrf.mxu0
  %v1113 = vadd.f32 0.0, %v1112
  %1114 = vmatmul.f32.gmra.mxu0 %v25
  %v1115 = vpop.f32.mrf.mxu0
  %v1116 = vadd.f32 0.0, %v1115
  %1117 = vmatmul.f32.gmra.mxu0 %v29
  %v1118 = vpop.f32.mrf.mxu0
  %v1119 = vadd.f32 0.0, %v1118
  %1120 = vdwg.mxu0
  %1121 = vmatpush.msra.mxu0 %v256
  %1122 = vmatpush.msra.mxu0 %v249
  %1123 = vmatpush.msra.mxu0 %v242
  %1124 = vmatpush.msra.mxu0 %v235
  %1125 = vmatpush.msra.mxu0 %v228
  %1126 = vmatpush.msra.mxu0 %v221
  %1127 = vmatpush.msra.mxu0 %v214
  %1128 = vmatpush.msra.mxu0 %v207
  %1129 = vmatpush.msra.mxu0 %v200
  %1130 = vmatpush.msra.mxu0 %v193
  %1131 = vmatpush.msra.mxu0 %v186
  %1132 = vmatpush.msra.mxu0 %v179
  %1133 = vmatpush.msra.mxu0 %v172
  %1134 = vmatpush.msra.mxu0 %v165
  %1135 = vmatpush.msra.mxu0 %v158
  %1136 = vmatpush.msra.mxu0 %v151
  %1137 = vmatmul.f32.gmra.mxu0 %v18
  %v1138 = vpop.f32.mrf.mxu0
  %v1139 = vadd.f32 %v1110, %v1138
  %1140 = vmatmul.f32.gmra.mxu0 %v22
  %v1141 = vpop.f32.mrf.mxu0
  %v1142 = vadd.f32 %v1113, %v1141
  %1143 = vmatmul.f32.gmra.mxu0 %v26
  %v1144 = vpop.f32.mrf.mxu0
  %v1145 = vadd.f32 %v1116, %v1144
  %1146 = vmatmul.f32.gmra.mxu0 %v30
  %v1147 = vpop.f32.mrf.mxu0
  %v1148 = vadd.f32 %v1119, %v1147
  %1149 = vdwg.mxu0
  %1150 = vmatpush.msra.mxu0 %v368
  %1151 = vmatpush.msra.mxu0 %v361
  %1152 = vmatpush.msra.mxu0 %v354
  %1153 = vmatpush.msra.mxu0 %v347
  %1154 = vmatpush.msra.mxu0 %v340
  %1155 = vmatpush.msra.mxu0 %v333
  %1156 = vmatpush.msra.mxu0 %v326
  %1157 = vmatpush.msra.mxu0 %v319
  %1158 = vmatpush.msra.mxu0 %v312
  %1159 = vmatpush.msra.mxu0 %v305
  %1160 = vmatpush.msra.mxu0 %v298
  %1161 = vmatpush.msra.mxu0 %v291
  %1162 = vmatpush.msra.mxu0 %v284
  %1163 = vmatpush.msra.mxu0 %v277
  %1164 = vmatpush.msra.mxu0 %v270
  %1165 = vmatpush.msra.mxu0 %v263
  %1166 = vmatmul.f32.gmra.mxu0 %v19
  %v1167 = vpop.f32.mrf.mxu0
  %v1168 = vadd.f32 %v1139, %v1167
  %1169 = vmatmul.f32.gmra.mxu0 %v23
  %v1170 = vpop.f32.mrf.mxu0
  %v1171 = vadd.f32 %v1142, %v1170
  %1172 = vmatmul.f32.gmra.mxu0 %v27
  %v1173 = vpop.f32.mrf.mxu0
  %v1174 = vadd.f32 %v1145, %v1173
  %1175 = vmatmul.f32.gmra.mxu0 %v31
  %v1176 = vpop.f32.mrf.mxu0
  %v1177 = vadd.f32 %v1148, %v1176
  %1178 = vdwg.mxu0
  %1179 = vmatpush.msra.mxu0 0.0
  %1180 = vmatpush.msra.mxu0 0.0
  %1181 = vmatpush.msra.mxu0 0.0
  %1182 = vmatpush.msra.mxu0 0.0
  %1183 = vmatpush.msra.mxu0 0.0
  %1184 = vmatpush.msra.mxu0 0.0
  %1185 = vmatpush.msra.mxu0 0.0
  %1186 = vmatpush.msra.mxu0 0.0
  %1187 = vmatpush.msra.mxu0 0.0
  %1188 = vmatpush.msra.mxu0 0.0
  %1189 = vmatpush.msra.mxu0 0.0
  %1190 = vmatpush.msra.mxu0 0.0
  %1191 = vmatpush.msra.mxu0 0.0
  %1192 = vmatpush.msra.mxu0 0.0
  %1193 = vmatpush.msra.mxu0 %v382
  %1194 = vmatpush.msra.mxu0 %v375
  %1195 = vmatmul.f32.gmra.mxu0 %v385
  %v1196 = vpop.f32.mrf.mxu0
  %v1197 = vadd.f32 %v1168, %v1196
  %1198 = vmatmul.f32.gmra.mxu0 %v388
  %v1199 = vpop.f32.mrf.mxu0
  %v1200 = vadd.f32 %v1171, %v1199
  %1201 = vmatmul.f32.gmra.mxu0 %v391
  %v1202 = vpop.f32.mrf.mxu0
  %v1203 = vadd.f32 %v1174, %v1202
  %1204 = vmatmul.f32.gmra.mxu0 %v394
  %v1205 = vpop.f32.mrf.mxu0
  %v1206 = vadd.f32 %v1177, %v1205
  %1207 = vdwg.mxu0
  %v1208 = vadd.f32 %v501, %v617
  %v1209 = vadd.f32 %v1208, %v733
  %v1210 = vadd.f32 %v1209, %v849
  %v1211 = vadd.f32 %v1210, %v965
  %v1212 = vadd.f32 %v1211, %v1081
  %vm1213 = vcmask 932864
  %v1214 = vsel %vm1213, %v1197, 0.0
  %v1215 = vadd.f32 %v1212, %v1214
  %1216 = vadd.xlane.f32.xlu0 %v1215
  %v1217 = vpop.xlane.xlu0 %1216
  %v1218 = vadd.f32 %v504, %v620
  %v1219 = vadd.f32 %v1218, %v736
  %v1220 = vadd.f32 %v1219, %v852
  %v1221 = vadd.f32 %v1220, %v968
  %v1222 = vadd.f32 %v1221, %v1084
  %v1223 = vsel %vm1213, %v1200, 0.0
  %v1224 = vadd.f32 %v1222, %v1223
  %1225 = vadd.xlane.f32.xlu0 %v1224
  %v1226 = vpop.xlane.xlu0 %1225
  %v1227 = vadd.f32 %v507, %v623
  %v1228 = vadd.f32 %v1227, %v739
  %v1229 = vadd.f32 %v1228, %v855
  %v1230 = vadd.f32 %v1229, %v971
  %v1231 = vadd.f32 %v1230, %v1087
  %v1232 = vsel %vm1213, %v1203, 0.0
  %v1233 = vadd.f32 %v1231, %v1232
  %1234 = vadd.xlane.f32.xlu0 %v1233
  %v1235 = vpop.xlane.xlu0 %1234
  %v1236 = vadd.f32 %v510, %v626
  %v1237 = vadd.f32 %v1236, %v742
  %v1238 = vadd.f32 %v1237, %v858
  %v1239 = vadd.f32 %v1238, %v974
  %v1240 = vadd.f32 %v1239, %v1090
  %v1241 = vsel %vm1213, %v1206, 0.0
  %v1242 = vadd.f32 %v1240, %v1241
  %1243 = vadd.xlane.f32.xlu0 %v1242
  %v1244 = vpop.xlane.xlu0 %1243
  %v1245 = vrcp.pop 882.0
  %v1246 = vmul.f32 882.0, %v1245
  %v1247 = vsub.f32 1.0, %v1246
  %v1248 = vmul.f32 %v1245, %v1247
  %v1249 = vadd.f32 %v1245, %v1248
  %vm1250 = vweird.f32 %v1245
  %v1251 = vsel %vm1250, %v1245, %v1249
  %v1252 = vmul.f32 %v1217, %v1251
  %v1253 = vmul.f32 %v1226, %v1251
  %v1254 = vmul.f32 %v1235, %v1251
  %v1255 = vmul.f32 %v1244, %v1251
  %v1256 = vsub.f32 %v501, %v1252
  %v1257 = vsub.f32 %v617, %v1252
  %v1258 = vsub.f32 %v733, %v1252
  %v1259 = vsub.f32 %v849, %v1252
  %v1260 = vsub.f32 %v965, %v1252
  %v1261 = vsub.f32 %v1081, %v1252
  %v1262 = vsub.f32 %v1197, %v1252
  %v1263 = vsub.f32 %v504, %v1253
  %v1264 = vsub.f32 %v620, %v1253
  %v1265 = vsub.f32 %v736, %v1253
  %v1266 = vsub.f32 %v852, %v1253
  %v1267 = vsub.f32 %v968, %v1253
  %v1268 = vsub.f32 %v1084, %v1253
  %v1269 = vsub.f32 %v1200, %v1253
  %v1270 = vsub.f32 %v507, %v1254
  %v1271 = vsub.f32 %v623, %v1254
  %v1272 = vsub.f32 %v739, %v1254
  %v1273 = vsub.f32 %v855, %v1254
  %v1274 = vsub.f32 %v971, %v1254
  %v1275 = vsub.f32 %v1087, %v1254
  %v1276 = vsub.f32 %v1203, %v1254
  %v1277 = vsub.f32 %v510, %v1255
  %v1278 = vsub.f32 %v626, %v1255
  %v1279 = vsub.f32 %v742, %v1255
  %v1280 = vsub.f32 %v858, %v1255
  %v1281 = vsub.f32 %v974, %v1255
  %v1282 = vsub.f32 %v1090, %v1255
  %v1283 = vsub.f32 %v1206, %v1255
  %v1284 = vmul.f32 %v1256, %v1256
  %v1285 = vmul.f32 %v1257, %v1257
  %v1286 = vmul.f32 %v1258, %v1258
  %v1287 = vmul.f32 %v1259, %v1259
  %v1288 = vmul.f32 %v1260, %v1260
  %v1289 = vmul.f32 %v1261, %v1261
  %v1290 = vmul.f32 %v1262, %v1262
  %v1291 = vmul.f32 %v1263, %v1263
  %v1292 = vmul.f32 %v1264, %v1264
  %v1293 = vmul.f32 %v1265, %v1265
  %v1294 = vmul.f32 %v1266, %v1266
  %v1295 = vmul.f32 %v1267, %v1267
  %v1296 = vmul.f32 %v1268, %v1268
  %v1297 = vmul.f32 %v1269, %v1269
  %v1298 = vmul.f32 %v1270, %v1270
  %v1299 = vmul.f32 %v1271, %v1271
  %v1300 = vmul.f32 %v1272, %v1272
  %v1301 = vmul.f32 %v1273, %v1273
  %v1302 = vmul.f32 %v1274, %v1274
  %v1303 = vmul.f32 %v1275, %v1275
  %v1304 = vmul.f32 %v1276, %v1276
  %v1305 = vmul.f32 %v1277, %v1277
  %v1306 = vmul.f32 %v1278, %v1278
  %v1307 = vmul.f32 %v1279, %v1279
  %v1308 = vmul.f32 %v1280, %v1280
  %v1309 = vmul.f32 %v1281, %v1281
  %v1310 = vmul.f32 %v1282, %v1282
  %v1311 = vmul.f32 %v1283, %v1283
  %v1312 = vadd.f32 %v1284, %v1285
  %v1313 = vadd.f32 %v1312, %v1286
  %v1314 = vadd.f32 %v1313, %v1287
  %v1315 = vadd.f32 %v1314, %v1288
  %v1316 = vadd.f32 %v1315, %v1289
  %v1317 = vsel %vm1213, %v1290, 0.0
  %v1318 = vadd.f32 %v1316, %v1317
  %1319 = vadd.xlane.f32.xlu0 %v1318
  %v1320 = vpop.xlane.xlu0 %1319
  %v1321 = vadd.f32 %v1291, %v1292
  %v1322 = vadd.f32 %v1321, %v1293
  %v1323 = vadd.f32 %v1322, %v1294
  %v1324 = vadd.f32 %v1323, %v1295
  %v1325 = vadd.f32 %v1324, %v1296
  %v1326 = vsel %vm1213, %v1297, 0.0
  %v1327 = vadd.f32 %v1325, %v1326
  %1328 = vadd.xlane.f32.xlu0 %v1327
  %v1329 = vpop.xlane.xlu0 %1328
  %v1330 = vadd.f32 %v1298, %v1299
  %v1331 = vadd.f32 %v1330, %v1300
  %v1332 = vadd.f32 %v1331, %v1301
  %v1333 = vadd.f32 %v1332, %v1302
  %v1334 = vadd.f32 %v1333, %v1303
  %v1335 = vsel %vm1213, %v1304, 0.0
  %v1336 = vadd.f32 %v1334, %v1335
  %1337 = vadd.xlane.f32.xlu0 %v1336
  %v1338 = vpop.xlane.xlu0 %1337
  %v1339 = vadd.f32 %v1305, %v1306
  %v1340 = vadd.f32 %v1339, %v1307
  %v1341 = vadd.f32 %v1340, %v1308
  %v1342 = vadd.f32 %v1341, %v1309
  %v1343 = vadd.f32 %v1342, %v1310
  %v1344 = vsel %vm1213, %v1311, 0.0
  %v1345 = vadd.f32 %v1343, %v1344
  %1346 = vadd.xlane.f32.xlu0 %v1345
  %v1347 = vpop.xlane.xlu0 %1346
  %v1348 = vmul.f32 %v1320, %v1251
  %v1349 = vmul.f32 %v1329, %v1251
  %v1350 = vmul.f32 %v1338, %v1251
  %v1351 = vmul.f32 %v1347, %v1251
  %v1352 = vld [vmem:[%s2] sm:$0xff]
  %v1353 = vld [vmem:[%s2 + $0x8] sm:$0xff]
  %v1354 = vld [vmem:[%s2 + $0x10] sm:$0xff]
  %v1355 = vld [vmem:[%s2 + $0x18] sm:$0xff]
  %v1356 = vadd.f32 %v1348, 1e-05
  %v1357 = vadd.f32 %v1349, 1e-05
  %v1358 = vadd.f32 %v1350, 1e-05
  %v1359 = vadd.f32 %v1351, 1e-05
  %v1360 = vrsqrt.pop %v1356
  %v1361 = vmul.f32 %v1360, %v1356
  %v1362 = vmul.f32 %v1361, %v1360
  %v1363 = vmul.f32 0.5, %v1362
  %v1364 = vsub.f32 1.5, %v1363
  %v1365 = vmul.f32 %v1360, %v1364
  %vm1366 = vweird.f32 %v1356
  %vm1367 = vweird.f32 %v1360
  %vm1368 = vmor %vm1366, %vm1367
  %v1369 = vsel %vm1368, %v1360, %v1365
  %v1370 = vrsqrt.pop %v1357
  %v1371 = vmul.f32 %v1370, %v1357
  %v1372 = vmul.f32 %v1371, %v1370
  %v1373 = vmul.f32 0.5, %v1372
  %v1374 = vsub.f32 1.5, %v1373
  %v1375 = vmul.f32 %v1370, %v1374
  %vm1376 = vweird.f32 %v1357
  %vm1377 = vweird.f32 %v1370
  %vm1378 = vmor %vm1376, %vm1377
  %v1379 = vsel %vm1378, %v1370, %v1375
  %v1380 = vrsqrt.pop %v1358
  %v1381 = vmul.f32 %v1380, %v1358
  %v1382 = vmul.f32 %v1381, %v1380
  %v1383 = vmul.f32 0.5, %v1382
  %v1384 = vsub.f32 1.5, %v1383
  %v1385 = vmul.f32 %v1380, %v1384
  %vm1386 = vweird.f32 %v1358
  %vm1387 = vweird.f32 %v1380
  %vm1388 = vmor %vm1386, %vm1387
  %v1389 = vsel %vm1388, %v1380, %v1385
  %v1390 = vrsqrt.pop %v1359
  %v1391 = vmul.f32 %v1390, %v1359
  %v1392 = vmul.f32 %v1391, %v1390
  %v1393 = vmul.f32 0.5, %v1392
  %v1394 = vsub.f32 1.5, %v1393
  %v1395 = vmul.f32 %v1390, %v1394
  %vm1396 = vweird.f32 %v1359
  %vm1397 = vweird.f32 %v1390
  %vm1398 = vmor %vm1396, %vm1397
  %v1399 = vsel %vm1398, %v1390, %v1395
  %v1400 = vmul.f32 %v1352, %v1369
  %v1401 = vmul.f32 %v1353, %v1379
  %v1402 = vmul.f32 %v1354, %v1389
  %v1403 = vmul.f32 %v1355, %v1399
  %1405 = vset.pattern.permute.xlu0 0
  %1406 = vperm.xlu0 %1405, %v1400
  %v1407 = vpop.permute.xlu0 %1406
  %1410 = vset.pattern.permute.xlu0 0
  %1411 = vperm.xlu0 %1410, %v1401
  %v1412 = vpop.permute.xlu0 %1411
  %1415 = vset.pattern.permute.xlu0 0
  %1416 = vperm.xlu0 %1415, %v1402
  %v1417 = vpop.permute.xlu0 %1416
  %1420 = vset.pattern.permute.xlu0 0
  %1421 = vperm.xlu0 %1420, %v1403
  %v1422 = vpop.permute.xlu0 %1421
  %v1424 = vmul.f32 %v1256, %v1407
  %v1425 = vmul.f32 %v1257, %v1407
  %v1426 = vmul.f32 %v1258, %v1407
  %v1427 = vmul.f32 %v1259, %v1407
  %v1428 = vmul.f32 %v1260, %v1407
  %v1429 = vmul.f32 %v1261, %v1407
  %v1430 = vmul.f32 %v1262, %v1407
  %v1431 = vmul.f32 %v1263, %v1412
  %v1432 = vmul.f32 %v1264, %v1412
  %v1433 = vmul.f32 %v1265, %v1412
  %v1434 = vmul.f32 %v1266, %v1412
  %v1435 = vmul.f32 %v1267, %v1412
  %v1436 = vmul.f32 %v1268, %v1412
  %v1437 = vmul.f32 %v1269, %v1412
  %v1438 = vmul.f32 %v1270, %v1417
  %v1439 = vmul.f32 %v1271, %v1417
  %v1440 = vmul.f32 %v1272, %v1417
  %v1441 = vmul.f32 %v1273, %v1417
  %v1442 = vmul.f32 %v1274, %v1417
  %v1443 = vmul.f32 %v1275, %v1417
  %v1444 = vmul.f32 %v1276, %v1417
  %v1445 = vmul.f32 %v1277, %v1422
  %v1446 = vmul.f32 %v1278, %v1422
  %v1447 = vmul.f32 %v1279, %v1422
  %v1448 = vmul.f32 %v1280, %v1422
  %v1449 = vmul.f32 %v1281, %v1422
  %v1450 = vmul.f32 %v1282, %v1422
  %v1451 = vmul.f32 %v1283, %v1422
  %v1452 = vld [vmem:[%s3] sm:$0xff]
  %v1453 = vld [vmem:[%s3 + $0x8] sm:$0xff]
  %v1454 = vld [vmem:[%s3 + $0x10] sm:$0xff]
  %v1455 = vld [vmem:[%s3 + $0x18] sm:$0xff]
  %1457 = vset.pattern.permute.xlu0 0
  %1458 = vperm.xlu0 %1457, %v1452
  %v1459 = vpop.permute.xlu0 %1458
  %1462 = vset.pattern.permute.xlu0 0
  %1463 = vperm.xlu0 %1462, %v1453
  %v1464 = vpop.permute.xlu0 %1463
  %1467 = vset.pattern.permute.xlu0 0
  %1468 = vperm.xlu0 %1467, %v1454
  %v1469 = vpop.permute.xlu0 %1468
  %1472 = vset.pattern.permute.xlu0 0
  %1473 = vperm.xlu0 %1472, %v1455
  %v1474 = vpop.permute.xlu0 %1473
  %v1476 = vadd.f32 %v1424, %v1459
  %v1477 = vadd.f32 %v1425, %v1459
  %v1478 = vadd.f32 %v1426, %v1459
  %v1479 = vadd.f32 %v1427, %v1459
  %v1480 = vadd.f32 %v1428, %v1459
  %v1481 = vadd.f32 %v1429, %v1459
  %v1482 = vadd.f32 %v1430, %v1459
  %v1483 = vadd.f32 %v1431, %v1464
  %v1484 = vadd.f32 %v1432, %v1464
  %v1485 = vadd.f32 %v1433, %v1464
  %v1486 = vadd.f32 %v1434, %v1464
  %v1487 = vadd.f32 %v1435, %v1464
  %v1488 = vadd.f32 %v1436, %v1464
  %v1489 = vadd.f32 %v1437, %v1464
  %v1490 = vadd.f32 %v1438, %v1469
  %v1491 = vadd.f32 %v1439, %v1469
  %v1492 = vadd.f32 %v1440, %v1469
  %v1493 = vadd.f32 %v1441, %v1469
  %v1494 = vadd.f32 %v1442, %v1469
  %v1495 = vadd.f32 %v1443, %v1469
  %v1496 = vadd.f32 %v1444, %v1469
  %v1497 = vadd.f32 %v1445, %v1474
  %v1498 = vadd.f32 %v1446, %v1474
  %v1499 = vadd.f32 %v1447, %v1474
  %v1500 = vadd.f32 %v1448, %v1474
  %v1501 = vadd.f32 %v1449, %v1474
  %v1502 = vadd.f32 %v1450, %v1474
  %v1503 = vadd.f32 %v1451, %v1474
  %v1504 = vmax.f32 %v1476, 0.0
  %v1505 = vmax.f32 %v1477, 0.0
  %v1506 = vmax.f32 %v1478, 0.0
  %v1507 = vmax.f32 %v1479, 0.0
  %v1508 = vmax.f32 %v1480, 0.0
  %v1509 = vmax.f32 %v1481, 0.0
  %v1510 = vmax.f32 %v1482, 0.0
  %v1511 = vmax.f32 %v1483, 0.0
  %v1512 = vmax.f32 %v1484, 0.0
  %v1513 = vmax.f32 %v1485, 0.0
  %v1514 = vmax.f32 %v1486, 0.0
  %v1515 = vmax.f32 %v1487, 0.0
  %v1516 = vmax.f32 %v1488, 0.0
  %v1517 = vmax.f32 %v1489, 0.0
  %v1518 = vmax.f32 %v1490, 0.0
  %v1519 = vmax.f32 %v1491, 0.0
  %v1520 = vmax.f32 %v1492, 0.0
  %v1521 = vmax.f32 %v1493, 0.0
  %v1522 = vmax.f32 %v1494, 0.0
  %v1523 = vmax.f32 %v1495, 0.0
  %v1524 = vmax.f32 %v1496, 0.0
  %v1525 = vmax.f32 %v1497, 0.0
  %v1526 = vmax.f32 %v1498, 0.0
  %v1527 = vmax.f32 %v1499, 0.0
  %v1528 = vmax.f32 %v1500, 0.0
  %v1529 = vmax.f32 %v1501, 0.0
  %v1530 = vmax.f32 %v1502, 0.0
  %v1531 = vmax.f32 %v1503, 0.0
  %1532 = vst [vmem:[%s4] sm:$0xff] %v1504
  %1533 = vst [vmem:[%s4 + $0x8] sm:$0xff] %v1505
  %1534 = vst [vmem:[%s4 + $0x10] sm:$0xff] %v1506
  %1535 = vst [vmem:[%s4 + $0x18] sm:$0xff] %v1507
  %1536 = vst [vmem:[%s4 + $0x20] sm:$0xff] %v1508
  %1537 = vst [vmem:[%s4 + $0x28] sm:$0xff] %v1509
  %1538 = vst.msk [vmem:[%s4 + $0x30] sm:$0xff] %vm1213, %v1510
  %1539 = vst [vmem:[%s4 + $0x38] sm:$0xff] %v1511
  %1540 = vst [vmem:[%s4 + $0x40] sm:$0xff] %v1512
  %1541 = vst [vmem:[%s4 + $0x48] sm:$0xff] %v1513
  %1542 = vst [vmem:[%s4 + $0x50] sm:$0xff] %v1514
  %1543 = vst [vmem:[%s4 + $0x58] sm:$0xff] %v1515
  %1544 = vst [vmem:[%s4 + $0x60] sm:$0xff] %v1516
  %1545 = vst.msk [vmem:[%s4 + $0x68] sm:$0xff] %vm1213, %v1517
  %1546 = vst [vmem:[%s4 + $0x70] sm:$0xff] %v1518
  %1547 = vst [vmem:[%s4 + $0x78] sm:$0xff] %v1519
  %1548 = vst [vmem:[%s4 + $0x80] sm:$0xff] %v1520
  %1549 = vst [vmem:[%s4 + $0x88] sm:$0xff] %v1521
  %1550 = vst [vmem:[%s4 + $0x90] sm:$0xff] %v1522
  %1551 = vst [vmem:[%s4 + $0x98] sm:$0xff] %v1523
  %1552 = vst.msk [vmem:[%s4 + $0xa0] sm:$0xff] %vm1213, %v1524
  %1553 = vst [vmem:[%s4 + $0xa8] sm:$0xff] %v1525
  %1554 = vst [vmem:[%s4 + $0xb0] sm:$0xff] %v1526
  %1555 = vst [vmem:[%s4 + $0xb8] sm:$0xff] %v1527
  %1556 = vst [vmem:[%s4 + $0xc0] sm:$0xff] %v1528
  %1557 = vst [vmem:[%s4 + $0xc8] sm:$0xff] %v1529
  %1558 = vst [vmem:[%s4 + $0xd0] sm:$0xff] %v1530
  %1559 = vst.msk [vmem:[%s4 + $0xd8] sm:$0xff] %vm1213, %v1531
  // Predicated region
  $region18: #{dqn_forward.5} parent=0 // pred_check
    _
  $region19: #{dqn_forward.5} parent=0 // pred_check_branch
    %1561 = sbr.rel (0) target = $region21
  $region20: #{dqn_forward.5} parent=0 // pred_region
    _
  $region21: #{dqn_forward.5} parent=0 // pred_fallthru
    _
  // Predicated region
  $region22: #{dqn_forward.5} parent=0 // pred_check
    _
  $region23: #{dqn_forward.5} parent=0 // pred_check_branch
    %1563 = sbr.rel (0) target = $region25
  $region24: #{dqn_forward.5} parent=0 // pred_region
    _
  $region25: #{dqn_forward.5} parent=0 // pred_fallthru
    _

// kernel: dqn_forward.6
$region0: #{dqn_forward.6}
  #allocation0 [shape = 'u32[]', space=smem, size = 0x4, offset = 0x4, fixed_abs, tag = 'smem constant byte address 0x4 - core index']
  #allocation1 [shape = 'u32[72,128]{1,0:T(1,128)}', space=vmem, size = 0x9000, scoped, tag = 'internal scratch']
  %s0 = inlined_call_operand.vmem [shape: f32[800,162], index: 0, kind: input, shape index: {}]
  %s1 = inlined_call_operand.vmem [shape: f32[32,800], index: 1, kind: input, shape index: {}]
  %s2 = inlined_call_operand.vmem [shape: f32[32,1], index: 2, kind: input, shape index: {}]
  %s3 = inlined_call_operand.vmem [shape: f32[32,1], index: 3, kind: input, shape index: {}]
  %s4 = inlined_call_operand.vmem [shape: f32[32,162], index: 4, kind: output, shape index: {}]
  %s5 = sld [smem:[#allocation0]]
  $region26: #{dqn_forward.6} parent=0
    _
  %s7 = ssub.s32 1, %s5
  %s8 = scalar_select 0, %s7, %s5
  // Predicated region
  $region2: #{dqn_forward.6} parent=0 // pred_check
    _
  $region3: #{dqn_forward.6} parent=0 // pred_check_branch
    %10 = sbr.rel (0) target = $region5
  $region4: #{dqn_forward.6} parent=0 // pred_region
    _
  $region5: #{dqn_forward.6} parent=0 // pred_fallthru
    _
  // Predicated region
  $region6: #{dqn_forward.6} parent=0 // pred_check
    _
  $region7: #{dqn_forward.6} parent=0 // pred_check_branch
    %12 = sbr.rel (0) target = $region9
  $region8: #{dqn_forward.6} parent=0 // pred_region
    _
  $region9: #{dqn_forward.6} parent=0 // pred_fallthru
    _
  // Predicated region
  $region10: #{dqn_forward.6} parent=0 // pred_check
    _
  $region11: #{dqn_forward.6} parent=0 // pred_check_branch
    %14 = sbr.rel (0) target = $region13
  $region12: #{dqn_forward.6} parent=0 // pred_region
    _
  $region13: #{dqn_forward.6} parent=0 // pred_fallthru
    _
  // Predicated region
  $region14: #{dqn_forward.6} parent=0 // pred_check
    _
  $region15: #{dqn_forward.6} parent=0 // pred_check_branch
    %16 = sbr.rel (0) target = $region17
  $region16: #{dqn_forward.6} parent=0 // pred_region
    _
  $region17: #{dqn_forward.6} parent=0 // pred_fallthru
    _
  %v17 = vld [vmem:[%s1] sm:$0xff]
  %v18 = vld [vmem:[%s1 + $0x8] sm:$0xff]
  %v19 = vld [vmem:[%s1 + $0x10] sm:$0xff]
  %v20 = vld [vmem:[%s1 + $0x18] sm:$0xff]
  %v21 = vld [vmem:[%s1 + $0x20] sm:$0xff]
  %v22 = vld [vmem:[%s1 + $0x28] sm:$0xff]
  %v23 = vld [vmem:[%s1 + $0x30] sm:$0xff]
  %v24 = vld [vmem:[%s1 + $0x38] sm:$0xff]
  %v25 = vld [vmem:[%s1 + $0x40] sm:$0xff]
  %v26 = vld [vmem:[%s1 + $0x48] sm:$0xff]
  %v27 = vld [vmem:[%s1 + $0x50] sm:$0xff]
  %v28 = vld [vmem:[%s1 + $0x58] sm:$0xff]
  %v29 = vld [vmem:[%s1 + $0x60] sm:$0xff]
  %v30 = vld [vmem:[%s1 + $0x68] sm:$0xff]
  %v31 = vld [vmem:[%s1 + $0x70] sm:$0xff]
  %v32 = vld [vmem:[%s1 + $0x78] sm:$0xff]
  %v33 = vld [vmem:[%s1 + $0x80] sm:$0xff]
  %v34 = vld [vmem:[%s1 + $0x88] sm:$0xff]
  %v35 = vld [vmem:[%s1 + $0x90] sm:$0xff]
  %v36 = vld [vmem:[%s1 + $0x98] sm:$0xff]
  %v37 = vld [vmem:[%s1 + $0xa0] sm:$0xff]
  %v38 = vld [vmem:[%s1 + $0xa8] sm:$0xff]
  %v39 = vld [vmem:[%s1 + $0xb0] sm:$0xff]
  %v40 = vld [vmem:[%s1 + $0xb8] sm:$0xff]
  %v41 = vld [vmem:[%s1 + $0xc0] sm:$0xff]
  %v42 = vld [vmem:[%s1 + $0xc8] sm:$0xff]
  %v43 = vld [vmem:[%s1 + $0xd0] sm:$0xff]
  %v44 = vld [vmem:[%s1 + $0xd8] sm:$0xff]
  %v45 = vld [vmem:[%s0] sm:$0xff]
  %v46 = vld [vmem:[%s0 + $0x8] sm:$0xff]
  %v47 = vld [vmem:[%s0 + $0x10] sm:$0xff]
  %v48 = vld [vmem:[%s0 + $0x18] sm:$0xff]
  %v49 = vld [vmem:[%s0 + $0x20] sm:$0xff]
  %v50 = vld [vmem:[%s0 + $0x28] sm:$0xff]
  %v51 = vld [vmem:[%s0 + $0x30] sm:$0xff]
  %v52 = vld [vmem:[%s0 + $0x38] sm:$0xff]
  %v53 = vld [vmem:[%s0 + $0x40] sm:$0xff]
  %v54 = vld [vmem:[%s0 + $0x48] sm:$0xff]
  %v55 = vld [vmem:[%s0 + $0x50] sm:$0xff]
  %v56 = vld [vmem:[%s0 + $0x58] sm:$0xff]
  %v57 = vld [vmem:[%s0 + $0x60] sm:$0xff]
  %v58 = vld [vmem:[%s0 + $0x68] sm:$0xff]
  %v59 = vld [vmem:[%s0 + $0x70] sm:$0xff]
  %v60 = vld [vmem:[%s0 + $0x78] sm:$0xff]
  %v61 = vld [vmem:[%s0 + $0x80] sm:$0xff]
  %v62 = vld [vmem:[%s0 + $0x88] sm:$0xff]
  %v63 = vld [vmem:[%s0 + $0x90] sm:$0xff]
  %v64 = vld [vmem:[%s0 + $0x98] sm:$0xff]
  %v65 = vld [vmem:[%s0 + $0xa0] sm:$0xff]
  %v66 = vld [vmem:[%s0 + $0xa8] sm:$0xff]
  %v67 = vld [vmem:[%s0 + $0xb0] sm:$0xff]
  %v68 = vld [vmem:[%s0 + $0xb8] sm:$0xff]
  %v69 = vld [vmem:[%s0 + $0xc0] sm:$0xff]
  %v70 = vld [vmem:[%s0 + $0xc8] sm:$0xff]
  %v71 = vld [vmem:[%s0 + $0xd0] sm:$0xff]
  %v72 = vld [vmem:[%s0 + $0xd8] sm:$0xff]
  %v73 = vld [vmem:[%s0 + $0xe0] sm:$0xff]
  %v74 = vld [vmem:[%s0 + $0xe8] sm:$0xff]
  %v75 = vld [vmem:[%s0 + $0xf0] sm:$0xff]
  %v76 = vld [vmem:[%s0 + $0xf8] sm:$0xff]
  %v77 = vld [vmem:[%s0 + $0x100] sm:$0xff]
  %v78 = vld [vmem:[%s0 + $0x108] sm:$0xff]
  %v79 = vld [vmem:[%s0 + $0x110] sm:$0xff]
  %v80 = vld [vmem:[%s0 + $0x118] sm:$0xff]
  %v81 = vld [vmem:[%s0 + $0x120] sm:$0xff]
  %v82 = vld [vmem:[%s0 + $0x128] sm:$0xff]
  %v83 = vld [vmem:[%s0 + $0x130] sm:$0xff]
  %v84 = vld [vmem:[%s0 + $0x138] sm:$0xff]
  %v85 = vld [vmem:[%s0 + $0x140] sm:$0xff]
  %v86 = vld [vmem:[%s0 + $0x148] sm:$0xff]
  %v87 = vld [vmem:[%s0 + $0x150] sm:$0xff]
  %v88 = vld [vmem:[%s0 + $0x158] sm:$0xff]
  %v89 = vld [vmem:[%s0 + $0x160] sm:$0xff]
  %v90 = vld [vmem:[%s0 + $0x168] sm:$0xff]
  %v91 = vld [vmem:[%s0 + $0x170] sm:$0xff]
  %v92 = vld [vmem:[%s0 + $0x178] sm:$0xff]
  %v93 = vld [vmem:[%s0 + $0x180] sm:$0xff]
  %v94 = vld [vmem:[%s0 + $0x188] sm:$0xff]
  %v95 = vld [vmem:[%s0 + $0x190] sm:$0xff]
  %v96 = vld [vmem:[%s0 + $0x198] sm:$0xff]
  %v97 = vld [vmem:[%s0 + $0x1a0] sm:$0xff]
  %v98 = vld [vmem:[%s0 + $0x1a8] sm:$0xff]
  %v99 = vld [vmem:[%s0 + $0x1b0] sm:$0xff]
  %v100 = vld [vmem:[%s0 + $0x1b8] sm:$0xff]
  %v101 = vld [vmem:[%s0 + $0x1c0] sm:$0xff]
  %v102 = vld [vmem:[%s0 + $0x1c8] sm:$0xff]
  %v103 = vld [vmem:[%s0 + $0x1d0] sm:$0xff]
  %v104 = vld [vmem:[%s0 + $0x1d8] sm:$0xff]
  %v105 = vld [vmem:[%s0 + $0x1e0] sm:$0xff]
  %v106 = vld [vmem:[%s0 + $0x1e8] sm:$0xff]
  %v107 = vld [vmem:[%s0 + $0x1f0] sm:$0xff]
  %v108 = vld [vmem:[%s0 + $0x1f8] sm:$0xff]
  %v109 = vld [vmem:[%s0 + $0x200] sm:$0xff]
  %v110 = vld [vmem:[%s0 + $0x208] sm:$0xff]
  %v111 = vld [vmem:[%s0 + $0x210] sm:$0xff]
  %v112 = vld [vmem:[%s0 + $0x218] sm:$0xff]
  %v113 = vld [vmem:[%s0 + $0x220] sm:$0xff]
  %v114 = vld [vmem:[%s0 + $0x228] sm:$0xff]
  %v115 = vld [vmem:[%s0 + $0x230] sm:$0xff]
  %v116 = vld [vmem:[%s0 + $0x238] sm:$0xff]
  %v117 = vld [vmem:[%s0 + $0x240] sm:$0xff]
  %v118 = vld [vmem:[%s0 + $0x248] sm:$0xff]
  %v119 = vld [vmem:[%s0 + $0x250] sm:$0xff]
  %v120 = vld [vmem:[%s0 + $0x258] sm:$0xff]
  %v121 = vld [vmem:[%s0 + $0x260] sm:$0xff]
  %v122 = vld [vmem:[%s0 + $0x268] sm:$0xff]
  %v123 = vld [vmem:[%s0 + $0x270] sm:$0xff]
  %v124 = vld [vmem:[%s0 + $0x278] sm:$0xff]
  %v125 = vld [vmem:[%s0 + $0x280] sm:$0xff]
  %v126 = vld [vmem:[%s0 + $0x288] sm:$0xff]
  %v127 = vld [vmem:[%s0 + $0x290] sm:$0xff]
  %v128 = vld [vmem:[%s0 + $0x298] sm:$0xff]
  %v129 = vld [vmem:[%s0 + $0x2a0] sm:$0xff]
  %v130 = vld [vmem:[%s0 + $0x2a8] sm:$0xff]
  %v131 = vld [vmem:[%s0 + $0x2b0] sm:$0xff]
  %v132 = vld [vmem:[%s0 + $0x2b8] sm:$0xff]
  %v133 = vld [vmem:[%s0 + $0x2c0] sm:$0xff]
  %v134 = vld [vmem:[%s0 + $0x2c8] sm:$0xff]
  %v135 = vld [vmem:[%s0 + $0x2d0] sm:$0xff]
  %v136 = vld [vmem:[%s0 + $0x2d8] sm:$0xff]
  %v137 = vld [vmem:[%s0 + $0x2e0] sm:$0xff]
  %v138 = vld [vmem:[%s0 + $0x2e8] sm:$0xff]
  %v139 = vld [vmem:[%s0 + $0x2f0] sm:$0xff]
  %v140 = vld [vmem:[%s0 + $0x2f8] sm:$0xff]
  %v141 = vld [vmem:[%s0 + $0x300] sm:$0xff]
  %v142 = vld [vmem:[%s0 + $0x308] sm:$0xff]
  %v143 = vld [vmem:[%s0 + $0x310] sm:$0xff]
  %v144 = vld [vmem:[%s0 + $0x318] sm:$0xff]
  %v145 = vld [vmem:[%s0 + $0x320] sm:$0xff]
  %v146 = vld [vmem:[%s0 + $0x328] sm:$0xff]
  %v147 = vld [vmem:[%s0 + $0x330] sm:$0xff]
  %v148 = vld [vmem:[%s0 + $0x338] sm:$0xff]
  %v149 = vld [vmem:[%s0 + $0x340] sm:$0xff]
  %v150 = vld [vmem:[%s0 + $0x348] sm:$0xff]
  %v151 = vld [vmem:[%s0 + $0x350] sm:$0xff]
  %v152 = vld [vmem:[%s0 + $0x358] sm:$0xff]
  %v153 = vld [vmem:[%s0 + $0x360] sm:$0xff]
  %v154 = vld [vmem:[%s0 + $0x368] sm:$0xff]
  %v155 = vld [vmem:[%s0 + $0x370] sm:$0xff]
  %v156 = vld [vmem:[%s0 + $0x378] sm:$0xff]
  %v157 = vld [vmem:[%s0 + $0x380] sm:$0xff]
  %v158 = vld [vmem:[%s0 + $0x388] sm:$0xff]
  %v159 = vld [vmem:[%s0 + $0x390] sm:$0xff]
  %v160 = vld [vmem:[%s0 + $0x398] sm:$0xff]
  %v161 = vld [vmem:[%s0 + $0x3a0] sm:$0xff]
  %v162 = vld [vmem:[%s0 + $0x3a8] sm:$0xff]
  %v163 = vld [vmem:[%s0 + $0x3b0] sm:$0xff]
  %v164 = vld [vmem:[%s0 + $0x3b8] sm:$0xff]
  %v165 = vld [vmem:[%s0 + $0x3c0] sm:$0xff]
  %v166 = vld [vmem:[%s0 + $0x3c8] sm:$0xff]
  %v167 = vld [vmem:[%s0 + $0x3d0] sm:$0xff]
  %v168 = vld [vmem:[%s0 + $0x3d8] sm:$0xff]
  %v169 = vld [vmem:[%s0 + $0x3e0] sm:$0xff]
  %v170 = vld [vmem:[%s0 + $0x3e8] sm:$0xff]
  %v171 = vld [vmem:[%s0 + $0x3f0] sm:$0xff]
  %v172 = vld [vmem:[%s0 + $0x3f8] sm:$0xff]
  %v173 = vld [vmem:[%s0 + $0x400] sm:$0xff]
  %v174 = vld [vmem:[%s0 + $0x408] sm:$0xff]
  %v175 = vld [vmem:[%s0 + $0x410] sm:$0xff]
  %v176 = vld [vmem:[%s0 + $0x418] sm:$0xff]
  %v177 = vld [vmem:[%s0 + $0x420] sm:$0xff]
  %v178 = vld [vmem:[%s0 + $0x428] sm:$0xff]
  %v179 = vld [vmem:[%s0 + $0x430] sm:$0xff]
  %v180 = vld [vmem:[%s0 + $0x438] sm:$0xff]
  %v181 = vld [vmem:[%s0 + $0x440] sm:$0xff]
  %v182 = vld [vmem:[%s0 + $0x448] sm:$0xff]
  %v183 = vld [vmem:[%s0 + $0x450] sm:$0xff]
  %v184 = vld [vmem:[%s0 + $0x458] sm:$0xff]
  %v185 = vld [vmem:[%s0 + $0x460] sm:$0xff]
  %v186 = vld [vmem:[%s0 + $0x468] sm:$0xff]
  %v187 = vld [vmem:[%s0 + $0x470] sm:$0xff]
  %v188 = vld [vmem:[%s0 + $0x478] sm:$0xff]
  %v189 = vld [vmem:[%s0 + $0x480] sm:$0xff]
  %v190 = vld [vmem:[%s0 + $0x488] sm:$0xff]
  %v191 = vld [vmem:[%s0 + $0x490] sm:$0xff]
  %v192 = vld [vmem:[%s0 + $0x498] sm:$0xff]
  %v193 = vld [vmem:[%s0 + $0x4a0] sm:$0xff]
  %v194 = vld [vmem:[%s0 + $0x4a8] sm:$0xff]
  %v195 = vld [vmem:[%s0 + $0x4b0] sm:$0xff]
  %v196 = vld [vmem:[%s0 + $0x4b8] sm:$0xff]
  %v197 = vld [vmem:[%s0 + $0x4c0] sm:$0xff]
  %v198 = vld [vmem:[%s0 + $0x4c8] sm:$0xff]
  %v199 = vld [vmem:[%s0 + $0x4d0] sm:$0xff]
  %v200 = vld [vmem:[%s0 + $0x4d8] sm:$0xff]
  %v201 = vld [vmem:[%s0 + $0x4e0] sm:$0xff]
  %v202 = vld [vmem:[%s0 + $0x4e8] sm:$0xff]
  %v203 = vld [vmem:[%s0 + $0x4f0] sm:$0xff]
  %v204 = vld [vmem:[%s0 + $0x4f8] sm:$0xff]
  %v205 = vld [vmem:[%s0 + $0x500] sm:$0xff]
  %v206 = vld [vmem:[%s0 + $0x508] sm:$0xff]
  %v207 = vld [vmem:[%s0 + $0x510] sm:$0xff]
  %v208 = vld [vmem:[%s0 + $0x518] sm:$0xff]
  %v209 = vld [vmem:[%s0 + $0x520] sm:$0xff]
  %v210 = vld [vmem:[%s0 + $0x528] sm:$0xff]
  %v211 = vld [vmem:[%s0 + $0x530] sm:$0xff]
  %v212 = vld [vmem:[%s0 + $0x538] sm:$0xff]
  %v213 = vld [vmem:[%s0 + $0x540] sm:$0xff]
  %v214 = vld [vmem:[%s0 + $0x548] sm:$0xff]
  %v215 = vld [vmem:[%s0 + $0x550] sm:$0xff]
  %v216 = vld [vmem:[%s0 + $0x558] sm:$0xff]
  %v217 = vld [vmem:[%s0 + $0x560] sm:$0xff]
  %v218 = vld [vmem:[%s0 + $0x568] sm:$0xff]
  %v219 = vld [vmem:[%s0 + $0x570] sm:$0xff]
  %v220 = vld [vmem:[%s0 + $0x578] sm:$0xff]
  %v221 = vld [vmem:[%s0 + $0x580] sm:$0xff]
  %v222 = vld [vmem:[%s0 + $0x588] sm:$0xff]
  %v223 = vld [vmem:[%s0 + $0x590] sm:$0xff]
  %v224 = vld [vmem:[%s0 + $0x598] sm:$0xff]
  %v225 = vld [vmem:[%s0 + $0x5a0] sm:$0xff]
  %v226 = vld [vmem:[%s0 + $0x5a8] sm:$0xff]
  %v227 = vld [vmem:[%s0 + $0x5b0] sm:$0xff]
  %v228 = vld [vmem:[%s0 + $0x5b8] sm:$0xff]
  %v229 = vld [vmem:[%s0 + $0x5c0] sm:$0xff]
  %v230 = vld [vmem:[%s0 + $0x5c8] sm:$0xff]
  %v231 = vld [vmem:[%s0 + $0x5d0] sm:$0xff]
  %v232 = vld [vmem:[%s0 + $0x5d8] sm:$0xff]
  %v233 = vld [vmem:[%s0 + $0x5e0] sm:$0xff]
  %v234 = vld [vmem:[%s0 + $0x5e8] sm:$0xff]
  %v235 = vld [vmem:[%s0 + $0x5f0] sm:$0xff]
  %v236 = vld [vmem:[%s0 + $0x5f8] sm:$0xff]
  %v237 = vld [vmem:[%s0 + $0x600] sm:$0xff]
  %v238 = vld [vmem:[%s0 + $0x608] sm:$0xff]
  %v239 = vld [vmem:[%s0 + $0x610] sm:$0xff]
  %v240 = vld [vmem:[%s0 + $0x618] sm:$0xff]
  %v241 = vld [vmem:[%s0 + $0x620] sm:$0xff]
  %v242 = vld [vmem:[%s0 + $0x628] sm:$0xff]
  %v243 = vld [vmem:[%s0 + $0x630] sm:$0xff]
  %v244 = vld [vmem:[%s0 + $0x638] sm:$0xff]
  %vm245 = vcmask 261120
  %v247 = vsel %vm245, %v23, 0
  %v250 = vsel %vm245, %v30, 0
  %v253 = vsel %vm245, %v37, 0
  %v256 = vsel %vm245, %v44, 0
  %258 = vmatpush.msra.mxu0 %v75
  %259 = vmatpush.msra.mxu0 %v73
  %260 = vmatpush.msra.mxu0 %v71
  %261 = vmatpush.msra.mxu0 %v69
  %262 = vmatpush.msra.mxu0 %v67
  %263 = vmatpush.msra.mxu0 %v65
  %264 = vmatpush.msra.mxu0 %v63
  %265 = vmatpush.msra.mxu0 %v61
  %266 = vmatpush.msra.mxu0 %v59
  %267 = vmatpush.msra.mxu0 %v57
  %268 = vmatpush.msra.mxu0 %v55
  %269 = vmatpush.msra.mxu0 %v53
  %270 = vmatpush.msra.mxu0 %v51
  %271 = vmatpush.msra.mxu0 %v49
  %272 = vmatpush.msra.mxu0 %v47
  %273 = vmatpush.msra.mxu0 %v45
  %274 = vmatmul.f32.gmra.mxu0 %v17
  %v275 = vpop.f32.mrf.mxu0
  %v276 = vadd.f32 0.0, %v275
  %277 = vmatmul.f32.gmra.mxu0 %v24
  %v278 = vpop.f32.mrf.mxu0
  %v279 = vadd.f32 0.0, %v278
  %280 = vmatmul.f32.gmra.mxu0 %v31
  %v281 = vpop.f32.mrf.mxu0
  %v282 = vadd.f32 0.0, %v281
  %283 = vmatmul.f32.gmra.mxu0 %v38
  %v284 = vpop.f32.mrf.mxu0
  %v285 = vadd.f32 0.0, %v284
  %286 = vdwg.mxu0
  %287 = vmatpush.msra.mxu0 %v107
  %288 = vmatpush.msra.mxu0 %v105
  %289 = vmatpush.msra.mxu0 %v103
  %290 = vmatpush.msra.mxu0 %v101
  %291 = vmatpush.msra.mxu0 %v99
  %292 = vmatpush.msra.mxu0 %v97
  %293 = vmatpush.msra.mxu0 %v95
  %294 = vmatpush.msra.mxu0 %v93
  %295 = vmatpush.msra.mxu0 %v91
  %296 = vmatpush.msra.mxu0 %v89
  %297 = vmatpush.msra.mxu0 %v87
  %298 = vmatpush.msra.mxu0 %v85
  %299 = vmatpush.msra.mxu0 %v83
  %300 = vmatpush.msra.mxu0 %v81
  %301 = vmatpush.msra.mxu0 %v79
  %302 = vmatpush.msra.mxu0 %v77
  %303 = vmatmul.f32.gmra.mxu0 %v18
  %v304 = vpop.f32.mrf.mxu0
  %v305 = vadd.f32 %v276, %v304
  %306 = vmatmul.f32.gmra.mxu0 %v25
  %v307 = vpop.f32.mrf.mxu0
  %v308 = vadd.f32 %v279, %v307
  %309 = vmatmul.f32.gmra.mxu0 %v32
  %v310 = vpop.f32.mrf.mxu0
  %v311 = vadd.f32 %v282, %v310
  %312 = vmatmul.f32.gmra.mxu0 %v39
  %v313 = vpop.f32.mrf.mxu0
  %v314 = vadd.f32 %v285, %v313
  %315 = vdwg.mxu0
  %316 = vmatpush.msra.mxu0 %v139
  %317 = vmatpush.msra.mxu0 %v137
  %318 = vmatpush.msra.mxu0 %v135
  %319 = vmatpush.msra.mxu0 %v133
  %320 = vmatpush.msra.mxu0 %v131
  %321 = vmatpush.msra.mxu0 %v129
  %322 = vmatpush.msra.mxu0 %v127
  %323 = vmatpush.msra.mxu0 %v125
  %324 = vmatpush.msra.mxu0 %v123
  %325 = vmatpush.msra.mxu0 %v121
  %326 = vmatpush.msra.mxu0 %v119
  %327 = vmatpush.msra.mxu0 %v117
  %328 = vmatpush.msra.mxu0 %v115
  %329 = vmatpush.msra.mxu0 %v113
  %330 = vmatpush.msra.mxu0 %v111
  %331 = vmatpush.msra.mxu0 %v109
  %332 = vmatmul.f32.gmra.mxu0 %v19
  %v333 = vpop.f32.mrf.mxu0
  %v334 = vadd.f32 %v305, %v333
  %335 = vmatmul.f32.gmra.mxu0 %v26
  %v336 = vpop.f32.mrf.mxu0
  %v337 = vadd.f32 %v308, %v336
  %338 = vmatmul.f32.gmra.mxu0 %v33
  %v339 = vpop.f32.mrf.mxu0
  %v340 = vadd.f32 %v311, %v339
  %341 = vmatmul.f32.gmra.mxu0 %v40
  %v342 = vpop.f32.mrf.mxu0
  %v343 = vadd.f32 %v314, %v342
  %344 = vdwg.mxu0
  %345 = vmatpush.msra.mxu0 %v171
  %346 = vmatpush.msra.mxu0 %v169
  %347 = vmatpush.msra.mxu0 %v167
  %348 = vmatpush.msra.mxu0 %v165
  %349 = vmatpush.msra.mxu0 %v163
  %350 = vmatpush.msra.mxu0 %v161
  %351 = vmatpush.msra.mxu0 %v159
  %352 = vmatpush.msra.mxu0 %v157
  %353 = vmatpush.msra.mxu0 %v155
  %354 = vmatpush.msra.mxu0 %v153
  %355 = vmatpush.msra.mxu0 %v151
  %356 = vmatpush.msra.mxu0 %v149
  %357 = vmatpush.msra.mxu0 %v147
  %358 = vmatpush.msra.mxu0 %v145
  %359 = vmatpush.msra.mxu0 %v143
  %360 = vmatpush.msra.mxu0 %v141
  %361 = vmatmul.f32.gmra.mxu0 %v20
  %v362 = vpop.f32.mrf.mxu0
  %v363 = vadd.f32 %v334, %v362
  %364 = vmatmul.f32.gmra.mxu0 %v27
  %v365 = vpop.f32.mrf.mxu0
  %v366 = vadd.f32 %v337, %v365
  %367 = vmatmul.f32.gmra.mxu0 %v34
  %v368 = vpop.f32.mrf.mxu0
  %v369 = vadd.f32 %v340, %v368
  %370 = vmatmul.f32.gmra.mxu0 %v41
  %v371 = vpop.f32.mrf.mxu0
  %v372 = vadd.f32 %v343, %v371
  %373 = vdwg.mxu0
  %374 = vmatpush.msra.mxu0 %v203
  %375 = vmatpush.msra.mxu0 %v201
  %376 = vmatpush.msra.mxu0 %v199
  %377 = vmatpush.msra.mxu0 %v197
  %378 = vmatpush.msra.mxu0 %v195
  %379 = vmatpush.msra.mxu0 %v193
  %380 = vmatpush.msra.mxu0 %v191
  %381 = vmatpush.msra.mxu0 %v189
  %382 = vmatpush.msra.mxu0 %v187
  %383 = vmatpush.msra.mxu0 %v185
  %384 = vmatpush.msra.mxu0 %v183
  %385 = vmatpush.msra.mxu0 %v181
  %386 = vmatpush.msra.mxu0 %v179
  %387 = vmatpush.msra.mxu0 %v177
  %388 = vmatpush.msra.mxu0 %v175
  %389 = vmatpush.msra.mxu0 %v173
  %390 = vmatmul.f32.gmra.mxu0 %v21
  %v391 = vpop.f32.mrf.mxu0
  %v392 = vadd.f32 %v363, %v391
  %393 = vmatmul.f32.gmra.mxu0 %v28
  %v394 = vpop.f32.mrf.mxu0
  %v395 = vadd.f32 %v366, %v394
  %396 = vmatmul.f32.gmra.mxu0 %v35
  %v397 = vpop.f32.mrf.mxu0
  %v398 = vadd.f32 %v369, %v397
  %399 = vmatmul.f32.gmra.mxu0 %v42
  %v400 = vpop.f32.mrf.mxu0
  %v401 = vadd.f32 %v372, %v400
  %402 = vdwg.mxu0
  %403 = vmatpush.msra.mxu0 %v235
  %404 = vmatpush.msra.mxu0 %v233
  %405 = vmatpush.msra.mxu0 %v231
  %406 = vmatpush.msra.mxu0 %v229
  %407 = vmatpush.msra.mxu0 %v227
  %408 = vmatpush.msra.mxu0 %v225
  %409 = vmatpush.msra.mxu0 %v223
  %410 = vmatpush.msra.mxu0 %v221
  %411 = vmatpush.msra.mxu0 %v219
  %412 = vmatpush.msra.mxu0 %v217
  %413 = vmatpush.msra.mxu0 %v215
  %414 = vmatpush.msra.mxu0 %v213
  %415 = vmatpush.msra.mxu0 %v211
  %416 = vmatpush.msra.mxu0 %v209
  %417 = vmatpush.msra.mxu0 %v207
  %418 = vmatpush.msra.mxu0 %v205
  %419 = vmatmul.f32.gmra.mxu0 %v22
  %v420 = vpop.f32.mrf.mxu0
  %v421 = vadd.f32 %v392, %v420
  %422 = vmatmul.f32.gmra.mxu0 %v29
  %v423 = vpop.f32.mrf.mxu0
  %v424 = vadd.f32 %v395, %v423
  %425 = vmatmul.f32.gmra.mxu0 %v36
  %v426 = vpop.f32.mrf.mxu0
  %v427 = vadd.f32 %v398, %v426
  %428 = vmatmul.f32.gmra.mxu0 %v43
  %v429 = vpop.f32.mrf.mxu0
  %v430 = vadd.f32 %v401, %v429
  %431 = vdwg.mxu0
  %432 = vmatpush.msra.mxu0 0.0
  %433 = vmatpush.msra.mxu0 0.0
  %434 = vmatpush.msra.mxu0 0.0
  %435 = vmatpush.msra.mxu0 0.0
  %436 = vmatpush.msra.mxu0 0.0
  %437 = vmatpush.msra.mxu0 0.0
  %438 = vmatpush.msra.mxu0 0.0
  %439 = vmatpush.msra.mxu0 0.0
  %440 = vmatpush.msra.mxu0 0.0
  %441 = vmatpush.msra.mxu0 0.0
  %442 = vmatpush.msra.mxu0 0.0
  %443 = vmatpush.msra.mxu0 0.0
  %444 = vmatpush.msra.mxu0 %v243
  %445 = vmatpush.msra.mxu0 %v241
  %446 = vmatpush.msra.mxu0 %v239
  %447 = vmatpush.msra.mxu0 %v237
  %448 = vmatmul.f32.gmra.mxu0 %v247
  %v449 = vpop.f32.mrf.mxu0
  %v450 = vadd.f32 %v421, %v449
  %451 = vmatmul.f32.gmra.mxu0 %v250
  %v452 = vpop.f32.mrf.mxu0
  %v453 = vadd.f32 %v424, %v452
  %454 = vmatmul.f32.gmra.mxu0 %v253
  %v455 = vpop.f32.mrf.mxu0
  %v456 = vadd.f32 %v427, %v455
  %457 = vmatmul.f32.gmra.mxu0 %v256
  %v458 = vpop.f32.mrf.mxu0
  %v459 = vadd.f32 %v430, %v458
  %460 = vdwg.mxu0
  %461 = vmatpush.msra.mxu0 %v76
  %462 = vmatpush.msra.mxu0 %v74
  %463 = vmatpush.msra.mxu0 %v72
  %464 = vmatpush.msra.mxu0 %v70
  %465 = vmatpush.msra.mxu0 %v68
  %466 = vmatpush.msra.mxu0 %v66
  %467 = vmatpush.msra.mxu0 %v64
  %468 = vmatpush.msra.mxu0 %v62
  %469 = vmatpush.msra.mxu0 %v60
  %470 = vmatpush.msra.mxu0 %v58
  %471 = vmatpush.msra.mxu0 %v56
  %472 = vmatpush.msra.mxu0 %v54
  %473 = vmatpush.msra.mxu0 %v52
  %474 = vmatpush.msra.mxu0 %v50
  %475 = vmatpush.msra.mxu0 %v48
  %476 = vmatpush.msra.mxu0 %v46
  %477 = vmatmul.f32.gmra.mxu0 %v17
  %v478 = vpop.f32.mrf.mxu0
  %v479 = vadd.f32 0.0, %v478
  %480 = vmatmul.f32.gmra.mxu0 %v24
  %v481 = vpop.f32.mrf.mxu0
  %v482 = vadd.f32 0.0, %v481
  %483 = vmatmul.f32.gmra.mxu0 %v31
  %v484 = vpop.f32.mrf.mxu0
  %v485 = vadd.f32 0.0, %v484
  %486 = vmatmul.f32.gmra.mxu0 %v38
  %v487 = vpop.f32.mrf.mxu0
  %v488 = vadd.f32 0.0, %v487
  %489 = vdwg.mxu0
  %490 = vmatpush.msra.mxu0 %v108
  %491 = vmatpush.msra.mxu0 %v106
  %492 = vmatpush.msra.mxu0 %v104
  %493 = vmatpush.msra.mxu0 %v102
  %494 = vmatpush.msra.mxu0 %v100
  %495 = vmatpush.msra.mxu0 %v98
  %496 = vmatpush.msra.mxu0 %v96
  %497 = vmatpush.msra.mxu0 %v94
  %498 = vmatpush.msra.mxu0 %v92
  %499 = vmatpush.msra.mxu0 %v90
  %500 = vmatpush.msra.mxu0 %v88
  %501 = vmatpush.msra.mxu0 %v86
  %502 = vmatpush.msra.mxu0 %v84
  %503 = vmatpush.msra.mxu0 %v82
  %504 = vmatpush.msra.mxu0 %v80
  %505 = vmatpush.msra.mxu0 %v78
  %506 = vmatmul.f32.gmra.mxu0 %v18
  %v507 = vpop.f32.mrf.mxu0
  %v508 = vadd.f32 %v479, %v507
  %509 = vmatmul.f32.gmra.mxu0 %v25
  %v510 = vpop.f32.mrf.mxu0
  %v511 = vadd.f32 %v482, %v510
  %512 = vmatmul.f32.gmra.mxu0 %v32
  %v513 = vpop.f32.mrf.mxu0
  %v514 = vadd.f32 %v485, %v513
  %515 = vmatmul.f32.gmra.mxu0 %v39
  %v516 = vpop.f32.mrf.mxu0
  %v517 = vadd.f32 %v488, %v516
  %518 = vdwg.mxu0
  %519 = vmatpush.msra.mxu0 %v140
  %520 = vmatpush.msra.mxu0 %v138
  %521 = vmatpush.msra.mxu0 %v136
  %522 = vmatpush.msra.mxu0 %v134
  %523 = vmatpush.msra.mxu0 %v132
  %524 = vmatpush.msra.mxu0 %v130
  %525 = vmatpush.msra.mxu0 %v128
  %526 = vmatpush.msra.mxu0 %v126
  %527 = vmatpush.msra.mxu0 %v124
  %528 = vmatpush.msra.mxu0 %v122
  %529 = vmatpush.msra.mxu0 %v120
  %530 = vmatpush.msra.mxu0 %v118
  %531 = vmatpush.msra.mxu0 %v116
  %532 = vmatpush.msra.mxu0 %v114
  %533 = vmatpush.msra.mxu0 %v112
  %534 = vmatpush.msra.mxu0 %v110
  %535 = vmatmul.f32.gmra.mxu0 %v19
  %v536 = vpop.f32.mrf.mxu0
  %v537 = vadd.f32 %v508, %v536
  %538 = vmatmul.f32.gmra.mxu0 %v26
  %v539 = vpop.f32.mrf.mxu0
  %v540 = vadd.f32 %v511, %v539
  %541 = vmatmul.f32.gmra.mxu0 %v33
  %v542 = vpop.f32.mrf.mxu0
  %v543 = vadd.f32 %v514, %v542
  %544 = vmatmul.f32.gmra.mxu0 %v40
  %v545 = vpop.f32.mrf.mxu0
  %v546 = vadd.f32 %v517, %v545
  %547 = vdwg.mxu0
  %548 = vmatpush.msra.mxu0 %v172
  %549 = vmatpush.msra.mxu0 %v170
  %550 = vmatpush.msra.mxu0 %v168
  %551 = vmatpush.msra.mxu0 %v166
  %552 = vmatpush.msra.mxu0 %v164
  %553 = vmatpush.msra.mxu0 %v162
  %554 = vmatpush.msra.mxu0 %v160
  %555 = vmatpush.msra.mxu0 %v158
  %556 = vmatpush.msra.mxu0 %v156
  %557 = vmatpush.msra.mxu0 %v154
  %558 = vmatpush.msra.mxu0 %v152
  %559 = vmatpush.msra.mxu0 %v150
  %560 = vmatpush.msra.mxu0 %v148
  %561 = vmatpush.msra.mxu0 %v146
  %562 = vmatpush.msra.mxu0 %v144
  %563 = vmatpush.msra.mxu0 %v142
  %564 = vmatmul.f32.gmra.mxu0 %v20
  %v565 = vpop.f32.mrf.mxu0
  %v566 = vadd.f32 %v537, %v565
  %567 = vmatmul.f32.gmra.mxu0 %v27
  %v568 = vpop.f32.mrf.mxu0
  %v569 = vadd.f32 %v540, %v568
  %570 = vmatmul.f32.gmra.mxu0 %v34
  %v571 = vpop.f32.mrf.mxu0
  %v572 = vadd.f32 %v543, %v571
  %573 = vmatmul.f32.gmra.mxu0 %v41
  %v574 = vpop.f32.mrf.mxu0
  %v575 = vadd.f32 %v546, %v574
  %576 = vdwg.mxu0
  %577 = vmatpush.msra.mxu0 %v204
  %578 = vmatpush.msra.mxu0 %v202
  %579 = vmatpush.msra.mxu0 %v200
  %580 = vmatpush.msra.mxu0 %v198
  %581 = vmatpush.msra.mxu0 %v196
  %582 = vmatpush.msra.mxu0 %v194
  %583 = vmatpush.msra.mxu0 %v192
  %584 = vmatpush.msra.mxu0 %v190
  %585 = vmatpush.msra.mxu0 %v188
  %586 = vmatpush.msra.mxu0 %v186
  %587 = vmatpush.msra.mxu0 %v184
  %588 = vmatpush.msra.mxu0 %v182
  %589 = vmatpush.msra.mxu0 %v180
  %590 = vmatpush.msra.mxu0 %v178
  %591 = vmatpush.msra.mxu0 %v176
  %592 = vmatpush.msra.mxu0 %v174
  %593 = vmatmul.f32.gmra.mxu0 %v21
  %v594 = vpop.f32.mrf.mxu0
  %v595 = vadd.f32 %v566, %v594
  %596 = vmatmul.f32.gmra.mxu0 %v28
  %v597 = vpop.f32.mrf.mxu0
  %v598 = vadd.f32 %v569, %v597
  %599 = vmatmul.f32.gmra.mxu0 %v35
  %v600 = vpop.f32.mrf.mxu0
  %v601 = vadd.f32 %v572, %v600
  %602 = vmatmul.f32.gmra.mxu0 %v42
  %v603 = vpop.f32.mrf.mxu0
  %v604 = vadd.f32 %v575, %v603
  %605 = vdwg.mxu0
  %606 = vmatpush.msra.mxu0 %v236
  %607 = vmatpush.msra.mxu0 %v234
  %608 = vmatpush.msra.mxu0 %v232
  %609 = vmatpush.msra.mxu0 %v230
  %610 = vmatpush.msra.mxu0 %v228
  %611 = vmatpush.msra.mxu0 %v226
  %612 = vmatpush.msra.mxu0 %v224
  %613 = vmatpush.msra.mxu0 %v222
  %614 = vmatpush.msra.mxu0 %v220
  %615 = vmatpush.msra.mxu0 %v218
  %616 = vmatpush.msra.mxu0 %v216
  %617 = vmatpush.msra.mxu0 %v214
  %618 = vmatpush.msra.mxu0 %v212
  %619 = vmatpush.msra.mxu0 %v210
  %620 = vmatpush.msra.mxu0 %v208
  %621 = vmatpush.msra.mxu0 %v206
  %622 = vmatmul.f32.gmra.mxu0 %v22
  %v623 = vpop.f32.mrf.mxu0
  %v624 = vadd.f32 %v595, %v623
  %625 = vmatmul.f32.gmra.mxu0 %v29
  %v626 = vpop.f32.mrf.mxu0
  %v627 = vadd.f32 %v598, %v626
  %628 = vmatmul.f32.gmra.mxu0 %v36
  %v629 = vpop.f32.mrf.mxu0
  %v630 = vadd.f32 %v601, %v629
  %631 = vmatmul.f32.gmra.mxu0 %v43
  %v632 = vpop.f32.mrf.mxu0
  %v633 = vadd.f32 %v604, %v632
  %634 = vdwg.mxu0
  %635 = vmatpush.msra.mxu0 0.0
  %636 = vmatpush.msra.mxu0 0.0
  %637 = vmatpush.msra.mxu0 0.0
  %638 = vmatpush.msra.mxu0 0.0
  %639 = vmatpush.msra.mxu0 0.0
  %640 = vmatpush.msra.mxu0 0.0
  %641 = vmatpush.msra.mxu0 0.0
  %642 = vmatpush.msra.mxu0 0.0
  %643 = vmatpush.msra.mxu0 0.0
  %644 = vmatpush.msra.mxu0 0.0
  %645 = vmatpush.msra.mxu0 0.0
  %646 = vmatpush.msra.mxu0 0.0
  %647 = vmatpush.msra.mxu0 %v244
  %648 = vmatpush.msra.mxu0 %v242
  %649 = vmatpush.msra.mxu0 %v240
  %650 = vmatpush.msra.mxu0 %v238
  %651 = vmatmul.f32.gmra.mxu0 %v247
  %v652 = vpop.f32.mrf.mxu0
  %v653 = vadd.f32 %v624, %v652
  %654 = vmatmul.f32.gmra.mxu0 %v250
  %v655 = vpop.f32.mrf.mxu0
  %v656 = vadd.f32 %v627, %v655
  %657 = vmatmul.f32.gmra.mxu0 %v253
  %v658 = vpop.f32.mrf.mxu0
  %v659 = vadd.f32 %v630, %v658
  %660 = vmatmul.f32.gmra.mxu0 %v256
  %v661 = vpop.f32.mrf.mxu0
  %v662 = vadd.f32 %v633, %v661
  %663 = vdwg.mxu0
  %vm664 = vcmask 277504
  %v665 = vsel %vm664, %v653, 0.0
  %v666 = vadd.f32 %v450, %v665
  %667 = vadd.xlane.f32.xlu0 %v666
  %v668 = vpop.xlane.xlu0 %667
  %v669 = vsel %vm664, %v656, 0.0
  %v670 = vadd.f32 %v453, %v669
  %671 = vadd.xlane.f32.xlu0 %v670
  %v672 = vpop.xlane.xlu0 %671
  %v673 = vsel %vm664, %v659, 0.0
  %v674 = vadd.f32 %v456, %v673
  %675 = vadd.xlane.f32.xlu0 %v674
  %v676 = vpop.xlane.xlu0 %675
  %v677 = vsel %vm664, %v662, 0.0
  %v678 = vadd.f32 %v459, %v677
  %679 = vadd.xlane.f32.xlu0 %v678
  %v680 = vpop.xlane.xlu0 %679
  %v681 = vrcp.pop 162.0
  %v682 = vmul.f32 162.0, %v681
  %v683 = vsub.f32 1.0, %v682
  %v684 = vmul.f32 %v681, %v683
  %v685 = vadd.f32 %v681, %v684
  %vm686 = vweird.f32 %v681
  %v687 = vsel %vm686, %v681, %v685
  %v688 = vmul.f32 %v668, %v687
  %v689 = vmul.f32 %v672, %v687
  %v690 = vmul.f32 %v676, %v687
  %v691 = vmul.f32 %v680, %v687
  %v692 = vsub.f32 %v450, %v688
  %v693 = vsub.f32 %v653, %v688
  %v694 = vsub.f32 %v453, %v689
  %v695 = vsub.f32 %v656, %v689
  %v696 = vsub.f32 %v456, %v690
  %v697 = vsub.f32 %v659, %v690
  %v698 = vsub.f32 %v459, %v691
  %v699 = vsub.f32 %v662, %v691
  %v700 = vmul.f32 %v692, %v692
  %v701 = vmul.f32 %v693, %v693
  %v702 = vmul.f32 %v694, %v694
  %v703 = vmul.f32 %v695, %v695
  %v704 = vmul.f32 %v696, %v696
  %v705 = vmul.f32 %v697, %v697
  %v706 = vmul.f32 %v698, %v698
  %v707 = vmul.f32 %v699, %v699
  %v708 = vsel %vm664, %v701, 0.0
  %v709 = vadd.f32 %v700, %v708
  %710 = vadd.xlane.f32.xlu0 %v709
  %v711 = vpop.xlane.xlu0 %710
  %v712 = vsel %vm664, %v703, 0.0
  %v713 = vadd.f32 %v702, %v712
  %714 = vadd.xlane.f32.xlu0 %v713
  %v715 = vpop.xlane.xlu0 %714
  %v716 = vsel %vm664, %v705, 0.0
  %v717 = vadd.f32 %v704, %v716
  %718 = vadd.xlane.f32.xlu0 %v717
  %v719 = vpop.xlane.xlu0 %718
  %v720 = vsel %vm664, %v707, 0.0
  %v721 = vadd.f32 %v706, %v720
  %722 = vadd.xlane.f32.xlu0 %v721
  %v723 = vpop.xlane.xlu0 %722
  %v724 = vmul.f32 %v711, %v687
  %v725 = vmul.f32 %v715, %v687
  %v726 = vmul.f32 %v719, %v687
  %v727 = vmul.f32 %v723, %v687
  %v728 = vld [vmem:[%s2] sm:$0xff]
  %v729 = vld [vmem:[%s2 + $0x8] sm:$0xff]
  %v730 = vld [vmem:[%s2 + $0x10] sm:$0xff]
  %v731 = vld [vmem:[%s2 + $0x18] sm:$0xff]
  %v732 = vadd.f32 %v724, 1e-05
  %v733 = vadd.f32 %v725, 1e-05
  %v734 = vadd.f32 %v726, 1e-05
  %v735 = vadd.f32 %v727, 1e-05
  %v736 = vrsqrt.pop %v732
  %v737 = vmul.f32 %v736, %v732
  %v738 = vmul.f32 %v737, %v736
  %v739 = vmul.f32 0.5, %v738
  %v740 = vsub.f32 1.5, %v739
  %v741 = vmul.f32 %v736, %v740
  %vm742 = vweird.f32 %v732
  %vm743 = vweird.f32 %v736
  %vm744 = vmor %vm742, %vm743
  %v745 = vsel %vm744, %v736, %v741
  %v746 = vrsqrt.pop %v733
  %v747 = vmul.f32 %v746, %v733
  %v748 = vmul.f32 %v747, %v746
  %v749 = vmul.f32 0.5, %v748
  %v750 = vsub.f32 1.5, %v749
  %v751 = vmul.f32 %v746, %v750
  %vm752 = vweird.f32 %v733
  %vm753 = vweird.f32 %v746
  %vm754 = vmor %vm752, %vm753
  %v755 = vsel %vm754, %v746, %v751
  %v756 = vrsqrt.pop %v734
  %v757 = vmul.f32 %v756, %v734
  %v758 = vmul.f32 %v757, %v756
  %v759 = vmul.f32 0.5, %v758
  %v760 = vsub.f32 1.5, %v759
  %v761 = vmul.f32 %v756, %v760
  %vm762 = vweird.f32 %v734
  %vm763 = vweird.f32 %v756
  %vm764 = vmor %vm762, %vm763
  %v765 = vsel %vm764, %v756, %v761
  %v766 = vrsqrt.pop %v735
  %v767 = vmul.f32 %v766, %v735
  %v768 = vmul.f32 %v767, %v766
  %v769 = vmul.f32 0.5, %v768
  %v770 = vsub.f32 1.5, %v769
  %v771 = vmul.f32 %v766, %v770
  %vm772 = vweird.f32 %v735
  %vm773 = vweird.f32 %v766
  %vm774 = vmor %vm772, %vm773
  %v775 = vsel %vm774, %v766, %v771
  %v776 = vmul.f32 %v728, %v745
  %v777 = vmul.f32 %v729, %v755
  %v778 = vmul.f32 %v730, %v765
  %v779 = vmul.f32 %v731, %v775
  %781 = vset.pattern.permute.xlu0 0
  %782 = vperm.xlu0 %781, %v776
  %v783 = vpop.permute.xlu0 %782
  %786 = vset.pattern.permute.xlu0 0
  %787 = vperm.xlu0 %786, %v777
  %v788 = vpop.permute.xlu0 %787
  %791 = vset.pattern.permute.xlu0 0
  %792 = vperm.xlu0 %791, %v778
  %v793 = vpop.permute.xlu0 %792
  %796 = vset.pattern.permute.xlu0 0
  %797 = vperm.xlu0 %796, %v779
  %v798 = vpop.permute.xlu0 %797
  %v800 = vmul.f32 %v692, %v783
  %v801 = vmul.f32 %v693, %v783
  %v802 = vmul.f32 %v694, %v788
  %v803 = vmul.f32 %v695, %v788
  %v804 = vmul.f32 %v696, %v793
  %v805 = vmul.f32 %v697, %v793
  %v806 = vmul.f32 %v698, %v798
  %v807 = vmul.f32 %v699, %v798
  %v808 = vld [vmem:[%s3] sm:$0xff]
  %v809 = vld [vmem:[%s3 + $0x8] sm:$0xff]
  %v810 = vld [vmem:[%s3 + $0x10] sm:$0xff]
  %v811 = vld [vmem:[%s3 + $0x18] sm:$0xff]
  %813 = vset.pattern.permute.xlu0 0
  %814 = vperm.xlu0 %813, %v808
  %v815 = vpop.permute.xlu0 %814
  %818 = vset.pattern.permute.xlu0 0
  %819 = vperm.xlu0 %818, %v809
  %v820 = vpop.permute.xlu0 %819
  %823 = vset.pattern.permute.xlu0 0
  %824 = vperm.xlu0 %823, %v810
  %v825 = vpop.permute.xlu0 %824
  %828 = vset.pattern.permute.xlu0 0
  %829 = vperm.xlu0 %828, %v811
  %v830 = vpop.permute.xlu0 %829
  %v832 = vadd.f32 %v800, %v815
  %v833 = vadd.f32 %v801, %v815
  %v834 = vadd.f32 %v802, %v820
  %v835 = vadd.f32 %v803, %v820
  %v836 = vadd.f32 %v804, %v825
  %v837 = vadd.f32 %v805, %v825
  %v838 = vadd.f32 %v806, %v830
  %v839 = vadd.f32 %v807, %v830
  %v840 = vmax.f32 %v832, 0.0
  %v841 = vmax.f32 %v833, 0.0
  %v842 = vmax.f32 %v834, 0.0
  %v843 = vmax.f32 %v835, 0.0
  %v844 = vmax.f32 %v836, 0.0
  %v845 = vmax.f32 %v837, 0.0
  %v846 = vmax.f32 %v838, 0.0
  %v847 = vmax.f32 %v839, 0.0
  %848 = vst [vmem:[%s4] sm:$0xff] %v840
  %849 = vst.msk [vmem:[%s4 + $0x8] sm:$0xff] %vm664, %v841
  %850 = vst [vmem:[%s4 + $0x10] sm:$0xff] %v842
  %851 = vst.msk [vmem:[%s4 + $0x18] sm:$0xff] %vm664, %v843
  %852 = vst [vmem:[%s4 + $0x20] sm:$0xff] %v844
  %853 = vst.msk [vmem:[%s4 + $0x28] sm:$0xff] %vm664, %v845
  %854 = vst [vmem:[%s4 + $0x30] sm:$0xff] %v846
  %855 = vst.msk [vmem:[%s4 + $0x38] sm:$0xff] %vm664, %v847
  // Predicated region
  $region18: #{dqn_forward.6} parent=0 // pred_check
    _
  $region19: #{dqn_forward.6} parent=0 // pred_check_branch
    %857 = sbr.rel (0) target = $region21
  $region20: #{dqn_forward.6} parent=0 // pred_region
    _
  $region21: #{dqn_forward.6} parent=0 // pred_fallthru
    _
  // Predicated region
  $region22: #{dqn_forward.6} parent=0 // pred_check
    _
  $region23: #{dqn_forward.6} parent=0 // pred_check_branch
    %859 = sbr.rel (0) target = $region25
  $region24: #{dqn_forward.6} parent=0 // pred_region
    _
  $region25: #{dqn_forward.6} parent=0 // pred_fallthru
    _

// kernel: dqn_forward.7
$region0: #{dqn_forward.7}
  #allocation0 [shape = 'u32[]', space=smem, size = 0x4, offset = 0x4, fixed_abs, tag = 'smem constant byte address 0x4 - core index']
  #allocation1 [shape = 'u32[72,128]{1,0:T(1,128)}', space=vmem, size = 0x9000, scoped, tag = 'internal scratch']
  %s0 = inlined_call_operand.vmem [shape: f32[800,18], index: 0, kind: input, shape index: {}]
  %s1 = inlined_call_operand.vmem [shape: f32[64,800], index: 1, kind: input, shape index: {}]
  %s2 = inlined_call_operand.vmem [shape: f32[64,1], index: 2, kind: input, shape index: {}]
  %s3 = inlined_call_operand.vmem [shape: f32[64,1], index: 3, kind: input, shape index: {}]
  %s4 = inlined_call_operand.vmem [shape: f32[4,64,9], index: 4, kind: input, shape index: {}]
  %s5 = inlined_call_operand.vmem [shape: f32[4,1], index: 5, kind: input, shape index: {}]
  %s6 = inlined_call_operand.vmem [shape: f32[4,2], index: 6, kind: output, shape index: {}]
  %s7 = sld [smem:[#allocation0]]
  $region34: #{dqn_forward.7} parent=0
    _
  %s9 = ssub.s32 1, %s7
  %s10 = scalar_select 0, %s9, %s7
  // Predicated region
  $region2: #{dqn_forward.7} parent=0 // pred_check
    _
  $region3: #{dqn_forward.7} parent=0 // pred_check_branch
    %12 = sbr.rel (0) target = $region5
  $region4: #{dqn_forward.7} parent=0 // pred_region
    _
  $region5: #{dqn_forward.7} parent=0 // pred_fallthru
    _
  // Predicated region
  $region6: #{dqn_forward.7} parent=0 // pred_check
    _
  $region7: #{dqn_forward.7} parent=0 // pred_check_branch
    %14 = sbr.rel (0) target = $region9
  $region8: #{dqn_forward.7} parent=0 // pred_region
    _
  $region9: #{dqn_forward.7} parent=0 // pred_fallthru
    _
  // Predicated region
  $region10: #{dqn_forward.7} parent=0 // pred_check
    _
  $region11: #{dqn_forward.7} parent=0 // pred_check_branch
    %16 = sbr.rel (0) target = $region13
  $region12: #{dqn_forward.7} parent=0 // pred_region
    _
  $region13: #{dqn_forward.7} parent=0 // pred_fallthru
    _
  // Predicated region
  $region14: #{dqn_forward.7} parent=0 // pred_check
    _
  $region15: #{dqn_forward.7} parent=0 // pred_check_branch
    %18 = sbr.rel (0) target = $region17
  $region16: #{dqn_forward.7} parent=0 // pred_region
    _
  $region17: #{dqn_forward.7} parent=0 // pred_fallthru
    _
  // Predicated region
  $region18: #{dqn_forward.7} parent=0 // pred_check
    _
  $region19: #{dqn_forward.7} parent=0 // pred_check_branch
    %20 = sbr.rel (0) target = $region21
  $region20: #{dqn_forward.7} parent=0 // pred_region
    _
  $region21: #{dqn_forward.7} parent=0 // pred_fallthru
    _
  // Predicated region
  $region22: #{dqn_forward.7} parent=0 // pred_check
    _
  $region23: #{dqn_forward.7} parent=0 // pred_check_branch
    %22 = sbr.rel (0) target = $region25
  $region24: #{dqn_forward.7} parent=0 // pred_region
    _
  $region25: #{dqn_forward.7} parent=0 // pred_fallthru
    _
  %v23 = vld [vmem:[%s1] sm:$0xff]
  %v24 = vld [vmem:[%s1 + $0x8] sm:$0xff]
  %v25 = vld [vmem:[%s1 + $0x10] sm:$0xff]
  %v26 = vld [vmem:[%s1 + $0x18] sm:$0xff]
  %v27 = vld [vmem:[%s1 + $0x20] sm:$0xff]
  %v28 = vld [vmem:[%s1 + $0x28] sm:$0xff]
  %v29 = vld [vmem:[%s1 + $0x30] sm:$0xff]
  %v30 = vld [vmem:[%s1 + $0x38] sm:$0xff]
  %v31 = vld [vmem:[%s1 + $0x40] sm:$0xff]
  %v32 = vld [vmem:[%s1 + $0x48] sm:$0xff]
  %v33 = vld [vmem:[%s1 + $0x50] sm:$0xff]
  %v34 = vld [vmem:[%s1 + $0x58] sm:$0xff]
  %v35 = vld [vmem:[%s1 + $0x60] sm:$0xff]
  %v36 = vld [vmem:[%s1 + $0x68] sm:$0xff]
  %v37 = vld [vmem:[%s1 + $0x70] sm:$0xff]
  %v38 = vld [vmem:[%s1 + $0x78] sm:$0xff]
  %v39 = vld [vmem:[%s1 + $0x80] sm:$0xff]
  %v40 = vld [vmem:[%s1 + $0x88] sm:$0xff]
  %v41 = vld [vmem:[%s1 + $0x90] sm:$0xff]
  %v42 = vld [vmem:[%s1 + $0x98] sm:$0xff]
  %v43 = vld [vmem:[%s1 + $0xa0] sm:$0xff]
  %v44 = vld [vmem:[%s1 + $0xa8] sm:$0xff]
  %v45 = vld [vmem:[%s1 + $0xb0] sm:$0xff]
  %v46 = vld [vmem:[%s1 + $0xb8] sm:$0xff]
  %v47 = vld [vmem:[%s1 + $0xc0] sm:$0xff]
  %v48 = vld [vmem:[%s1 + $0xc8] sm:$0xff]
  %v49 = vld [vmem:[%s1 + $0xd0] sm:$0xff]
  %v50 = vld [vmem:[%s1 + $0xd8] sm:$0xff]
  %v51 = vld [vmem:[%s1 + $0xe0] sm:$0xff]
  %v52 = vld [vmem:[%s1 + $0xe8] sm:$0xff]
  %v53 = vld [vmem:[%s1 + $0xf0] sm:$0xff]
  %v54 = vld [vmem:[%s1 + $0xf8] sm:$0xff]
  %v55 = vld [vmem:[%s1 + $0x100] sm:$0xff]
  %v56 = vld [vmem:[%s1 + $0x108] sm:$0xff]
  %v57 = vld [vmem:[%s1 + $0x110] sm:$0xff]
  %v58 = vld [vmem:[%s1 + $0x118] sm:$0xff]
  %v59 = vld [vmem:[%s1 + $0x120] sm:$0xff]
  %v60 = vld [vmem:[%s1 + $0x128] sm:$0xff]
  %v61 = vld [vmem:[%s1 + $0x130] sm:$0xff]
  %v62 = vld [vmem:[%s1 + $0x138] sm:$0xff]
  %v63 = vld [vmem:[%s1 + $0x140] sm:$0xff]
  %v64 = vld [vmem:[%s1 + $0x148] sm:$0xff]
  %v65 = vld [vmem:[%s1 + $0x150] sm:$0xff]
  %v66 = vld [vmem:[%s1 + $0x158] sm:$0xff]
  %v67 = vld [vmem:[%s1 + $0x160] sm:$0xff]
  %v68 = vld [vmem:[%s1 + $0x168] sm:$0xff]
  %v69 = vld [vmem:[%s1 + $0x170] sm:$0xff]
  %v70 = vld [vmem:[%s1 + $0x178] sm:$0xff]
  %v71 = vld [vmem:[%s1 + $0x180] sm:$0xff]
  %v72 = vld [vmem:[%s1 + $0x188] sm:$0xff]
  %v73 = vld [vmem:[%s1 + $0x190] sm:$0xff]
  %v74 = vld [vmem:[%s1 + $0x198] sm:$0xff]
  %v75 = vld [vmem:[%s1 + $0x1a0] sm:$0xff]
  %v76 = vld [vmem:[%s1 + $0x1a8] sm:$0xff]
  %v77 = vld [vmem:[%s1 + $0x1b0] sm:$0xff]
  %v78 = vld [vmem:[%s1 + $0x1b8] sm:$0xff]
  %v79 = vld [vmem:[%s0] sm:$0xff]
  %v80 = vld [vmem:[%s0 + $0x8] sm:$0xff]
  %v81 = vld [vmem:[%s0 + $0x10] sm:$0xff]
  %v82 = vld [vmem:[%s0 + $0x18] sm:$0xff]
  %v83 = vld [vmem:[%s0 + $0x20] sm:$0xff]
  %v84 = vld [vmem:[%s0 + $0x28] sm:$0xff]
  %v85 = vld [vmem:[%s0 + $0x30] sm:$0xff]
  %v86 = vld [vmem:[%s0 + $0x38] sm:$0xff]
  %v87 = vld [vmem:[%s0 + $0x40] sm:$0xff]
  %v88 = vld [vmem:[%s0 + $0x48] sm:$0xff]
  %v89 = vld [vmem:[%s0 + $0x50] sm:$0xff]
  %v90 = vld [vmem:[%s0 + $0x58] sm:$0xff]
  %v91 = vld [vmem:[%s0 + $0x60] sm:$0xff]
  %v92 = vld [vmem:[%s0 + $0x68] sm:$0xff]
  %v93 = vld [vmem:[%s0 + $0x70] sm:$0xff]
  %v94 = vld [vmem:[%s0 + $0x78] sm:$0xff]
  %v95 = vld [vmem:[%s0 + $0x80] sm:$0xff]
  %v96 = vld [vmem:[%s0 + $0x88] sm:$0xff]
  %v97 = vld [vmem:[%s0 + $0x90] sm:$0xff]
  %v98 = vld [vmem:[%s0 + $0x98] sm:$0xff]
  %v99 = vld [vmem:[%s0 + $0xa0] sm:$0xff]
  %v100 = vld [vmem:[%s0 + $0xa8] sm:$0xff]
  %v101 = vld [vmem:[%s0 + $0xb0] sm:$0xff]
  %v102 = vld [vmem:[%s0 + $0xb8] sm:$0xff]
  %v103 = vld [vmem:[%s0 + $0xc0] sm:$0xff]
  %v104 = vld [vmem:[%s0 + $0xc8] sm:$0xff]
  %v105 = vld [vmem:[%s0 + $0xd0] sm:$0xff]
  %v106 = vld [vmem:[%s0 + $0xd8] sm:$0xff]
  %v107 = vld [vmem:[%s0 + $0xe0] sm:$0xff]
  %v108 = vld [vmem:[%s0 + $0xe8] sm:$0xff]
  %v109 = vld [vmem:[%s0 + $0xf0] sm:$0xff]
  %v110 = vld [vmem:[%s0 + $0xf8] sm:$0xff]
  %v111 = vld [vmem:[%s0 + $0x100] sm:$0xff]
  %v112 = vld [vmem:[%s0 + $0x108] sm:$0xff]
  %v113 = vld [vmem:[%s0 + $0x110] sm:$0xff]
  %v114 = vld [vmem:[%s0 + $0x118] sm:$0xff]
  %v115 = vld [vmem:[%s0 + $0x120] sm:$0xff]
  %v116 = vld [vmem:[%s0 + $0x128] sm:$0xff]
  %v117 = vld [vmem:[%s0 + $0x130] sm:$0xff]
  %v118 = vld [vmem:[%s0 + $0x138] sm:$0xff]
  %v119 = vld [vmem:[%s0 + $0x140] sm:$0xff]
  %v120 = vld [vmem:[%s0 + $0x148] sm:$0xff]
  %v121 = vld [vmem:[%s0 + $0x150] sm:$0xff]
  %v122 = vld [vmem:[%s0 + $0x158] sm:$0xff]
  %v123 = vld [vmem:[%s0 + $0x160] sm:$0xff]
  %v124 = vld [vmem:[%s0 + $0x168] sm:$0xff]
  %v125 = vld [vmem:[%s0 + $0x170] sm:$0xff]
  %v126 = vld [vmem:[%s0 + $0x178] sm:$0xff]
  %v127 = vld [vmem:[%s0 + $0x180] sm:$0xff]
  %v128 = vld [vmem:[%s0 + $0x188] sm:$0xff]
  %v129 = vld [vmem:[%s0 + $0x190] sm:$0xff]
  %v130 = vld [vmem:[%s0 + $0x198] sm:$0xff]
  %v131 = vld [vmem:[%s0 + $0x1a0] sm:$0xff]
  %v132 = vld [vmem:[%s0 + $0x1a8] sm:$0xff]
  %v133 = vld [vmem:[%s0 + $0x1b0] sm:$0xff]
  %v134 = vld [vmem:[%s0 + $0x1b8] sm:$0xff]
  %v135 = vld [vmem:[%s0 + $0x1c0] sm:$0xff]
  %v136 = vld [vmem:[%s0 + $0x1c8] sm:$0xff]
  %v137 = vld [vmem:[%s0 + $0x1d0] sm:$0xff]
  %v138 = vld [vmem:[%s0 + $0x1d8] sm:$0xff]
  %v139 = vld [vmem:[%s0 + $0x1e0] sm:$0xff]
  %v140 = vld [vmem:[%s0 + $0x1e8] sm:$0xff]
  %v141 = vld [vmem:[%s0 + $0x1f0] sm:$0xff]
  %v142 = vld [vmem:[%s0 + $0x1f8] sm:$0xff]
  %v143 = vld [vmem:[%s0 + $0x200] sm:$0xff]
  %v144 = vld [vmem:[%s0 + $0x208] sm:$0xff]
  %v145 = vld [vmem:[%s0 + $0x210] sm:$0xff]
  %v146 = vld [vmem:[%s0 + $0x218] sm:$0xff]
  %v147 = vld [vmem:[%s0 + $0x220] sm:$0xff]
  %v148 = vld [vmem:[%s0 + $0x228] sm:$0xff]
  %v149 = vld [vmem:[%s0 + $0x230] sm:$0xff]
  %v150 = vld [vmem:[%s0 + $0x238] sm:$0xff]
  %v151 = vld [vmem:[%s0 + $0x240] sm:$0xff]
  %v152 = vld [vmem:[%s0 + $0x248] sm:$0xff]
  %v153 = vld [vmem:[%s0 + $0x250] sm:$0xff]
  %v154 = vld [vmem:[%s0 + $0x258] sm:$0xff]
  %v155 = vld [vmem:[%s0 + $0x260] sm:$0xff]
  %v156 = vld [vmem:[%s0 + $0x268] sm:$0xff]
  %v157 = vld [vmem:[%s0 + $0x270] sm:$0xff]
  %v158 = vld [vmem:[%s0 + $0x278] sm:$0xff]
  %v159 = vld [vmem:[%s0 + $0x280] sm:$0xff]
  %v160 = vld [vmem:[%s0 + $0x288] sm:$0xff]
  %v161 = vld [vmem:[%s0 + $0x290] sm:$0xff]
  %v162 = vld [vmem:[%s0 + $0x298] sm:$0xff]
  %v163 = vld [vmem:[%s0 + $0x2a0] sm:$0xff]
  %v164 = vld [vmem:[%s0 + $0x2a8] sm:$0xff]
  %v165 = vld [vmem:[%s0 + $0x2b0] sm:$0xff]
  %v166 = vld [vmem:[%s0 + $0x2b8] sm:$0xff]
  %v167 = vld [vmem:[%s0 + $0x2c0] sm:$0xff]
  %v168 = vld [vmem:[%s0 + $0x2c8] sm:$0xff]
  %v169 = vld [vmem:[%s0 + $0x2d0] sm:$0xff]
  %v170 = vld [vmem:[%s0 + $0x2d8] sm:$0xff]
  %v171 = vld [vmem:[%s0 + $0x2e0] sm:$0xff]
  %v172 = vld [vmem:[%s0 + $0x2e8] sm:$0xff]
  %v173 = vld [vmem:[%s0 + $0x2f0] sm:$0xff]
  %v174 = vld [vmem:[%s0 + $0x2f8] sm:$0xff]
  %v175 = vld [vmem:[%s0 + $0x300] sm:$0xff]
  %v176 = vld [vmem:[%s0 + $0x308] sm:$0xff]
  %v177 = vld [vmem:[%s0 + $0x310] sm:$0xff]
  %v178 = vld [vmem:[%s0 + $0x318] sm:$0xff]
  %vm179 = vcmask 261120
  %v181 = vsel %vm179, %v29, 0
  %v184 = vsel %vm179, %v36, 0
  %v187 = vsel %vm179, %v43, 0
  %v190 = vsel %vm179, %v50, 0
  %v193 = vsel %vm179, %v57, 0
  %v196 = vsel %vm179, %v64, 0
  %v199 = vsel %vm179, %v71, 0
  %v202 = vsel %vm179, %v78, 0
  %204 = vmatpush.msra.mxu0 %v94
  %205 = vmatpush.msra.mxu0 %v93
  %206 = vmatpush.msra.mxu0 %v92
  %207 = vmatpush.msra.mxu0 %v91
  %208 = vmatpush.msra.mxu0 %v90
  %209 = vmatpush.msra.mxu0 %v89
  %210 = vmatpush.msra.mxu0 %v88
  %211 = vmatpush.msra.mxu0 %v87
  %212 = vmatpush.msra.mxu0 %v86
  %213 = vmatpush.msra.mxu0 %v85
  %214 = vmatpush.msra.mxu0 %v84
  %215 = vmatpush.msra.mxu0 %v83
  %216 = vmatpush.msra.mxu0 %v82
  %217 = vmatpush.msra.mxu0 %v81
  %218 = vmatpush.msra.mxu0 %v80
  %219 = vmatpush.msra.mxu0 %v79
  %220 = vmatmul.f32.gmra.mxu0 %v23
  %v221 = vpop.f32.mrf.mxu0
  %v222 = vadd.f32 0.0, %v221
  %223 = vmatmul.f32.gmra.mxu0 %v30
  %v224 = vpop.f32.mrf.mxu0
  %v225 = vadd.f32 0.0, %v224
  %226 = vmatmul.f32.gmra.mxu0 %v37
  %v227 = vpop.f32.mrf.mxu0
  %v228 = vadd.f32 0.0, %v227
  %229 = vmatmul.f32.gmra.mxu0 %v44
  %v230 = vpop.f32.mrf.mxu0
  %v231 = vadd.f32 0.0, %v230
  %232 = vmatmul.f32.gmra.mxu0 %v51
  %v233 = vpop.f32.mrf.mxu0
  %v234 = vadd.f32 0.0, %v233
  %235 = vmatmul.f32.gmra.mxu0 %v58
  %v236 = vpop.f32.mrf.mxu0
  %v237 = vadd.f32 0.0, %v236
  %238 = vmatmul.f32.gmra.mxu0 %v65
  %v239 = vpop.f32.mrf.mxu0
  %v240 = vadd.f32 0.0, %v239
  %241 = vmatmul.f32.gmra.mxu0 %v72
  %v242 = vpop.f32.mrf.mxu0
  %v243 = vadd.f32 0.0, %v242
  %244 = vdwg.mxu0
  %245 = vmatpush.msra.mxu0 %v110
  %246 = vmatpush.msra.mxu0 %v109
  %247 = vmatpush.msra.mxu0 %v108
  %248 = vmatpush.msra.mxu0 %v107
  %249 = vmatpush.msra.mxu0 %v106
  %250 = vmatpush.msra.mxu0 %v105
  %251 = vmatpush.msra.mxu0 %v104
  %252 = vmatpush.msra.mxu0 %v103
  %253 = vmatpush.msra.mxu0 %v102
  %254 = vmatpush.msra.mxu0 %v101
  %255 = vmatpush.msra.mxu0 %v100
  %256 = vmatpush.msra.mxu0 %v99
  %257 = vmatpush.msra.mxu0 %v98
  %258 = vmatpush.msra.mxu0 %v97
  %259 = vmatpush.msra.mxu0 %v96
  %260 = vmatpush.msra.mxu0 %v95
  %261 = vmatmul.f32.gmra.mxu0 %v24
  %v262 = vpop.f32.mrf.mxu0
  %v263 = vadd.f32 %v222, %v262
  %264 = vmatmul.f32.gmra.mxu0 %v31
  %v265 = vpop.f32.mrf.mxu0
  %v266 = vadd.f32 %v225, %v265
  %267 = vmatmul.f32.gmra.mxu0 %v38
  %v268 = vpop.f32.mrf.mxu0
  %v269 = vadd.f32 %v228, %v268
  %270 = vmatmul.f32.gmra.mxu0 %v45
  %v271 = vpop.f32.mrf.mxu0
  %v272 = vadd.f32 %v231, %v271
  %273 = vmatmul.f32.gmra.mxu0 %v52
  %v274 = vpop.f32.mrf.mxu0
  %v275 = vadd.f32 %v234, %v274
  %276 = vmatmul.f32.gmra.mxu0 %v59
  %v277 = vpop.f32.mrf.mxu0
  %v278 = vadd.f32 %v237, %v277
  %279 = vmatmul.f32.gmra.mxu0 %v66
  %v280 = vpop.f32.mrf.mxu0
  %v281 = vadd.f32 %v240, %v280
  %282 = vmatmul.f32.gmra.mxu0 %v73
  %v283 = vpop.f32.mrf.mxu0
  %v284 = vadd.f32 %v243, %v283
  %285 = vdwg.mxu0
  %286 = vmatpush.msra.mxu0 %v126
  %287 = vmatpush.msra.mxu0 %v125
  %288 = vmatpush.msra.mxu0 %v124
  %289 = vmatpush.msra.mxu0 %v123
  %290 = vmatpush.msra.mxu0 %v122
  %291 = vmatpush.msra.mxu0 %v121
  %292 = vmatpush.msra.mxu0 %v120
  %293 = vmatpush.msra.mxu0 %v119
  %294 = vmatpush.msra.mxu0 %v118
  %295 = vmatpush.msra.mxu0 %v117
  %296 = vmatpush.msra.mxu0 %v116
  %297 = vmatpush.msra.mxu0 %v115
  %298 = vmatpush.msra.mxu0 %v114
  %299 = vmatpush.msra.mxu0 %v113
  %300 = vmatpush.msra.mxu0 %v112
  %301 = vmatpush.msra.mxu0 %v111
  %302 = vmatmul.f32.gmra.mxu0 %v25
  %v303 = vpop.f32.mrf.mxu0
  %v304 = vadd.f32 %v263, %v303
  %305 = vmatmul.f32.gmra.mxu0 %v32
  %v306 = vpop.f32.mrf.mxu0
  %v307 = vadd.f32 %v266, %v306
  %308 = vmatmul.f32.gmra.mxu0 %v39
  %v309 = vpop.f32.mrf.mxu0
  %v310 = vadd.f32 %v269, %v309
  %311 = vmatmul.f32.gmra.mxu0 %v46
  %v312 = vpop.f32.mrf.mxu0
  %v313 = vadd.f32 %v272, %v312
  %314 = vmatmul.f32.gmra.mxu0 %v53
  %v315 = vpop.f32.mrf.mxu0
  %v316 = vadd.f32 %v275, %v315
  %317 = vmatmul.f32.gmra.mxu0 %v60
  %v318 = vpop.f32.mrf.mxu0
  %v319 = vadd.f32 %v278, %v318
  %320 = vmatmul.f32.gmra.mxu0 %v67
  %v321 = vpop.f32.mrf.mxu0
  %v322 = vadd.f32 %v281, %v321
  %323 = vmatmul.f32.gmra.mxu0 %v74
  %v324 = vpop.f32.mrf.mxu0
  %v325 = vadd.f32 %v284, %v324
  %326 = vdwg.mxu0
  %327 = vmatpush.msra.mxu0 %v142
  %328 = vmatpush.msra.mxu0 %v141
  %329 = vmatpush.msra.mxu0 %v140
  %330 = vmatpush.msra.mxu0 %v139
  %331 = vmatpush.msra.mxu0 %v138
  %332 = vmatpush.msra.mxu0 %v137
  %333 = vmatpush.msra.mxu0 %v136
  %334 = vmatpush.msra.mxu0 %v135
  %335 = vmatpush.msra.mxu0 %v134
  %336 = vmatpush.msra.mxu0 %v133
  %337 = vmatpush.msra.mxu0 %v132
  %338 = vmatpush.msra.mxu0 %v131
  %339 = vmatpush.msra.mxu0 %v130
  %340 = vmatpush.msra.mxu0 %v129
  %341 = vmatpush.msra.mxu0 %v128
  %342 = vmatpush.msra.mxu0 %v127
  %343 = vmatmul.f32.gmra.mxu0 %v26
  %v344 = vpop.f32.mrf.mxu0
  %v345 = vadd.f32 %v304, %v344
  %346 = vmatmul.f32.gmra.mxu0 %v33
  %v347 = vpop.f32.mrf.mxu0
  %v348 = vadd.f32 %v307, %v347
  %349 = vmatmul.f32.gmra.mxu0 %v40
  %v350 = vpop.f32.mrf.mxu0
  %v351 = vadd.f32 %v310, %v350
  %352 = vmatmul.f32.gmra.mxu0 %v47
  %v353 = vpop.f32.mrf.mxu0
  %v354 = vadd.f32 %v313, %v353
  %355 = vmatmul.f32.gmra.mxu0 %v54
  %v356 = vpop.f32.mrf.mxu0
  %v357 = vadd.f32 %v316, %v356
  %358 = vmatmul.f32.gmra.mxu0 %v61
  %v359 = vpop.f32.mrf.mxu0
  %v360 = vadd.f32 %v319, %v359
  %361 = vmatmul.f32.gmra.mxu0 %v68
  %v362 = vpop.f32.mrf.mxu0
  %v363 = vadd.f32 %v322, %v362
  %364 = vmatmul.f32.gmra.mxu0 %v75
  %v365 = vpop.f32.mrf.mxu0
  %v366 = vadd.f32 %v325, %v365
  %367 = vdwg.mxu0
  %368 = vmatpush.msra.mxu0 %v158
  %369 = vmatpush.msra.mxu0 %v157
  %370 = vmatpush.msra.mxu0 %v156
  %371 = vmatpush.msra.mxu0 %v155
  %372 = vmatpush.msra.mxu0 %v154
  %373 = vmatpush.msra.mxu0 %v153
  %374 = vmatpush.msra.mxu0 %v152
  %375 = vmatpush.msra.mxu0 %v151
  %376 = vmatpush.msra.mxu0 %v150
  %377 = vmatpush.msra.mxu0 %v149
  %378 = vmatpush.msra.mxu0 %v148
  %379 = vmatpush.msra.mxu0 %v147
  %380 = vmatpush.msra.mxu0 %v146
  %381 = vmatpush.msra.mxu0 %v145
  %382 = vmatpush.msra.mxu0 %v144
  %383 = vmatpush.msra.mxu0 %v143
  %384 = vmatmul.f32.gmra.mxu0 %v27
  %v385 = vpop.f32.mrf.mxu0
  %v386 = vadd.f32 %v345, %v385
  %387 = vmatmul.f32.gmra.mxu0 %v34
  %v388 = vpop.f32.mrf.mxu0
  %v389 = vadd.f32 %v348, %v388
  %390 = vmatmul.f32.gmra.mxu0 %v41
  %v391 = vpop.f32.mrf.mxu0
  %v392 = vadd.f32 %v351, %v391
  %393 = vmatmul.f32.gmra.mxu0 %v48
  %v394 = vpop.f32.mrf.mxu0
  %v395 = vadd.f32 %v354, %v394
  %396 = vmatmul.f32.gmra.mxu0 %v55
  %v397 = vpop.f32.mrf.mxu0
  %v398 = vadd.f32 %v357, %v397
  %399 = vmatmul.f32.gmra.mxu0 %v62
  %v400 = vpop.f32.mrf.mxu0
  %v401 = vadd.f32 %v360, %v400
  %402 = vmatmul.f32.gmra.mxu0 %v69
  %v403 = vpop.f32.mrf.mxu0
  %v404 = vadd.f32 %v363, %v403
  %405 = vmatmul.f32.gmra.mxu0 %v76
  %v406 = vpop.f32.mrf.mxu0
  %v407 = vadd.f32 %v366, %v406
  %408 = vdwg.mxu0
  %409 = vmatpush.msra.mxu0 %v174
  %410 = vmatpush.msra.mxu0 %v173
  %411 = vmatpush.msra.mxu0 %v172
  %412 = vmatpush.msra.mxu0 %v171
  %413 = vmatpush.msra.mxu0 %v170
  %414 = vmatpush.msra.mxu0 %v169
  %415 = vmatpush.msra.mxu0 %v168
  %416 = vmatpush.msra.mxu0 %v167
  %417 = vmatpush.msra.mxu0 %v166
  %418 = vmatpush.msra.mxu0 %v165
  %419 = vmatpush.msra.mxu0 %v164
  %420 = vmatpush.msra.mxu0 %v163
  %421 = vmatpush.msra.mxu0 %v162
  %422 = vmatpush.msra.mxu0 %v161
  %423 = vmatpush.msra.mxu0 %v160
  %424 = vmatpush.msra.mxu0 %v159
  %425 = vmatmul.f32.gmra.mxu0 %v28
  %v426 = vpop.f32.mrf.mxu0
  %v427 = vadd.f32 %v386, %v426
  %428 = vmatmul.f32.gmra.mxu0 %v35
  %v429 = vpop.f32.mrf.mxu0
  %v430 = vadd.f32 %v389, %v429
  %431 = vmatmul.f32.gmra.mxu0 %v42
  %v432 = vpop.f32.mrf.mxu0
  %v433 = vadd.f32 %v392, %v432
  %434 = vmatmul.f32.gmra.mxu0 %v49
  %v435 = vpop.f32.mrf.mxu0
  %v436 = vadd.f32 %v395, %v435
  %437 = vmatmul.f32.gmra.mxu0 %v56
  %v438 = vpop.f32.mrf.mxu0
  %v439 = vadd.f32 %v398, %v438
  %440 = vmatmul.f32.gmra.mxu0 %v63
  %v441 = vpop.f32.mrf.mxu0
  %v442 = vadd.f32 %v401, %v441
  %443 = vmatmul.f32.gmra.mxu0 %v70
  %v444 = vpop.f32.mrf.mxu0
  %v445 = vadd.f32 %v404, %v444
  %446 = vmatmul.f32.gmra.mxu0 %v77
  %v447 = vpop.f32.mrf.mxu0
  %v448 = vadd.f32 %v407, %v447
  %449 = vdwg.mxu0
  %450 = vmatpush.msra.mxu0 0.0
  %451 = vmatpush.msra.mxu0 0.0
  %452 = vmatpush.msra.mxu0 0.0
  %453 = vmatpush.msra.mxu0 0.0
  %454 = vmatpush.msra.mxu0 0.0
  %455 = vmatpush.msra.mxu0 0.0
  %456 = vmatpush.msra.mxu0 0.0
  %457 = vmatpush.msra.mxu0 0.0
  %458 = vmatpush.msra.mxu0 0.0
  %459 = vmatpush.msra.mxu0 0.0
  %460 = vmatpush.msra.mxu0 0.0
  %461 = vmatpush.msra.mxu0 0.0
  %462 = vmatpush.msra.mxu0 %v178
  %463 = vmatpush.msra.mxu0 %v177
  %464 = vmatpush.msra.mxu0 %v176
  %465 = vmatpush.msra.mxu0 %v175
  %466 = vmatmul.f32.gmra.mxu0 %v181
  %v467 = vpop.f32.mrf.mxu0
  %v468 = vadd.f32 %v427, %v467
  %469 = vmatmul.f32.gmra.mxu0 %v184
  %v470 = vpop.f32.mrf.mxu0
  %v471 = vadd.f32 %v430, %v470
  %472 = vmatmul.f32.gmra.mxu0 %v187
  %v473 = vpop.f32.mrf.mxu0
  %v474 = vadd.f32 %v433, %v473
  %475 = vmatmul.f32.gmra.mxu0 %v190
  %v476 = vpop.f32.mrf.mxu0
  %v477 = vadd.f32 %v436, %v476
  %478 = vmatmul.f32.gmra.mxu0 %v193
  %v479 = vpop.f32.mrf.mxu0
  %v480 = vadd.f32 %v439, %v479
  %481 = vmatmul.f32.gmra.mxu0 %v196
  %v482 = vpop.f32.mrf.mxu0
  %v483 = vadd.f32 %v442, %v482
  %484 = vmatmul.f32.gmra.mxu0 %v199
  %v485 = vpop.f32.mrf.mxu0
  %v486 = vadd.f32 %v445, %v485
  %487 = vmatmul.f32.gmra.mxu0 %v202
  %v488 = vpop.f32.mrf.mxu0
  %v489 = vadd.f32 %v448, %v488
  %490 = vdwg.mxu0
  %vm491 = vcmask 146432
  %v492 = vsel %vm491, %v468, 0.0
  %493 = vadd.xlane.f32.xlu0 %v492
  %v494 = vpop.xlane.xlu0 %493
  %v495 = vsel %vm491, %v471, 0.0
  %496 = vadd.xlane.f32.xlu0 %v495
  %v497 = vpop.xlane.xlu0 %496
  %v498 = vsel %vm491, %v474, 0.0
  %499 = vadd.xlane.f32.xlu0 %v498
  %v500 = vpop.xlane.xlu0 %499
  %v501 = vsel %vm491, %v477, 0.0
  %502 = vadd.xlane.f32.xlu0 %v501
  %v503 = vpop.xlane.xlu0 %502
  %v504 = vsel %vm491, %v480, 0.0
  %505 = vadd.xlane.f32.xlu0 %v504
  %v506 = vpop.xlane.xlu0 %505
  %v507 = vsel %vm491, %v483, 0.0
  %508 = vadd.xlane.f32.xlu0 %v507
  %v509 = vpop.xlane.xlu0 %508
  %v510 = vsel %vm491, %v486, 0.0
  %511 = vadd.xlane.f32.xlu0 %v510
  %v512 = vpop.xlane.xlu0 %511
  %v513 = vsel %vm491, %v489, 0.0
  %514 = vadd.xlane.f32.xlu0 %v513
  %v515 = vpop.xlane.xlu0 %514
  %v516 = vrcp.pop 18.0
  %v517 = vmul.f32 18.0, %v516
  %v518 = vsub.f32 1.0, %v517
  %v519 = vmul.f32 %v516, %v518
  %v520 = vadd.f32 %v516, %v519
  %vm521 = vweird.f32 %v516
  %v522 = vsel %vm521, %v516, %v520
  %v523 = vmul.f32 %v494, %v522
  %v524 = vmul.f32 %v497, %v522
  %v525 = vmul.f32 %v500, %v522
  %v526 = vmul.f32 %v503, %v522
  %v527 = vmul.f32 %v506, %v522
  %v528 = vmul.f32 %v509, %v522
  %v529 = vmul.f32 %v512, %v522
  %v530 = vmul.f32 %v515, %v522
  %v531 = vsub.f32 %v468, %v523
  %v532 = vsub.f32 %v471, %v524
  %v533 = vsub.f32 %v474, %v525
  %v534 = vsub.f32 %v477, %v526
  %v535 = vsub.f32 %v480, %v527
  %v536 = vsub.f32 %v483, %v528
  %v537 = vsub.f32 %v486, %v529
  %v538 = vsub.f32 %v489, %v530
  %v539 = vmul.f32 %v531, %v531
  %v540 = vmul.f32 %v532, %v532
  %v541 = vmul.f32 %v533, %v533
  %v542 = vmul.f32 %v534, %v534
  %v543 = vmul.f32 %v535, %v535
  %v544 = vmul.f32 %v536, %v536
  %v545 = vmul.f32 %v537, %v537
  %v546 = vmul.f32 %v538, %v538
  %v547 = vsel %vm491, %v539, 0.0
  %548 = vadd.xlane.f32.xlu0 %v547
  %v549 = vpop.xlane.xlu0 %548
  %v550 = vsel %vm491, %v540, 0.0
  %551 = vadd.xlane.f32.xlu0 %v550
  %v552 = vpop.xlane.xlu0 %551
  %v553 = vsel %vm491, %v541, 0.0
  %554 = vadd.xlane.f32.xlu0 %v553
  %v555 = vpop.xlane.xlu0 %554
  %v556 = vsel %vm491, %v542, 0.0
  %557 = vadd.xlane.f32.xlu0 %v556
  %v558 = vpop.xlane.xlu0 %557
  %v559 = vsel %vm491, %v543, 0.0
  %560 = vadd.xlane.f32.xlu0 %v559
  %v561 = vpop.xlane.xlu0 %560
  %v562 = vsel %vm491, %v544, 0.0
  %563 = vadd.xlane.f32.xlu0 %v562
  %v564 = vpop.xlane.xlu0 %563
  %v565 = vsel %vm491, %v545, 0.0
  %566 = vadd.xlane.f32.xlu0 %v565
  %v567 = vpop.xlane.xlu0 %566
  %v568 = vsel %vm491, %v546, 0.0
  %569 = vadd.xlane.f32.xlu0 %v568
  %v570 = vpop.xlane.xlu0 %569
  %v571 = vmul.f32 %v549, %v522
  %v572 = vmul.f32 %v552, %v522
  %v573 = vmul.f32 %v555, %v522
  %v574 = vmul.f32 %v558, %v522
  %v575 = vmul.f32 %v561, %v522
  %v576 = vmul.f32 %v564, %v522
  %v577 = vmul.f32 %v567, %v522
  %v578 = vmul.f32 %v570, %v522
  %v579 = vld [vmem:[%s2] sm:$0xff]
  %v580 = vld [vmem:[%s2 + $0x8] sm:$0xff]
  %v581 = vld [vmem:[%s2 + $0x10] sm:$0xff]
  %v582 = vld [vmem:[%s2 + $0x18] sm:$0xff]
  %v583 = vld [vmem:[%s2 + $0x20] sm:$0xff]
  %v584 = vld [vmem:[%s2 + $0x28] sm:$0xff]
  %v585 = vld [vmem:[%s2 + $0x30] sm:$0xff]
  %v586 = vld [vmem:[%s2 + $0x38] sm:$0xff]
  %v587 = vadd.f32 %v571, 1e-05
  %v588 = vadd.f32 %v572, 1e-05
  %v589 = vadd.f32 %v573, 1e-05
  %v590 = vadd.f32 %v574, 1e-05
  %v591 = vadd.f32 %v575, 1e-05
  %v592 = vadd.f32 %v576, 1e-05
  %v593 = vadd.f32 %v577, 1e-05
  %v594 = vadd.f32 %v578, 1e-05
  %v595 = vrsqrt.pop %v587
  %v596 = vmul.f32 %v595, %v587
  %v597 = vmul.f32 %v596, %v595
  %v598 = vmul.f32 0.5, %v597
  %v599 = vsub.f32 1.5, %v598
  %v600 = vmul.f32 %v595, %v599
  %vm601 = vweird.f32 %v587
  %vm602 = vweird.f32 %v595
  %vm603 = vmor %vm601, %vm602
  %v604 = vsel %vm603, %v595, %v600
  %v605 = vrsqrt.pop %v588
  %v606 = vmul.f32 %v605, %v588
  %v607 = vmul.f32 %v606, %v605
  %v608 = vmul.f32 0.5, %v607
  %v609 = vsub.f32 1.5, %v608
  %v610 = vmul.f32 %v605, %v609
  %vm611 = vweird.f32 %v588
  %vm612 = vweird.f32 %v605
  %vm613 = vmor %vm611, %vm612
  %v614 = vsel %vm613, %v605, %v610
  %v615 = vrsqrt.pop %v589
  %v616 = vmul.f32 %v615, %v589
  %v617 = vmul.f32 %v616, %v615
  %v618 = vmul.f32 0.5, %v617
  %v619 = vsub.f32 1.5, %v618
  %v620 = vmul.f32 %v615, %v619
  %vm621 = vweird.f32 %v589
  %vm622 = vweird.f32 %v615
  %vm623 = vmor %vm621, %vm622
  %v624 = vsel %vm623, %v615, %v620
  %v625 = vrsqrt.pop %v590
  %v626 = vmul.f32 %v625, %v590
  %v627 = vmul.f32 %v626, %v625
  %v628 = vmul.f32 0.5, %v627
  %v629 = vsub.f32 1.5, %v628
  %v630 = vmul.f32 %v625, %v629
  %vm631 = vweird.f32 %v590
  %vm632 = vweird.f32 %v625
  %vm633 = vmor %vm631, %vm632
  %v634 = vsel %vm633, %v625, %v630
  %v635 = vrsqrt.pop %v591
  %v636 = vmul.f32 %v635, %v591
  %v637 = vmul.f32 %v636, %v635
  %v638 = vmul.f32 0.5, %v637
  %v639 = vsub.f32 1.5, %v638
  %v640 = vmul.f32 %v635, %v639
  %vm641 = vweird.f32 %v591
  %vm642 = vweird.f32 %v635
  %vm643 = vmor %vm641, %vm642
  %v644 = vsel %vm643, %v635, %v640
  %v645 = vrsqrt.pop %v592
  %v646 = vmul.f32 %v645, %v592
  %v647 = vmul.f32 %v646, %v645
  %v648 = vmul.f32 0.5, %v647
  %v649 = vsub.f32 1.5, %v648
  %v650 = vmul.f32 %v645, %v649
  %vm651 = vweird.f32 %v592
  %vm652 = vweird.f32 %v645
  %vm653 = vmor %vm651, %vm652
  %v654 = vsel %vm653, %v645, %v650
  %v655 = vrsqrt.pop %v593
  %v656 = vmul.f32 %v655, %v593
  %v657 = vmul.f32 %v656, %v655
  %v658 = vmul.f32 0.5, %v657
  %v659 = vsub.f32 1.5, %v658
  %v660 = vmul.f32 %v655, %v659
  %vm661 = vweird.f32 %v593
  %vm662 = vweird.f32 %v655
  %vm663 = vmor %vm661, %vm662
  %v664 = vsel %vm663, %v655, %v660
  %v665 = vrsqrt.pop %v594
  %v666 = vmul.f32 %v665, %v594
  %v667 = vmul.f32 %v666, %v665
  %v668 = vmul.f32 0.5, %v667
  %v669 = vsub.f32 1.5, %v668
  %v670 = vmul.f32 %v665, %v669
  %vm671 = vweird.f32 %v594
  %vm672 = vweird.f32 %v665
  %vm673 = vmor %vm671, %vm672
  %v674 = vsel %vm673, %v665, %v670
  %v675 = vmul.f32 %v579, %v604
  %v676 = vmul.f32 %v580, %v614
  %v677 = vmul.f32 %v581, %v624
  %v678 = vmul.f32 %v582, %v634
  %v679 = vmul.f32 %v583, %v644
  %v680 = vmul.f32 %v584, %v654
  %v681 = vmul.f32 %v585, %v664
  %v682 = vmul.f32 %v586, %v674
  %684 = vset.pattern.permute.xlu0 0
  %685 = vperm.xlu0 %684, %v675
  %v686 = vpop.permute.xlu0 %685
  %689 = vset.pattern.permute.xlu0 0
  %690 = vperm.xlu0 %689, %v676
  %v691 = vpop.permute.xlu0 %690
  %694 = vset.pattern.permute.xlu0 0
  %695 = vperm.xlu0 %694, %v677
  %v696 = vpop.permute.xlu0 %695
  %699 = vset.pattern.permute.xlu0 0
  %700 = vperm.xlu0 %699, %v678
  %v701 = vpop.permute.xlu0 %700
  %704 = vset.pattern.permute.xlu0 0
  %705 = vperm.xlu0 %704, %v679
  %v706 = vpop.permute.xlu0 %705
  %709 = vset.pattern.permute.xlu0 0
  %710 = vperm.xlu0 %709, %v680
  %v711 = vpop.permute.xlu0 %710
  %714 = vset.pattern.permute.xlu0 0
  %715 = vperm.xlu0 %714, %v681
  %v716 = vpop.permute.xlu0 %715
  %719 = vset.pattern.permute.xlu0 0
  %720 = vperm.xlu0 %719, %v682
  %v721 = vpop.permute.xlu0 %720
  %v723 = vmul.f32 %v531, %v686
  %v724 = vmul.f32 %v532, %v691
  %v725 = vmul.f32 %v533, %v696
  %v726 = vmul.f32 %v534, %v701
  %v727 = vmul.f32 %v535, %v706
  %v728 = vmul.f32 %v536, %v711
  %v729 = vmul.f32 %v537, %v716
  %v730 = vmul.f32 %v538, %v721
  %v731 = vld [vmem:[%s3] sm:$0xff]
  %v732 = vld [vmem:[%s3 + $0x8] sm:$0xff]
  %v733 = vld [vmem:[%s3 + $0x10] sm:$0xff]
  %v734 = vld [vmem:[%s3 + $0x18] sm:$0xff]
  %v735 = vld [vmem:[%s3 + $0x20] sm:$0xff]
  %v736 = vld [vmem:[%s3 + $0x28] sm:$0xff]
  %v737 = vld [vmem:[%s3 + $0x30] sm:$0xff]
  %v738 = vld [vmem:[%s3 + $0x38] sm:$0xff]
  %740 = vset.pattern.permute.xlu0 0
  %741 = vperm.xlu0 %740, %v731
  %v742 = vpop.permute.xlu0 %741
  %745 = vset.pattern.permute.xlu0 0
  %746 = vperm.xlu0 %745, %v732
  %v747 = vpop.permute.xlu0 %746
  %750 = vset.pattern.permute.xlu0 0
  %751 = vperm.xlu0 %750, %v733
  %v752 = vpop.permute.xlu0 %751
  %755 = vset.pattern.permute.xlu0 0
  %756 = vperm.xlu0 %755, %v734
  %v757 = vpop.permute.xlu0 %756
  %760 = vset.pattern.permute.xlu0 0
  %761 = vperm.xlu0 %760, %v735
  %v762 = vpop.permute.xlu0 %761
  %765 = vset.pattern.permute.xlu0 0
  %766 = vperm.xlu0 %765, %v736
  %v767 = vpop.permute.xlu0 %766
  %770 = vset.pattern.permute.xlu0 0
  %771 = vperm.xlu0 %770, %v737
  %v772 = vpop.permute.xlu0 %771
  %775 = vset.pattern.permute.xlu0 0
  %776 = vperm.xlu0 %775, %v738
  %v777 = vpop.permute.xlu0 %776
  %v779 = vadd.f32 %v723, %v742
  %v780 = vadd.f32 %v724, %v747
  %v781 = vadd.f32 %v725, %v752
  %v782 = vadd.f32 %v726, %v757
  %v783 = vadd.f32 %v727, %v762
  %v784 = vadd.f32 %v728, %v767
  %v785 = vadd.f32 %v729, %v772
  %v786 = vadd.f32 %v730, %v777
  %v787 = vmax.f32 %v779, 0.0
  %v788 = vmax.f32 %v780, 0.0
  %v789 = vmax.f32 %v781, 0.0
  %v790 = vmax.f32 %v782, 0.0
  %v791 = vmax.f32 %v783, 0.0
  %v792 = vmax.f32 %v784, 0.0
  %v793 = vmax.f32 %v785, 0.0
  %v794 = vmax.f32 %v786, 0.0
  %v795 = vld [vmem:[%s4] sm:$0xff]
  %v796 = vld [vmem:[%s4 + $0x8] sm:$0xff]
  %v797 = vld [vmem:[%s4 + $0x10] sm:$0xff]
  %v798 = vld [vmem:[%s4 + $0x18] sm:$0xff]
  %v799 = vld [vmem:[%s4 + $0x20] sm:$0xff]
  %v800 = vld [vmem:[%s4 + $0x28] sm:$0xff]
  %v801 = vld [vmem:[%s4 + $0x30] sm:$0xff]
  %v802 = vld [vmem:[%s4 + $0x38] sm:$0xff]
  %v803 = vld [vmem:[%s4 + $0x40] sm:$0xff]
  %v804 = vld [vmem:[%s4 + $0x48] sm:$0xff]
  %v805 = vld [vmem:[%s4 + $0x50] sm:$0xff]
  %v806 = vld [vmem:[%s4 + $0x58] sm:$0xff]
  %v807 = vld [vmem:[%s4 + $0x60] sm:$0xff]
  %v808 = vld [vmem:[%s4 + $0x68] sm:$0xff]
  %v809 = vld [vmem:[%s4 + $0x70] sm:$0xff]
  %v810 = vld [vmem:[%s4 + $0x78] sm:$0xff]
  %v811 = vld [vmem:[%s4 + $0x80] sm:$0xff]
  %v812 = vld [vmem:[%s4 + $0x88] sm:$0xff]
  %v813 = vld [vmem:[%s4 + $0x90] sm:$0xff]
  %v814 = vld [vmem:[%s4 + $0x98] sm:$0xff]
  %v815 = vld [vmem:[%s4 + $0xa0] sm:$0xff]
  %v816 = vld [vmem:[%s4 + $0xa8] sm:$0xff]
  %v817 = vld [vmem:[%s4 + $0xb0] sm:$0xff]
  %v818 = vld [vmem:[%s4 + $0xb8] sm:$0xff]
  %v819 = vld [vmem:[%s4 + $0xc0] sm:$0xff]
  %v820 = vld [vmem:[%s4 + $0xc8] sm:$0xff]
  %v821 = vld [vmem:[%s4 + $0xd0] sm:$0xff]
  %v822 = vld [vmem:[%s4 + $0xd8] sm:$0xff]
  %v823 = vld [vmem:[%s4 + $0xe0] sm:$0xff]
  %v824 = vld [vmem:[%s4 + $0xe8] sm:$0xff]
  %v825 = vld [vmem:[%s4 + $0xf0] sm:$0xff]
  %v826 = vld [vmem:[%s4 + $0xf8] sm:$0xff]
  %v827 = vmul.f32 %v787, %v795
  %v828 = vmul.f32 %v788, %v796
  %v829 = vmul.f32 %v789, %v797
  %v830 = vmul.f32 %v790, %v798
  %v831 = vmul.f32 %v791, %v799
  %v832 = vmul.f32 %v792, %v800
  %v833 = vmul.f32 %v793, %v801
  %v834 = vmul.f32 %v794, %v802
  %v835 = vmul.f32 %v787, %v803
  %v836 = vmul.f32 %v788, %v804
  %v837 = vmul.f32 %v789, %v805
  %v838 = vmul.f32 %v790, %v806
  %v839 = vmul.f32 %v791, %v807
  %v840 = vmul.f32 %v792, %v808
  %v841 = vmul.f32 %v793, %v809
  %v842 = vmul.f32 %v794, %v810
  %v843 = vmul.f32 %v787, %v811
  %v844 = vmul.f32 %v788, %v812
  %v845 = vmul.f32 %v789, %v813
  %v846 = vmul.f32 %v790, %v814
  %v847 = vmul.f32 %v791, %v815
  %v848 = vmul.f32 %v792, %v816
  %v849 = vmul.f32 %v793, %v817
  %v850 = vmul.f32 %v794, %v818
  %v851 = vmul.f32 %v787, %v819
  %v852 = vmul.f32 %v788, %v820
  %v853 = vmul.f32 %v789, %v821
  %v854 = vmul.f32 %v790, %v822
  %v855 = vmul.f32 %v791, %v823
  %v856 = vmul.f32 %v792, %v824
  %v857 = vmul.f32 %v793, %v825
  %v858 = vmul.f32 %v794, %v826
  %vm859 = vcmask 72704
  %v860 = vsel %vm859, %v827, 0.0
  %861 = vadd.xlane.f32.xlu0 %v860
  %v862 = vpop.xlane.xlu0 %861
  %v863 = vsel %vm859, %v828, 0.0
  %864 = vadd.xlane.f32.xlu0 %v863
  %v865 = vpop.xlane.xlu0 %864
  %v866 = vsel %vm859, %v829, 0.0
  %867 = vadd.xlane.f32.xlu0 %v866
  %v868 = vpop.xlane.xlu0 %867
  %v869 = vsel %vm859, %v830, 0.0
  %870 = vadd.xlane.f32.xlu0 %v869
  %v871 = vpop.xlane.xlu0 %870
  %v872 = vsel %vm859, %v831, 0.0
  %873 = vadd.xlane.f32.xlu0 %v872
  %v874 = vpop.xlane.xlu0 %873
  %v875 = vsel %vm859, %v832, 0.0
  %876 = vadd.xlane.f32.xlu0 %v875
  %v877 = vpop.xlane.xlu0 %876
  %v878 = vsel %vm859, %v833, 0.0
  %879 = vadd.xlane.f32.xlu0 %v878
  %v880 = vpop.xlane.xlu0 %879
  %v881 = vsel %vm859, %v834, 0.0
  %882 = vadd.xlane.f32.xlu0 %v881
  %v883 = vpop.xlane.xlu0 %882
  %v884 = vsel %vm859, %v835, 0.0
  %885 = vadd.xlane.f32.xlu0 %v884
  %v886 = vpop.xlane.xlu0 %885
  %v887 = vsel %vm859, %v836, 0.0
  %888 = vadd.xlane.f32.xlu0 %v887
  %v889 = vpop.xlane.xlu0 %888
  %v890 = vsel %vm859, %v837, 0.0
  %891 = vadd.xlane.f32.xlu0 %v890
  %v892 = vpop.xlane.xlu0 %891
  %v893 = vsel %vm859, %v838, 0.0
  %894 = vadd.xlane.f32.xlu0 %v893
  %v895 = vpop.xlane.xlu0 %894
  %v896 = vsel %vm859, %v839, 0.0
  %897 = vadd.xlane.f32.xlu0 %v896
  %v898 = vpop.xlane.xlu0 %897
  %v899 = vsel %vm859, %v840, 0.0
  %900 = vadd.xlane.f32.xlu0 %v899
  %v901 = vpop.xlane.xlu0 %900
  %v902 = vsel %vm859, %v841, 0.0
  %903 = vadd.xlane.f32.xlu0 %v902
  %v904 = vpop.xlane.xlu0 %903
  %v905 = vsel %vm859, %v842, 0.0
  %906 = vadd.xlane.f32.xlu0 %v905
  %v907 = vpop.xlane.xlu0 %906
  %v908 = vsel %vm859, %v843, 0.0
  %909 = vadd.xlane.f32.xlu0 %v908
  %v910 = vpop.xlane.xlu0 %909
  %v911 = vsel %vm859, %v844, 0.0
  %912 = vadd.xlane.f32.xlu0 %v911
  %v913 = vpop.xlane.xlu0 %912
  %v914 = vsel %vm859, %v845, 0.0
  %915 = vadd.xlane.f32.xlu0 %v914
  %v916 = vpop.xlane.xlu0 %915
  %v917 = vsel %vm859, %v846, 0.0
  %918 = vadd.xlane.f32.xlu0 %v917
  %v919 = vpop.xlane.xlu0 %918
  %v920 = vsel %vm859, %v847, 0.0
  %921 = vadd.xlane.f32.xlu0 %v920
  %v922 = vpop.xlane.xlu0 %921
  %v923 = vsel %vm859, %v848, 0.0
  %924 = vadd.xlane.f32.xlu0 %v923
  %v925 = vpop.xlane.xlu0 %924
  %v926 = vsel %vm859, %v849, 0.0
  %927 = vadd.xlane.f32.xlu0 %v926
  %v928 = vpop.xlane.xlu0 %927
  %v929 = vsel %vm859, %v850, 0.0
  %930 = vadd.xlane.f32.xlu0 %v929
  %v931 = vpop.xlane.xlu0 %930
  %v932 = vsel %vm859, %v851, 0.0
  %933 = vadd.xlane.f32.xlu0 %v932
  %v934 = vpop.xlane.xlu0 %933
  %v935 = vsel %vm859, %v852, 0.0
  %936 = vadd.xlane.f32.xlu0 %v935
  %v937 = vpop.xlane.xlu0 %936
  %v938 = vsel %vm859, %v853, 0.0
  %939 = vadd.xlane.f32.xlu0 %v938
  %v940 = vpop.xlane.xlu0 %939
  %v941 = vsel %vm859, %v854, 0.0
  %942 = vadd.xlane.f32.xlu0 %v941
  %v943 = vpop.xlane.xlu0 %942
  %v944 = vsel %vm859, %v855, 0.0
  %945 = vadd.xlane.f32.xlu0 %v944
  %v946 = vpop.xlane.xlu0 %945
  %v947 = vsel %vm859, %v856, 0.0
  %948 = vadd.xlane.f32.xlu0 %v947
  %v949 = vpop.xlane.xlu0 %948
  %v950 = vsel %vm859, %v857, 0.0
  %951 = vadd.xlane.f32.xlu0 %v950
  %v952 = vpop.xlane.xlu0 %951
  %v953 = vsel %vm859, %v858, 0.0
  %954 = vadd.xlane.f32.xlu0 %v953
  %v955 = vpop.xlane.xlu0 %954
  %v988 = vlaneseq
  %v989 = vand.u32 %v988, 127
  %v990 = vperm.slane %v862, %v989
  %v991 = vadd.s32 %v989, 4294967288
  %v992 = vperm.slane %v865, %v991
  %vm993 = vcmask 130112
  %v994 = vsel %vm993, %v992, %v990
  %v995 = vadd.s32 %v989, 4294967280
  %v996 = vperm.slane %v868, %v995
  %vm997 = vcmask 195712
  %v998 = vsel %vm997, %v996, %v994
  %v999 = vadd.s32 %v989, 4294967272
  %v1000 = vperm.slane %v871, %v999
  %vm1001 = vcmask 261312
  %v1002 = vsel %vm1001, %v1000, %v998
  %v1003 = vadd.s32 %v989, 4294967264
  %v1004 = vperm.slane %v874, %v1003
  %vm1005 = vcmask 326912
  %v1006 = vsel %vm1005, %v1004, %v1002
  %v1007 = vadd.s32 %v989, 4294967256
  %v1008 = vperm.slane %v877, %v1007
  %vm1009 = vcmask 392512
  %v1010 = vsel %vm1009, %v1008, %v1006
  %v1011 = vadd.s32 %v989, 4294967248
  %v1012 = vperm.slane %v880, %v1011
  %vm1013 = vcmask 458112
  %v1014 = vsel %vm1013, %v1012, %v1010
  %v1015 = vadd.s32 %v989, 4294967240
  %v1016 = vperm.slane %v883, %v1015
  %vm1017 = vcmask 523712
  %v1018 = vsel %vm1017, %v1016, %v1014
  %v1019 = vperm.slane %v886, %v989
  %v1020 = vperm.slane %v889, %v991
  %v1021 = vsel %vm993, %v1020, %v1019
  %v1022 = vperm.slane %v892, %v995
  %v1023 = vsel %vm997, %v1022, %v1021
  %v1024 = vperm.slane %v895, %v999
  %v1025 = vsel %vm1001, %v1024, %v1023
  %v1026 = vperm.slane %v898, %v1003
  %v1027 = vsel %vm1005, %v1026, %v1025
  %v1028 = vperm.slane %v901, %v1007
  %v1029 = vsel %vm1009, %v1028, %v1027
  %v1030 = vperm.slane %v904, %v1011
  %v1031 = vsel %vm1013, %v1030, %v1029
  %v1032 = vperm.slane %v907, %v1015
  %v1033 = vsel %vm1017, %v1032, %v1031
  %v1034 = vperm.slane %v910, %v989
  %v1035 = vperm.slane %v913, %v991
  %v1036 = vsel %vm993, %v1035, %v1034
  %v1037 = vperm.slane %v916, %v995
  %v1038 = vsel %vm997, %v1037, %v1036
  %v1039 = vperm.slane %v919, %v999
  %v1040 = vsel %vm1001, %v1039, %v1038
  %v1041 = vperm.slane %v922, %v1003
  %v1042 = vsel %vm1005, %v1041, %v1040
  %v1043 = vperm.slane %v925, %v1007
  %v1044 = vsel %vm1009, %v1043, %v1042
  %v1045 = vperm.slane %v928, %v1011
  %v1046 = vsel %vm1013, %v1045, %v1044
  %v1047 = vperm.slane %v931, %v1015
  %v1048 = vsel %vm1017, %v1047, %v1046
  %v1049 = vperm.slane %v934, %v989
  %v1050 = vperm.slane %v937, %v991
  %v1051 = vsel %vm993, %v1050, %v1049
  %v1052 = vperm.slane %v940, %v995
  %v1053 = vsel %vm997, %v1052, %v1051
  %v1054 = vperm.slane %v943, %v999
  %v1055 = vsel %vm1001, %v1054, %v1053
  %v1056 = vperm.slane %v946, %v1003
  %v1057 = vsel %vm1005, %v1056, %v1055
  %v1058 = vperm.slane %v949, %v1007
  %v1059 = vsel %vm1009, %v1058, %v1057
  %v1060 = vperm.slane %v952, %v1011
  %v1061 = vsel %vm1013, %v1060, %v1059
  %v1062 = vperm.slane %v955, %v1015
  %v1063 = vsel %vm1017, %v1062, %v1061
  %vm1064 = vcmask 1041409
  %v1065 = vsel %vm1064, %v1033, %v1018
  %vm1066 = vcmask 1042434
  %v1067 = vsel %vm1066, %v1048, %v1065
  %vm1068 = vcmask 1043459
  %v1069 = vsel %vm1068, %v1063, %v1067
  %vm1071 = vcmask 519168
  %v1072 = vsel %vm1071, %v1069, 0.0
  %1073 = vadd.xlane.f32.xlu0 %v1072
  %v1074 = vpop.xlane.xlu0 %1073
  %v1075 = vld [vmem:[%s5] sm:$0xf]
  %v1076 = vadd.f32 %v1074, %v1075
  %vm1077 = vcmask 3072
  %1078 = vst.msk [vmem:[%s6] sm:$0xf] %vm1077, %v1076
  %1111 = vrot.lane.b32.xlu0 %v795, 9
  %v1112 = vpop.permute.xlu0 %1111
  %1113 = vrot.lane.b32.xlu0 %v796, 9
  %v1114 = vpop.permute.xlu0 %1113
  %1115 = vrot.lane.b32.xlu0 %v797, 9
  %v1116 = vpop.permute.xlu0 %1115
  %1117 = vrot.lane.b32.xlu0 %v798, 9
  %v1118 = vpop.permute.xlu0 %1117
  %1119 = vrot.lane.b32.xlu0 %v799, 9
  %v1120 = vpop.permute.xlu0 %1119
  %1121 = vrot.lane.b32.xlu0 %v800, 9
  %v1122 = vpop.permute.xlu0 %1121
  %1123 = vrot.lane.b32.xlu0 %v801, 9
  %v1124 = vpop.permute.xlu0 %1123
  %1125 = vrot.lane.b32.xlu0 %v802, 9
  %v1126 = vpop.permute.xlu0 %1125
  %1127 = vrot.lane.b32.xlu0 %v803, 9
  %v1128 = vpop.permute.xlu0 %1127
  %1129 = vrot.lane.b32.xlu0 %v804, 9
  %v1130 = vpop.permute.xlu0 %1129
  %1131 = vrot.lane.b32.xlu0 %v805, 9
  %v1132 = vpop.permute.xlu0 %1131
  %1133 = vrot.lane.b32.xlu0 %v806, 9
  %v1134 = vpop.permute.xlu0 %1133
  %1135 = vrot.lane.b32.xlu0 %v807, 9
  %v1136 = vpop.permute.xlu0 %1135
  %1137 = vrot.lane.b32.xlu0 %v808, 9
  %v1138 = vpop.permute.xlu0 %1137
  %1139 = vrot.lane.b32.xlu0 %v809, 9
  %v1140 = vpop.permute.xlu0 %1139
  %1141 = vrot.lane.b32.xlu0 %v810, 9
  %v1142 = vpop.permute.xlu0 %1141
  %1143 = vrot.lane.b32.xlu0 %v811, 9
  %v1144 = vpop.permute.xlu0 %1143
  %1145 = vrot.lane.b32.xlu0 %v812, 9
  %v1146 = vpop.permute.xlu0 %1145
  %1147 = vrot.lane.b32.xlu0 %v813, 9
  %v1148 = vpop.permute.xlu0 %1147
  %1149 = vrot.lane.b32.xlu0 %v814, 9
  %v1150 = vpop.permute.xlu0 %1149
  %1151 = vrot.lane.b32.xlu0 %v815, 9
  %v1152 = vpop.permute.xlu0 %1151
  %1153 = vrot.lane.b32.xlu0 %v816, 9
  %v1154 = vpop.permute.xlu0 %1153
  %1155 = vrot.lane.b32.xlu0 %v817, 9
  %v1156 = vpop.permute.xlu0 %1155
  %1157 = vrot.lane.b32.xlu0 %v818, 9
  %v1158 = vpop.permute.xlu0 %1157
  %1159 = vrot.lane.b32.xlu0 %v819, 9
  %v1160 = vpop.permute.xlu0 %1159
  %1161 = vrot.lane.b32.xlu0 %v820, 9
  %v1162 = vpop.permute.xlu0 %1161
  %1163 = vrot.lane.b32.xlu0 %v821, 9
  %v1164 = vpop.permute.xlu0 %1163
  %1165 = vrot.lane.b32.xlu0 %v822, 9
  %v1166 = vpop.permute.xlu0 %1165
  %1167 = vrot.lane.b32.xlu0 %v823, 9
  %v1168 = vpop.permute.xlu0 %1167
  %1169 = vrot.lane.b32.xlu0 %v824, 9
  %v1170 = vpop.permute.xlu0 %1169
  %1171 = vrot.lane.b32.xlu0 %v825, 9
  %v1172 = vpop.permute.xlu0 %1171
  %1173 = vrot.lane.b32.xlu0 %v826, 9
  %v1174 = vpop.permute.xlu0 %1173
  %v1207 = vmul.f32 %v787, %v1112
  %v1208 = vmul.f32 %v788, %v1114
  %v1209 = vmul.f32 %v789, %v1116
  %v1210 = vmul.f32 %v790, %v1118
  %v1211 = vmul.f32 %v791, %v1120
  %v1212 = vmul.f32 %v792, %v1122
  %v1213 = vmul.f32 %v793, %v1124
  %v1214 = vmul.f32 %v794, %v1126
  %v1215 = vmul.f32 %v787, %v1128
  %v1216 = vmul.f32 %v788, %v1130
  %v1217 = vmul.f32 %v789, %v1132
  %v1218 = vmul.f32 %v790, %v1134
  %v1219 = vmul.f32 %v791, %v1136
  %v1220 = vmul.f32 %v792, %v1138
  %v1221 = vmul.f32 %v793, %v1140
  %v1222 = vmul.f32 %v794, %v1142
  %v1223 = vmul.f32 %v787, %v1144
  %v1224 = vmul.f32 %v788, %v1146
  %v1225 = vmul.f32 %v789, %v1148
  %v1226 = vmul.f32 %v790, %v1150
  %v1227 = vmul.f32 %v791, %v1152
  %v1228 = vmul.f32 %v792, %v1154
  %v1229 = vmul.f32 %v793, %v1156
  %v1230 = vmul.f32 %v794, %v1158
  %v1231 = vmul.f32 %v787, %v1160
  %v1232 = vmul.f32 %v788, %v1162
  %v1233 = vmul.f32 %v789, %v1164
  %v1234 = vmul.f32 %v790, %v1166
  %v1235 = vmul.f32 %v791, %v1168
  %v1236 = vmul.f32 %v792, %v1170
  %v1237 = vmul.f32 %v793, %v1172
  %v1238 = vmul.f32 %v794, %v1174
  %1271 = vrot.lane.b32.xlu0 %v1207, 119
  %v1272 = vpop.permute.xlu0 %1271
  %1273 = vrot.lane.b32.xlu0 %v1208, 119
  %v1274 = vpop.permute.xlu0 %1273
  %1275 = vrot.lane.b32.xlu0 %v1209, 119
  %v1276 = vpop.permute.xlu0 %1275
  %1277 = vrot.lane.b32.xlu0 %v1210, 119
  %v1278 = vpop.permute.xlu0 %1277
  %1279 = vrot.lane.b32.xlu0 %v1211, 119
  %v1280 = vpop.permute.xlu0 %1279
  %1281 = vrot.lane.b32.xlu0 %v1212, 119
  %v1282 = vpop.permute.xlu0 %1281
  %1283 = vrot.lane.b32.xlu0 %v1213, 119
  %v1284 = vpop.permute.xlu0 %1283
  %1285 = vrot.lane.b32.xlu0 %v1214, 119
  %v1286 = vpop.permute.xlu0 %1285
  %1287 = vrot.lane.b32.xlu0 %v1215, 119
  %v1288 = vpop.permute.xlu0 %1287
  %1289 = vrot.lane.b32.xlu0 %v1216, 119
  %v1290 = vpop.permute.xlu0 %1289
  %1291 = vrot.lane.b32.xlu0 %v1217, 119
  %v1292 = vpop.permute.xlu0 %1291
  %1293 = vrot.lane.b32.xlu0 %v1218, 119
  %v1294 = vpop.permute.xlu0 %1293
  %1295 = vrot.lane.b32.xlu0 %v1219, 119
  %v1296 = vpop.permute.xlu0 %1295
  %1297 = vrot.lane.b32.xlu0 %v1220, 119
  %v1298 = vpop.permute.xlu0 %1297
  %1299 = vrot.lane.b32.xlu0 %v1221, 119
  %v1300 = vpop.permute.xlu0 %1299
  %1301 = vrot.lane.b32.xlu0 %v1222, 119
  %v1302 = vpop.permute.xlu0 %1301
  %1303 = vrot.lane.b32.xlu0 %v1223, 119
  %v1304 = vpop.permute.xlu0 %1303
  %1305 = vrot.lane.b32.xlu0 %v1224, 119
  %v1306 = vpop.permute.xlu0 %1305
  %1307 = vrot.lane.b32.xlu0 %v1225, 119
  %v1308 = vpop.permute.xlu0 %1307
  %1309 = vrot.lane.b32.xlu0 %v1226, 119
  %v1310 = vpop.permute.xlu0 %1309
  %1311 = vrot.lane.b32.xlu0 %v1227, 119
  %v1312 = vpop.permute.xlu0 %1311
  %1313 = vrot.lane.b32.xlu0 %v1228, 119
  %v1314 = vpop.permute.xlu0 %1313
  %1315 = vrot.lane.b32.xlu0 %v1229, 119
  %v1316 = vpop.permute.xlu0 %1315
  %1317 = vrot.lane.b32.xlu0 %v1230, 119
  %v1318 = vpop.permute.xlu0 %1317
  %1319 = vrot.lane.b32.xlu0 %v1231, 119
  %v1320 = vpop.permute.xlu0 %1319
  %1321 = vrot.lane.b32.xlu0 %v1232, 119
  %v1322 = vpop.permute.xlu0 %1321
  %1323 = vrot.lane.b32.xlu0 %v1233, 119
  %v1324 = vpop.permute.xlu0 %1323
  %1325 = vrot.lane.b32.xlu0 %v1234, 119
  %v1326 = vpop.permute.xlu0 %1325
  %1327 = vrot.lane.b32.xlu0 %v1235, 119
  %v1328 = vpop.permute.xlu0 %1327
  %1329 = vrot.lane.b32.xlu0 %v1236, 119
  %v1330 = vpop.permute.xlu0 %1329
  %1331 = vrot.lane.b32.xlu0 %v1237, 119
  %v1332 = vpop.permute.xlu0 %1331
  %1333 = vrot.lane.b32.xlu0 %v1238, 119
  %v1334 = vpop.permute.xlu0 %1333
  %v1367 = vsel %vm859, %v1272, 0.0
  %1368 = vadd.xlane.f32.xlu0 %v1367
  %v1369 = vpop.xlane.xlu0 %1368
  %v1370 = vsel %vm859, %v1274, 0.0
  %1371 = vadd.xlane.f32.xlu0 %v1370
  %v1372 = vpop.xlane.xlu0 %1371
  %v1373 = vsel %vm859, %v1276, 0.0
  %1374 = vadd.xlane.f32.xlu0 %v1373
  %v1375 = vpop.xlane.xlu0 %1374
  %v1376 = vsel %vm859, %v1278, 0.0
  %1377 = vadd.xlane.f32.xlu0 %v1376
  %v1378 = vpop.xlane.xlu0 %1377
  %v1379 = vsel %vm859, %v1280, 0.0
  %1380 = vadd.xlane.f32.xlu0 %v1379
  %v1381 = vpop.xlane.xlu0 %1380
  %v1382 = vsel %vm859, %v1282, 0.0
  %1383 = vadd.xlane.f32.xlu0 %v1382
  %v1384 = vpop.xlane.xlu0 %1383
  %v1385 = vsel %vm859, %v1284, 0.0
  %1386 = vadd.xlane.f32.xlu0 %v1385
  %v1387 = vpop.xlane.xlu0 %1386
  %v1388 = vsel %vm859, %v1286, 0.0
  %1389 = vadd.xlane.f32.xlu0 %v1388
  %v1390 = vpop.xlane.xlu0 %1389
  %v1391 = vsel %vm859, %v1288, 0.0
  %1392 = vadd.xlane.f32.xlu0 %v1391
  %v1393 = vpop.xlane.xlu0 %1392
  %v1394 = vsel %vm859, %v1290, 0.0
  %1395 = vadd.xlane.f32.xlu0 %v1394
  %v1396 = vpop.xlane.xlu0 %1395
  %v1397 = vsel %vm859, %v1292, 0.0
  %1398 = vadd.xlane.f32.xlu0 %v1397
  %v1399 = vpop.xlane.xlu0 %1398
  %v1400 = vsel %vm859, %v1294, 0.0
  %1401 = vadd.xlane.f32.xlu0 %v1400
  %v1402 = vpop.xlane.xlu0 %1401
  %v1403 = vsel %vm859, %v1296, 0.0
  %1404 = vadd.xlane.f32.xlu0 %v1403
  %v1405 = vpop.xlane.xlu0 %1404
  %v1406 = vsel %vm859, %v1298, 0.0
  %1407 = vadd.xlane.f32.xlu0 %v1406
  %v1408 = vpop.xlane.xlu0 %1407
  %v1409 = vsel %vm859, %v1300, 0.0
  %1410 = vadd.xlane.f32.xlu0 %v1409
  %v1411 = vpop.xlane.xlu0 %1410
  %v1412 = vsel %vm859, %v1302, 0.0
  %1413 = vadd.xlane.f32.xlu0 %v1412
  %v1414 = vpop.xlane.xlu0 %1413
  %v1415 = vsel %vm859, %v1304, 0.0
  %1416 = vadd.xlane.f32.xlu0 %v1415
  %v1417 = vpop.xlane.xlu0 %1416
  %v1418 = vsel %vm859, %v1306, 0.0
  %1419 = vadd.xlane.f32.xlu0 %v1418
  %v1420 = vpop.xlane.xlu0 %1419
  %v1421 = vsel %vm859, %v1308, 0.0
  %1422 = vadd.xlane.f32.xlu0 %v1421
  %v1423 = vpop.xlane.xlu0 %1422
  %v1424 = vsel %vm859, %v1310, 0.0
  %1425 = vadd.xlane.f32.xlu0 %v1424
  %v1426 = vpop.xlane.xlu0 %1425
  %v1427 = vsel %vm859, %v1312, 0.0
  %1428 = vadd.xlane.f32.xlu0 %v1427
  %v1429 = vpop.xlane.xlu0 %1428
  %v1430 = vsel %vm859, %v1314, 0.0
  %1431 = vadd.xlane.f32.xlu0 %v1430
  %v1432 = vpop.xlane.xlu0 %1431
  %v1433 = vsel %vm859, %v1316, 0.0
  %1434 = vadd.xlane.f32.xlu0 %v1433
  %v1435 = vpop.xlane.xlu0 %1434
  %v1436 = vsel %vm859, %v1318, 0.0
  %1437 = vadd.xlane.f32.xlu0 %v1436
  %v1438 = vpop.xlane.xlu0 %1437
  %v1439 = vsel %vm859, %v1320, 0.0
  %1440 = vadd.xlane.f32.xlu0 %v1439
  %v1441 = vpop.xlane.xlu0 %1440
  %v1442 = vsel %vm859, %v1322, 0.0
  %1443 = vadd.xlane.f32.xlu0 %v1442
  %v1444 = vpop.xlane.xlu0 %1443
  %v1445 = vsel %vm859, %v1324, 0.0
  %1446 = vadd.xlane.f32.xlu0 %v1445
  %v1447 = vpop.xlane.xlu0 %1446
  %v1448 = vsel %vm859, %v1326, 0.0
  %1449 = vadd.xlane.f32.xlu0 %v1448
  %v1450 = vpop.xlane.xlu0 %1449
  %v1451 = vsel %vm859, %v1328, 0.0
  %1452 = vadd.xlane.f32.xlu0 %v1451
  %v1453 = vpop.xlane.xlu0 %1452
  %v1454 = vsel %vm859, %v1330, 0.0
  %1455 = vadd.xlane.f32.xlu0 %v1454
  %v1456 = vpop.xlane.xlu0 %1455
  %v1457 = vsel %vm859, %v1332, 0.0
  %1458 = vadd.xlane.f32.xlu0 %v1457
  %v1459 = vpop.xlane.xlu0 %1458
  %v1460 = vsel %vm859, %v1334, 0.0
  %1461 = vadd.xlane.f32.xlu0 %v1460
  %v1462 = vpop.xlane.xlu0 %1461
  %v1495 = vperm.slane %v1369, %v989
  %v1496 = vperm.slane %v1372, %v991
  %v1497 = vsel %vm993, %v1496, %v1495
  %v1498 = vperm.slane %v1375, %v995
  %v1499 = vsel %vm997, %v1498, %v1497
  %v1500 = vperm.slane %v1378, %v999
  %v1501 = vsel %vm1001, %v1500, %v1499
  %v1502 = vperm.slane %v1381, %v1003
  %v1503 = vsel %vm1005, %v1502, %v1501
  %v1504 = vperm.slane %v1384, %v1007
  %v1505 = vsel %vm1009, %v1504, %v1503
  %v1506 = vperm.slane %v1387, %v1011
  %v1507 = vsel %vm1013, %v1506, %v1505
  %v1508 = vperm.slane %v1390, %v1015
  %v1509 = vsel %vm1017, %v1508, %v1507
  %v1510 = vperm.slane %v1393, %v989
  %v1511 = vperm.slane %v1396, %v991
  %v1512 = vsel %vm993, %v1511, %v1510
  %v1513 = vperm.slane %v1399, %v995
  %v1514 = vsel %vm997, %v1513, %v1512
  %v1515 = vperm.slane %v1402, %v999
  %v1516 = vsel %vm1001, %v1515, %v1514
  %v1517 = vperm.slane %v1405, %v1003
  %v1518 = vsel %vm1005, %v1517, %v1516
  %v1519 = vperm.slane %v1408, %v1007
  %v1520 = vsel %vm1009, %v1519, %v1518
  %v1521 = vperm.slane %v1411, %v1011
  %v1522 = vsel %vm1013, %v1521, %v1520
  %v1523 = vperm.slane %v1414, %v1015
  %v1524 = vsel %vm1017, %v1523, %v1522
  %v1525 = vperm.slane %v1417, %v989
  %v1526 = vperm.slane %v1420, %v991
  %v1527 = vsel %vm993, %v1526, %v1525
  %v1528 = vperm.slane %v1423, %v995
  %v1529 = vsel %vm997, %v1528, %v1527
  %v1530 = vperm.slane %v1426, %v999
  %v1531 = vsel %vm1001, %v1530, %v1529
  %v1532 = vperm.slane %v1429, %v1003
  %v1533 = vsel %vm1005, %v1532, %v1531
  %v1534 = vperm.slane %v1432, %v1007
  %v1535 = vsel %vm1009, %v1534, %v1533
  %v1536 = vperm.slane %v1435, %v1011
  %v1537 = vsel %vm1013, %v1536, %v1535
  %v1538 = vperm.slane %v1438, %v1015
  %v1539 = vsel %vm1017, %v1538, %v1537
  %v1540 = vperm.slane %v1441, %v989
  %v1541 = vperm.slane %v1444, %v991
  %v1542 = vsel %vm993, %v1541, %v1540
  %v1543 = vperm.slane %v1447, %v995
  %v1544 = vsel %vm997, %v1543, %v1542
  %v1545 = vperm.slane %v1450, %v999
  %v1546 = vsel %vm1001, %v1545, %v1544
  %v1547 = vperm.slane %v1453, %v1003
  %v1548 = vsel %vm1005, %v1547, %v1546
  %v1549 = vperm.slane %v1456, %v1007
  %v1550 = vsel %vm1009, %v1549, %v1548
  %v1551 = vperm.slane %v1459, %v1011
  %v1552 = vsel %vm1013, %v1551, %v1550
  %v1553 = vperm.slane %v1462, %v1015
  %v1554 = vsel %vm1017, %v1553, %v1552
  %v1555 = vsel %vm1064, %v1524, %v1509
  %v1556 = vsel %vm1066, %v1539, %v1555
  %v1557 = vsel %vm1068, %v1554, %v1556
  %v1559 = vsel %vm1071, %v1557, 0.0
  %1560 = vadd.xlane.f32.xlu0 %v1559
  %v1561 = vpop.xlane.xlu0 %1560
  %v1562 = vld [vmem:[%s5] sm:$0xf]
  %v1563 = vadd.f32 %v1561, %v1562
  %1565 = vrot.lane.b32.xlu0 %v1563, 1
  %v1566 = vpop.permute.xlu0 %1565
  %vm1568 = vcmask 11272
  %1569 = vst.msk [vmem:[%s6] sm:$0xf] %vm1568, %v1566
  // Predicated region
  $region26: #{dqn_forward.7} parent=0 // pred_check
    _
  $region27: #{dqn_forward.7} parent=0 // pred_check_branch
    %1571 = sbr.rel (0) target = $region29
  $region28: #{dqn_forward.7} parent=0 // pred_region
    _
  $region29: #{dqn_forward.7} parent=0 // pred_fallthru
    _
  // Predicated region
  $region30: #{dqn_forward.7} parent=0 // pred_check
    _
  $region31: #{dqn_forward.7} parent=0 // pred_check_branch
    %1573 = sbr.rel (0) target = $region33
  $region32: #{dqn_forward.7} parent=0 // pred_region
    _
  $region33: #{dqn_forward.7} parent=0 // pred_fallthru
    _

</llo_original>
